<compile_context>
chip_gen: v7x
topology: tpu7x:2x2x1
jax: 0.10.0
libtpu: 0.0.40
codegen_flags: <defaults>
</compile_context>

<pallas_src>
import math
import functools

import jax
import jax.numpy as jnp
from jax.experimental import pallas as pl
from jax.experimental.pallas import tpu as pltpu


def _round_up(n, m):
    return ((n + m - 1) // m) * m


def _detect_big_vmem():
    """True on 128-MiB-VMEM parts (v5e/v6e/v5p); False (conservative) on v7x/unknown."""
    try:
        cap = getattr(pltpu.get_tpu_info(), "vmem_capacity_bytes", None)
        if cap:
            return int(cap) >= 100 * 1024 * 1024
    except Exception:
        pass
    try:
        kind = jax.devices()[0].device_kind.lower()
        if "v5" in kind or "v6" in kind:
            return True
    except Exception:
        pass
    return False


_BIG_VMEM = _detect_big_vmem()
if _BIG_VMEM:                      # v5e / v6e: 128 MiB physical VMEM
    _VMEM_LIMIT = 96 * 1024 * 1024
    _TM_CAP = 1024
    _FULLK_MAX = 8192              # covers 3^3 * 256 = 6912 without K tiling/padding
    _TK = 2048
    _TS_CAP = 4096
else:                              # v7x (64 MiB) or unknown: conservative tiles
    _VMEM_LIMIT = 48 * 1024 * 1024
    _TM_CAP = 512
    _FULLK_MAX = 4096
    _TK = 1024
    _TS_CAP = 2048


# ----------------------------------------------------------------------------
# Pallas kernels
# ----------------------------------------------------------------------------
def _mm_full_kernel(a_ref, w_ref, b_ref, o_ref):
    # Full-K single block: no accumulator scratch, direct dot + bias epilogue.
    acc = jnp.dot(a_ref[...], w_ref[...], preferred_element_type=jnp.float32)
    o_ref[...] = (acc + b_ref[...]).astype(o_ref.dtype)


def _mm_full_res_kernel(a_ref, w_ref, b_ref, r_ref, o_ref):
    acc = jnp.dot(a_ref[...], w_ref[...], preferred_element_type=jnp.float32)
    o_ref[...] = (acc + b_ref[...] + r_ref[...].astype(jnp.float32)).astype(o_ref.dtype)


def _mm_acc_kernel(a_ref, w_ref, b_ref, o_ref, acc_ref):
    # Tiled-K path (K > full-K threshold): f32 VMEM accumulator across the K grid axis.
    k = pl.program_id(2)

    @pl.when(k == 0)
    def _():
        acc_ref[...] = jnp.zeros_like(acc_ref)

    acc_ref[...] += jnp.dot(a_ref[...], w_ref[...], preferred_element_type=jnp.float32)

    @pl.when(k == pl.num_programs(2) - 1)
    def _():
        o_ref[...] = (acc_ref[...] + b_ref[...]).astype(o_ref.dtype)


def _mm_acc_res_kernel(a_ref, w_ref, b_ref, r_ref, o_ref, acc_ref):
    k = pl.program_id(2)

    @pl.when(k == 0)
    def _():
        acc_ref[...] = jnp.zeros_like(acc_ref)

    acc_ref[...] += jnp.dot(a_ref[...], w_ref[...], preferred_element_type=jnp.float32)

    @pl.when(k == pl.num_programs(2) - 1)
    def _():
        o_ref[...] = (acc_ref[...] + b_ref[...]
                      + r_ref[...].astype(jnp.float32)).astype(o_ref.dtype)


def _gn_stats_kernel(x_ref, sum_ref, sq_ref, *, S, TS):
    # x: (1, TS, C) bf16.  Emit per-tile partial channel sum / sum-of-squares (f32).
    # Fully "parallel" grid; ragged-tail masking only on the last spatial tile.
    si = pl.program_id(1)
    x = x_ref[...].astype(jnp.float32)
    if S % TS != 0:  # trace-time branch: only emitted when a ragged tail exists
        last = pl.num_programs(1) - 1

        @pl.when(si == last)
        def _():
            row = jax.lax.broadcasted_iota(jnp.int32, (1, TS, 1), 1) + si * TS
            xm = jnp.where(row < S, x, 0.0)
            sum_ref[...] = jnp.sum(xm, axis=1, keepdims=True)
            sq_ref[...] = jnp.sum(xm * xm, axis=1, keepdims=True)

        @pl.when(si != last)
        def _():
            sum_ref[...] = jnp.sum(x, axis=1, keepdims=True)
            sq_ref[...] = jnp.sum(x * x, axis=1, keepdims=True)
    else:
        sum_ref[...] = jnp.sum(x, axis=1, keepdims=True)
        sq_ref[...] = jnp.sum(x * x, axis=1, keepdims=True)


def _gn_apply_silu_kernel(x_ref, scale_ref, shift_ref, o_ref):
    # x: (1, TS, C) bf16; scale/shift: (1, 1, C) f32 (group stats folded per channel).
    y = x_ref[...].astype(jnp.float32) * scale_ref[...] + shift_ref[...]
    sig = pl.reciprocal(1.0 + jnp.exp(-y), approx=True)   # SiLU sigmoid on the EUP path
    o_ref[...] = (y * sig).astype(o_ref.dtype)


# ----------------------------------------------------------------------------
# Kernel wrappers
# ----------------------------------------------------------------------------
def matmul_bias(A, W, b, residual=None, out_dtype=jnp.bfloat16):
    """A:(M,K) @ W:(K,N) + b[, + residual]; bf16 operands, f32 accumulation."""
    M, K = A.shape
    _, N = W.shape
    A = A.astype(jnp.bfloat16)
    W = W.astype(jnp.bfloat16)

    n_out = N
    if N < 128:                      # lane-dense output stores: pad N to 128, slice after
        W = jnp.pad(W, ((0, 0), (0, 128 - N)))
        b = jnp.pad(b, (0, 128 - N))
        if residual is not None:
            residual = jnp.pad(residual, ((0, 0), (0, 128 - N)))
        N = 128
    b2 = b.reshape(1, N).astype(jnp.float32)

    if M >= 8192:
        TM = _TM_CAP
    elif M >= 2048:
        TM = 512
    elif M >= 512:
        TM = 256
    elif M >= 128:
        TM = 128
    else:
        TM = M
    TN = 256 if N >= 256 else 128

    if K <= _FULLK_MAX:
        TK, nk = K, 1                # full-K: no K padding, no accumulator scratch
    else:
        TK = _TK
        Kp = _round_up(K, TK)
        if Kp != K:                  # zero K-padding keeps the reduction exact
            A = jnp.pad(A, ((0, 0), (0, Kp - K)))
            W = jnp.pad(W, ((0, Kp - K), (0, 0)))
        nk = Kp // TK

    nm = pl.cdiv(M, TM)
    nn = pl.cdiv(N, TN)

    if nk == 1:
        in_specs = [
            pl.BlockSpec((TM, TK), lambda i, j: (i, 0)),
            pl.BlockSpec((TK, TN), lambda i, j: (0, j)),
            pl.BlockSpec((1, TN), lambda i, j: (0, j)),
        ]
        args = [A, W, b2]
        if residual is None:
            kernel = _mm_full_kernel
        else:
            kernel = _mm_full_res_kernel
            in_specs.append(pl.BlockSpec((TM, TN), lambda i, j: (i, j)))
            args.append(residual.astype(jnp.bfloat16))
        out = pl.pallas_call(
            kernel,
            out_shape=jax.ShapeDtypeStruct((M, N), out_dtype),
            grid=(nm, nn),
            in_specs=in_specs,
            out_specs=pl.BlockSpec((TM, TN), lambda i, j: (i, j)),
            compiler_params=pltpu.CompilerParams(
                dimension_semantics=("parallel", "parallel"),
                vmem_limit_bytes=_VMEM_LIMIT),
        )(*args)
    else:
        in_specs = [
            pl.BlockSpec((TM, TK), lambda i, j, k: (i, k)),
            pl.BlockSpec((TK, TN), lambda i, j, k: (k, j)),
            pl.BlockSpec((1, TN), lambda i, j, k: (0, j)),
        ]
        args = [A, W, b2]
        if residual is None:
            kernel = _mm_acc_kernel
        else:
            kernel = _mm_acc_res_kernel
            in_specs.append(pl.BlockSpec((TM, TN), lambda i, j, k: (i, j)))
            args.append(residual.astype(jnp.bfloat16))
        out = pl.pallas_call(
            kernel,
            out_shape=jax.ShapeDtypeStruct((M, N), out_dtype),
            grid=(nm, nn, nk),
            in_specs=in_specs,
            out_specs=pl.BlockSpec((TM, TN), lambda i, j, k: (i, j)),
            scratch_shapes=[pltpu.VMEM((TM, TN), jnp.float32)],
            compiler_params=pltpu.CompilerParams(
                dimension_semantics=("parallel", "parallel", "arbitrary"),
                vmem_limit_bytes=_VMEM_LIMIT),
        )(*args)

    if n_out != N:
        out = out[:, :n_out]
    return out


def same_pad_conv3d(x, w, b, stride=(1, 1, 1), residual=None):
    """x: (B, D, H, W, Cin) channels-last. w: (kd, kh, kw, Cin, Cout). b: (Cout,).
    Matches SamePadConv3d: replicate padding of (k - s) per spatial dim (extra element
    on the low side), then a strided valid conv. Optional fused residual add."""
    kd, kh, kw, Cin, Cout = w.shape
    sd, sh, sw = stride
    pads = []
    for k, s in zip((kd, kh, kw), (sd, sh, sw)):
        p = k - s
        pads.append((p // 2 + p % 2, p // 2))
    x = x.astype(jnp.bfloat16)                 # pad + im2col happen at half width
    xp = jnp.pad(x, ((0, 0), pads[0], pads[1], pads[2], (0, 0)), mode="edge")
    B, Dp, Hp, Wp, _ = xp.shape
    Do = (Dp - kd) // sd + 1
    Ho = (Hp - kh) // sh + 1
    Wo = (Wp - kw) // sw + 1

    # TODO(synk): replace this materialized im2col with a direct-conv Pallas kernel
    # (halo-block DMA from the padded channels-last input; taps folded into the K grid
    # axis) so the 27x/64x patch matrix never hits HBM.
    cols = []
    for a in range(kd):
        for bb in range(kh):
            for c in range(kw):
                cols.append(xp[:, a:a + (Do - 1) * sd + 1:sd,
                               bb:bb + (Ho - 1) * sh + 1:sh,
                               c:c + (Wo - 1) * sw + 1:sw, :])
    patches = jnp.stack(cols, axis=4)                        # (B, Do, Ho, Wo, taps, Cin)
    A = patches.reshape(B * Do * Ho * Wo, kd * kh * kw * Cin)
    Wm = w.reshape(kd * kh * kw * Cin, Cout)
    R = None if residual is None else residual.reshape(B * Do * Ho * Wo, Cout)
    out = matmul_bias(A, Wm, b, R, out_dtype=jnp.bfloat16)   # Pallas hot path
    return out.reshape(B, Do, Ho, Wo, Cout)


def group_norm_silu(x, gamma, beta, num_groups, eps=1e-6, out_dtype=jnp.bfloat16):
    """Fused GroupNorm(eps=1e-6, affine) + SiLU on channels-last x: (B, D, H, W, C).
    Pass 1: per-spatial-tile partial channel sums (fully parallel grid).
    Pass 2: fused per-channel scale/shift + SiLU."""
    B, D, H, W, C = x.shape
    G = num_groups
    Cg = C // G
    S = D * H * W
    xr = x.reshape(B, S, C).astype(jnp.bfloat16)

    TS = S if S <= _TS_CAP else _TS_CAP
    ns = pl.cdiv(S, TS)

    ch_sum, ch_sq = pl.pallas_call(
        functools.partial(_gn_stats_kernel, S=S, TS=TS),
        out_shape=(jax.ShapeDtypeStruct((B, ns, C), jnp.float32),
                   jax.ShapeDtypeStruct((B, ns, C), jnp.float32)),
        grid=(B, ns),
        in_specs=[pl.BlockSpec((1, TS, C), lambda bi, si: (bi, si, 0))],
        out_specs=(pl.BlockSpec((1, 1, C), lambda bi, si: (bi, si, 0)),
                   pl.BlockSpec((1, 1, C), lambda bi, si: (bi, si, 0))),
        compiler_params=pltpu.CompilerParams(
            dimension_semantics=("parallel", "parallel"),
            vmem_limit_bytes=_VMEM_LIMIT),
    )(xr)

    # Tiny (B, G) statistics math in plain JAX, folded into per-channel scale/shift.
    cnt = float(S * Cg)
    g_sum = ch_sum.sum(axis=1).reshape(B, G, Cg).sum(axis=2)
    g_sq = ch_sq.sum(axis=1).reshape(B, G, Cg).sum(axis=2)
    mean = g_sum / cnt
    var = jnp.maximum(g_sq / cnt - mean * mean, 0.0)
    rstd = jax.lax.rsqrt(var + eps)
    rstd_c = jnp.repeat(rstd, Cg, axis=1)                    # (B, C)
    mean_c = jnp.repeat(mean, Cg, axis=1)                    # (B, C)
    scale = (rstd_c * gamma[None, :]).reshape(B, 1, C).astype(jnp.float32)
    shift = (beta[None, :] - mean_c * rstd_c * gamma[None, :]).reshape(B, 1, C)
    shift = shift.astype(jnp.float32)

    out = pl.pallas_call(
        _gn_apply_silu_kernel,
        out_shape=jax.ShapeDtypeStruct((B, S, C), out_dtype),
        grid=(B, ns),
        in_specs=[pl.BlockSpec((1, TS, C), lambda bi, si: (bi, si, 0)),
                  pl.BlockSpec((1, 1, C), lambda bi, si: (bi, 0, 0)),
                  pl.BlockSpec((1, 1, C), lambda bi, si: (bi, 0, 0))],
        out_specs=pl.BlockSpec((1, TS, C), lambda bi, si: (bi, si, 0)),
        compiler_params=pltpu.CompilerParams(
            dimension_semantics=("parallel", "parallel"),
            vmem_limit_bytes=_VMEM_LIMIT),
    )(xr, scale, shift)
    return out.reshape(B, D, H, W, C)


# ----------------------------------------------------------------------------
# Encoder: parameter init + forward
# ----------------------------------------------------------------------------
def _conv_init(key, kd, kh, kw, cin, cout):
    k1, k2 = jax.random.split(key)
    w = jax.random.normal(k1, (kd, kh, kw, cin, cout), jnp.float32) * 0.05
    b = jax.random.normal(k2, (cout,), jnp.float32) * 0.01
    return w, b


def init_encoder_params(key, n_hiddens, downsample, image_channel):
    """Params dict contains arrays only (jit-friendly); strides derived in forward."""
    n_times = [int(math.log2(d)) for d in downsample]
    max_ds = max(n_times)

    keys = iter(jax.random.split(key, 4 * max_ds + 2))
    params = {}
    w, b = _conv_init(next(keys), 3, 3, 3, image_channel, n_hiddens)
    params["conv_first"] = {"w": w, "b": b}

    blocks = []
    out_channels = n_hiddens
    for i in range(max_ds):
        in_ch = n_hiddens * 2 ** i
        out_ch = n_hiddens * 2 ** (i + 1)
        dw, db = _conv_init(next(keys), 4, 4, 4, in_ch, out_ch)
        c1w, c1b = _conv_init(next(keys), 3, 3, 3, out_ch, out_ch)
        c2w, c2b = _conv_init(next(keys), 3, 3, 3, out_ch, out_ch)
        blocks.append({
            "down_w": dw, "down_b": db,
            "norm1_g": jnp.ones((out_ch,), jnp.float32),
            "norm1_b": jnp.zeros((out_ch,), jnp.float32),
            "conv1_w": c1w, "conv1_b": c1b,
            "norm2_g": jnp.ones((out_ch,), jnp.float32),
            "norm2_b": jnp.zeros((out_ch,), jnp.float32),
            "conv2_w": c2w, "conv2_b": c2b,
        })
        out_channels = out_ch

    params["blocks"] = blocks
    params["final_g"] = jnp.ones((out_channels,), jnp.float32)
    params["final_b"] = jnp.zeros((out_channels,), jnp.float32)
    return params


def encoder_forward(params, x_ncdhw, num_groups, downsample):
    # layout: input NCDHW (PyTorch) -> NDHWC internally (bf16 activations) -> NCDHW f32.
    x = jnp.transpose(x_ncdhw, (0, 2, 3, 4, 1))

    h = same_pad_conv3d(x, params["conv_first"]["w"], params["conv_first"]["b"], (1, 1, 1))

    nt = [int(math.log2(d)) for d in downsample]
    for blk in params["blocks"]:
        stride = tuple(2 if d > 0 else 1 for d in nt)
        h = same_pad_conv3d(h, blk["down_w"], blk["down_b"], stride)
        # ResBlock(out_ch, out_ch): in==out channels so no conv_shortcut; Dropout(p=0.0)
        # is not applied in the reference forward. Residual add fused into conv2 epilogue.
        t = group_norm_silu(h, blk["norm1_g"], blk["norm1_b"], num_groups)
        t = same_pad_conv3d(t, blk["conv1_w"], blk["conv1_b"], (1, 1, 1))
        t = group_norm_silu(t, blk["norm2_g"], blk["norm2_b"], num_groups)
        h = same_pad_conv3d(t, blk["conv2_w"], blk["conv2_b"], (1, 1, 1), residual=h)
        nt = [d - 1 for d in nt]

    h = group_norm_silu(h, params["final_g"], params["final_b"], num_groups,
                        out_dtype=jnp.float32)
    return jnp.transpose(h, (0, 4, 1, 2, 3))


# ----------------------------------------------------------------------------
if __name__ == "__main__":
    key = jax.random.PRNGKey(0)
    kx, kp = jax.random.split(key)

    # Small config consistent with Encoder(n_hiddens=8, downsample=(2,2,2),
    # image_channel=3, norm_type='group', num_groups=4).
    n_hiddens = 8
    downsample = (2, 2, 2)
    image_channel = 3
    num_groups = 4
    max_ds = max(int(math.log2(d)) for d in downsample)
    out_channels = n_hiddens * 2 ** max_ds

    x = jax.random.normal(kx, (2, image_channel, 8, 8, 8), jnp.float32)  # NCDHW
    params = init_encoder_params(kp, n_hiddens, downsample, image_channel)

    fwd = jax.jit(lambda p, inp: encoder_forward(p, inp, num_groups, downsample))
    y = fwd(params, x)
    jax.block_until_ready(y)

    expected = (2, out_channels, 4, 4, 4)  # one downsample block -> stride 2
    assert y.shape == expected, (y.shape, expected)
    assert bool(jnp.all(jnp.isfinite(y)))
    print("KERNEL_OK")
</pallas_src>

<mosaic_0001>
module attributes {stable_mosaic.version = 11 : i64} {
  func.func @_mm_full_kernel(%arg0: i32, %arg1: i32, %arg2: memref<256x81xbf16, #tpu.memory_space<vmem>>, %arg3: memref<81x128xbf16, #tpu.memory_space<vmem>>, %arg4: memref<1x128xf32, #tpu.memory_space<vmem>>, %arg5: memref<256x128xbf16, #tpu.memory_space<vmem>>) attributes {dimension_semantics = [#tpu.dimension_semantics<parallel>, #tpu.dimension_semantics<parallel>], iteration_bounds = array<i64: 4, 1>, scalar_prefetch = 0 : i64, scratch_operands = 0 : i64, tpu.core_type = #tpu.core_type<tc>, window_params = [{transform_indices = @transform_0, window_bounds = array<i64: 256, 81>}, {transform_indices = @transform_1, window_bounds = array<i64: 81, 128>}, {transform_indices = @transform_2, window_bounds = array<i64: 1, 128>}, {transform_indices = @transform_3, window_bounds = array<i64: 256, 128>}]} {
    %c0 = arith.constant 0 : index
    %c0_0 = arith.constant 0 : index
    %0 = vector.load %arg2[%c0, %c0_0] : memref<256x81xbf16, #tpu.memory_space<vmem>>, vector<256x81xbf16>
    %c0_1 = arith.constant 0 : index
    %c0_2 = arith.constant 0 : index
    %1 = vector.load %arg3[%c0_1, %c0_2] : memref<81x128xbf16, #tpu.memory_space<vmem>>, vector<81x128xbf16>
    %cst = arith.constant dense<0.000000e+00> : vector<256x128xf32>
    %2 = tpu.matmul %0, %1, %cst {dimension_numbers = #tpu.dot_dimension_numbers<[1], [0], [0], [1], [0, 0, 1, 1], [], []>} : vector<256x81xbf16>, vector<81x128xbf16>, vector<256x128xf32> -> vector<256x128xf32>
    %c0_3 = arith.constant 0 : index
    %c0_4 = arith.constant 0 : index
    %3 = vector.load %arg4[%c0_3, %c0_4] : memref<1x128xf32, #tpu.memory_space<vmem>>, vector<1x128xf32>
    %4 = vector.broadcast %3 : vector<1x128xf32> to vector<256x128xf32>
    %5 = arith.addf %2, %4 : vector<256x128xf32>
    %6 = arith.truncf %5 : vector<256x128xf32> to vector<256x128xbf16>
    %c0_5 = arith.constant 0 : index
    %c0_6 = arith.constant 0 : index
    %7 = vector.load %arg5[%c0_5, %c0_6] : memref<256x128xbf16, #tpu.memory_space<vmem>>, vector<256x128xbf16>
    tpu.vector_store %arg5[%c0_5, %c0_6], %6 {strides = array<i32>} : memref<256x128xbf16, #tpu.memory_space<vmem>>, vector<256x128xbf16>,
    return
  }
  func.func @transform_0(%arg0: i32, %arg1: i32) -> (i32, i32) {
    %c0_i32 = arith.constant 0 : i32
    %c0_i32_0 = arith.constant 0 : i32
    return %arg0, %c0_i32 : i32, i32
  }
  func.func @transform_1(%arg0: i32, %arg1: i32) -> (i32, i32) {
    %c0_i32 = arith.constant 0 : i32
    %c0_i32_0 = arith.constant 0 : i32
    return %c0_i32, %arg1 : i32, i32
  }
  func.func @transform_2(%arg0: i32, %arg1: i32) -> (i32, i32) {
    %c0_i32 = arith.constant 0 : i32
    %c0_i32_0 = arith.constant 0 : i32
    return %c0_i32, %arg1 : i32, i32
  }
  func.func @transform_3(%arg0: i32, %arg1: i32) -> (i32, i32) {
    %c0_i32 = arith.constant 0 : i32
    return %arg0, %arg1 : i32, i32
  }
}

module attributes {stable_mosaic.version = 11 : i64} {
  func.func @_mm_full_kernel(%arg0: i32, %arg1: i32, %arg2: memref<128x512xbf16, #tpu.memory_space<vmem>>, %arg3: memref<512x128xbf16, #tpu.memory_space<vmem>>, %arg4: memref<1x128xf32, #tpu.memory_space<vmem>>, %arg5: memref<128x128xbf16, #tpu.memory_space<vmem>>) attributes {dimension_semantics = [#tpu.dimension_semantics<parallel>, #tpu.dimension_semantics<parallel>], iteration_bounds = array<i64: 1, 1>, scalar_prefetch = 0 : i64, scratch_operands = 0 : i64, tpu.core_type = #tpu.core_type<tc>, window_params = [{transform_indices = @transform_0, window_bounds = array<i64: 128, 512>}, {transform_indices = @transform_1, window_bounds = array<i64: 512, 128>}, {transform_indices = @transform_2, window_bounds = array<i64: 1, 128>}, {transform_indices = @transform_3, window_bounds = array<i64: 128, 128>}]} {
    %c0 = arith.constant 0 : index
    %c0_0 = arith.constant 0 : index
    %0 = vector.load %arg2[%c0, %c0_0] : memref<128x512xbf16, #tpu.memory_space<vmem>>, vector<128x512xbf16>
    %c0_1 = arith.constant 0 : index
    %c0_2 = arith.constant 0 : index
    %1 = vector.load %arg3[%c0_1, %c0_2] : memref<512x128xbf16, #tpu.memory_space<vmem>>, vector<512x128xbf16>
    %cst = arith.constant dense<0.000000e+00> : vector<128x128xf32>
    %2 = tpu.matmul %0, %1, %cst {dimension_numbers = #tpu.dot_dimension_numbers<[1], [0], [0], [1], [0, 0, 1, 1], [], []>} : vector<128x512xbf16>, vector<512x128xbf16>, vector<128x128xf32> -> vector<128x128xf32>
    %c0_3 = arith.constant 0 : index
    %c0_4 = arith.constant 0 : index
    %3 = vector.load %arg4[%c0_3, %c0_4] : memref<1x128xf32, #tpu.memory_space<vmem>>, vector<1x128xf32>
    %4 = vector.broadcast %3 : vector<1x128xf32> to vector<128x128xf32>
    %5 = arith.addf %2, %4 : vector<128x128xf32>
    %6 = arith.truncf %5 : vector<128x128xf32> to vector<128x128xbf16>
    %c0_5 = arith.constant 0 : index
    %c0_6 = arith.constant 0 : index
    %7 = vector.load %arg5[%c0_5, %c0_6] : memref<128x128xbf16, #tpu.memory_space<vmem>>, vector<128x128xbf16>
    tpu.vector_store %arg5[%c0_5, %c0_6], %6 {strides = array<i32>} : memref<128x128xbf16, #tpu.memory_space<vmem>>, vector<128x128xbf16>,
    return
  }
  func.func @transform_0(%arg0: i32, %arg1: i32) -> (i32, i32) {
    %c0_i32 = arith.constant 0 : i32
    %c0_i32_0 = arith.constant 0 : i32
    return %arg0, %c0_i32 : i32, i32
  }
  func.func @transform_1(%arg0: i32, %arg1: i32) -> (i32, i32) {
    %c0_i32 = arith.constant 0 : i32
    %c0_i32_0 = arith.constant 0 : i32
    return %c0_i32, %arg1 : i32, i32
  }
  func.func @transform_2(%arg0: i32, %arg1: i32) -> (i32, i32) {
    %c0_i32 = arith.constant 0 : i32
    %c0_i32_0 = arith.constant 0 : i32
    return %c0_i32, %arg1 : i32, i32
  }
  func.func @transform_3(%arg0: i32, %arg1: i32) -> (i32, i32) {
    %c0_i32 = arith.constant 0 : i32
    return %arg0, %arg1 : i32, i32
  }
}

module attributes {stable_mosaic.version = 11 : i64} {
  func.func @_gn_stats_kernel(%arg0: i32, %arg1: i32, %arg2: memref<1x64x16xbf16, #tpu.memory_space<vmem>>, %arg3: memref<1x1x16xf32, #tpu.memory_space<vmem>>, %arg4: memref<1x1x16xf32, #tpu.memory_space<vmem>>) attributes {dimension_semantics = [#tpu.dimension_semantics<parallel>, #tpu.dimension_semantics<parallel>], iteration_bounds = array<i64: 2, 1>, scalar_prefetch = 0 : i64, scratch_operands = 0 : i64, tpu.core_type = #tpu.core_type<tc>, window_params = [{transform_indices = @transform_0, window_bounds = array<i64: 1, 64, 16>}, {transform_indices = @transform_1, window_bounds = array<i64: 1, 1, 16>}, {transform_indices = @transform_2, window_bounds = array<i64: 1, 1, 16>}]} {
    %c0 = arith.constant 0 : index
    %c0_0 = arith.constant 0 : index
    %c0_1 = arith.constant 0 : index
    %0 = vector.load %arg2[%c0, %c0_0, %c0_1] : memref<1x64x16xbf16, #tpu.memory_space<vmem>>, vector<1x64x16xbf16>
    %1 = arith.extf %0 : vector<1x64x16xbf16> to vector<1x64x16xf32>
    %cst = arith.constant dense<0.000000e+00> : vector<1x16xf32>
    %2 = vector.multi_reduction <add>, %1, %cst [1] : vector<1x64x16xf32> to vector<1x16xf32>
    %3 = vector.shape_cast %2 : vector<1x16xf32> to vector<1x1x16xf32>
    %c0_2 = arith.constant 0 : index
    %c0_3 = arith.constant 0 : index
    %c0_4 = arith.constant 0 : index
    %4 = vector.load %arg3[%c0_2, %c0_3, %c0_4] : memref<1x1x16xf32, #tpu.memory_space<vmem>>, vector<1x1x16xf32>
    tpu.vector_store %arg3[%c0_2, %c0_3, %c0_4], %3 {strides = array<i32>} : memref<1x1x16xf32, #tpu.memory_space<vmem>>, vector<1x1x16xf32>,
    %5 = arith.mulf %1, %1 : vector<1x64x16xf32>
    %cst_5 = arith.constant dense<0.000000e+00> : vector<1x16xf32>
    %6 = vector.multi_reduction <add>, %5, %cst_5 [1] : vector<1x64x16xf32> to vector<1x16xf32>
    %7 = vector.shape_cast %6 : vector<1x16xf32> to vector<1x1x16xf32>
    %c0_6 = arith.constant 0 : index
    %c0_7 = arith.constant 0 : index
    %c0_8 = arith.constant 0 : index
    %8 = vector.load %arg4[%c0_6, %c0_7, %c0_8] : memref<1x1x16xf32, #tpu.memory_space<vmem>>, vector<1x1x16xf32>
    tpu.vector_store %arg4[%c0_6, %c0_7, %c0_8], %7 {strides = array<i32>} : memref<1x1x16xf32, #tpu.memory_space<vmem>>, vector<1x1x16xf32>,
    return
  }
  func.func @transform_0(%arg0: i32, %arg1: i32) -> (i32, i32, i32) {
    %c0_i32 = arith.constant 0 : i32
    %c0_i32_0 = arith.constant 0 : i32
    return %arg0, %arg1, %c0_i32 : i32, i32, i32
  }
  func.func @transform_1(%arg0: i32, %arg1: i32) -> (i32, i32, i32) {
    %c0_i32 = arith.constant 0 : i32
    %c0_i32_0 = arith.constant 0 : i32
    return %arg0, %arg1, %c0_i32 : i32, i32, i32
  }
  func.func @transform_2(%arg0: i32, %arg1: i32) -> (i32, i32, i32) {
    %c0_i32 = arith.constant 0 : i32
    %c0_i32_0 = arith.constant 0 : i32
    return %arg0, %arg1, %c0_i32 : i32, i32, i32
  }
}

module attributes {stable_mosaic.version = 11 : i64} {
  func.func @_gn_apply_silu_kernel(%arg0: i32, %arg1: i32, %arg2: memref<1x64x16xbf16, #tpu.memory_space<vmem>>, %arg3: memref<1x1x16xf32, #tpu.memory_space<vmem>>, %arg4: memref<1x1x16xf32, #tpu.memory_space<vmem>>, %arg5: memref<1x64x16xbf16, #tpu.memory_space<vmem>>) attributes {dimension_semantics = [#tpu.dimension_semantics<parallel>, #tpu.dimension_semantics<parallel>], iteration_bounds = array<i64: 2, 1>, scalar_prefetch = 0 : i64, scratch_operands = 0 : i64, tpu.core_type = #tpu.core_type<tc>, window_params = [{transform_indices = @transform_0, window_bounds = array<i64: 1, 64, 16>}, {transform_indices = @transform_1, window_bounds = array<i64: 1, 1, 16>}, {transform_indices = @transform_2, window_bounds = array<i64: 1, 1, 16>}, {transform_indices = @transform_3, window_bounds = array<i64: 1, 64, 16>}]} {
    %c0 = arith.constant 0 : index
    %c0_0 = arith.constant 0 : index
    %c0_1 = arith.constant 0 : index
    %0 = vector.load %arg2[%c0, %c0_0, %c0_1] : memref<1x64x16xbf16, #tpu.memory_space<vmem>>, vector<1x64x16xbf16>
    %1 = arith.extf %0 : vector<1x64x16xbf16> to vector<1x64x16xf32>
    %c0_2 = arith.constant 0 : index
    %c0_3 = arith.constant 0 : index
    %c0_4 = arith.constant 0 : index
    %2 = vector.load %arg3[%c0_2, %c0_3, %c0_4] : memref<1x1x16xf32, #tpu.memory_space<vmem>>, vector<1x1x16xf32>
    %3 = vector.broadcast %2 : vector<1x1x16xf32> to vector<1x64x16xf32>
    %4 = arith.mulf %1, %3 : vector<1x64x16xf32>
    %c0_5 = arith.constant 0 : index
    %c0_6 = arith.constant 0 : index
    %c0_7 = arith.constant 0 : index
    %5 = vector.load %arg4[%c0_5, %c0_6, %c0_7] : memref<1x1x16xf32, #tpu.memory_space<vmem>>, vector<1x1x16xf32>
    %6 = vector.broadcast %5 : vector<1x1x16xf32> to vector<1x64x16xf32>
    %7 = arith.addf %4, %6 : vector<1x64x16xf32>
    %cst = arith.constant 0.000000e+00 : f32
    %8 = vector.broadcast %cst : f32 to vector<1x64x16xf32>
    %9 = arith.subf %8, %7 : vector<1x64x16xf32>
    %10 = math.exp %9 : vector<1x64x16xf32>
    %cst_8 = arith.constant 1.000000e+00 : f32
    %11 = vector.broadcast %cst_8 : f32 to vector<1x64x16xf32>
    %12 = arith.addf %11, %10 : vector<1x64x16xf32>
    %13 = tpu.reciprocal %12 {approx = true} : vector<1x64x16xf32> -> vector<1x64x16xf32>
    %14 = arith.mulf %7, %13 : vector<1x64x16xf32>
    %15 = arith.truncf %14 : vector<1x64x16xf32> to vector<1x64x16xbf16>
    %c0_9 = arith.constant 0 : index
    %c0_10 = arith.constant 0 : index
    %c0_11 = arith.constant 0 : index
    %16 = vector.load %arg5[%c0_9, %c0_10, %c0_11] : memref<1x64x16xbf16, #tpu.memory_space<vmem>>, vector<1x64x16xbf16>
    tpu.vector_store %arg5[%c0_9, %c0_10, %c0_11], %15 {strides = array<i32>} : memref<1x64x16xbf16, #tpu.memory_space<vmem>>, vector<1x64x16xbf16>,
    return
  }
  func.func @transform_0(%arg0: i32, %arg1: i32) -> (i32, i32, i32) {
    %c0_i32 = arith.constant 0 : i32
    %c0_i32_0 = arith.constant 0 : i32
    return %arg0, %arg1, %c0_i32 : i32, i32, i32
  }
  func.func @transform_1(%arg0: i32, %arg1: i32) -> (i32, i32, i32) {
    %c0_i32 = arith.constant 0 : i32
    %c0_i32_0 = arith.constant 0 : i32
    %c0_i32_1 = arith.constant 0 : i32
    return %arg0, %c0_i32, %c0_i32_0 : i32, i32, i32
  }
  func.func @transform_2(%arg0: i32, %arg1: i32) -> (i32, i32, i32) {
    %c0_i32 = arith.constant 0 : i32
    %c0_i32_0 = arith.constant 0 : i32
    %c0_i32_1 = arith.constant 0 : i32
    return %arg0, %c0_i32, %c0_i32_0 : i32, i32, i32
  }
  func.func @transform_3(%arg0: i32, %arg1: i32) -> (i32, i32, i32) {
    %c0_i32 = arith.constant 0 : i32
    %c0_i32_0 = arith.constant 0 : i32
    return %arg0, %arg1, %c0_i32 : i32, i32, i32
  }
}

module attributes {stable_mosaic.version = 11 : i64} {
  func.func @_mm_full_kernel(%arg0: i32, %arg1: i32, %arg2: memref<128x432xbf16, #tpu.memory_space<vmem>>, %arg3: memref<432x128xbf16, #tpu.memory_space<vmem>>, %arg4: memref<1x128xf32, #tpu.memory_space<vmem>>, %arg5: memref<128x128xbf16, #tpu.memory_space<vmem>>) attributes {dimension_semantics = [#tpu.dimension_semantics<parallel>, #tpu.dimension_semantics<parallel>], iteration_bounds = array<i64: 1, 1>, scalar_prefetch = 0 : i64, scratch_operands = 0 : i64, tpu.core_type = #tpu.core_type<tc>, window_params = [{transform_indices = @transform_0, window_bounds = array<i64: 128, 432>}, {transform_indices = @transform_1, window_bounds = array<i64: 432, 128>}, {transform_indices = @transform_2, window_bounds = array<i64: 1, 128>}, {transform_indices = @transform_3, window_bounds = array<i64: 128, 128>}]} {
    %c0 = arith.constant 0 : index
    %c0_0 = arith.constant 0 : index
    %0 = vector.load %arg2[%c0, %c0_0] : memref<128x432xbf16, #tpu.memory_space<vmem>>, vector<128x432xbf16>
    %c0_1 = arith.constant 0 : index
    %c0_2 = arith.constant 0 : index
    %1 = vector.load %arg3[%c0_1, %c0_2] : memref<432x128xbf16, #tpu.memory_space<vmem>>, vector<432x128xbf16>
    %cst = arith.constant dense<0.000000e+00> : vector<128x128xf32>
    %2 = tpu.matmul %0, %1, %cst {dimension_numbers = #tpu.dot_dimension_numbers<[1], [0], [0], [1], [0, 0, 1, 1], [], []>} : vector<128x432xbf16>, vector<432x128xbf16>, vector<128x128xf32> -> vector<128x128xf32>
    %c0_3 = arith.constant 0 : index
    %c0_4 = arith.constant 0 : index
    %3 = vector.load %arg4[%c0_3, %c0_4] : memref<1x128xf32, #tpu.memory_space<vmem>>, vector<1x128xf32>
    %4 = vector.broadcast %3 : vector<1x128xf32> to vector<128x128xf32>
    %5 = arith.addf %2, %4 : vector<128x128xf32>
    %6 = arith.truncf %5 : vector<128x128xf32> to vector<128x128xbf16>
    %c0_5 = arith.constant 0 : index
    %c0_6 = arith.constant 0 : index
    %7 = vector.load %arg5[%c0_5, %c0_6] : memref<128x128xbf16, #tpu.memory_space<vmem>>, vector<128x128xbf16>
    tpu.vector_store %arg5[%c0_5, %c0_6], %6 {strides = array<i32>} : memref<128x128xbf16, #tpu.memory_space<vmem>>, vector<128x128xbf16>,
    return
  }
  func.func @transform_0(%arg0: i32, %arg1: i32) -> (i32, i32) {
    %c0_i32 = arith.constant 0 : i32
    %c0_i32_0 = arith.constant 0 : i32
    return %arg0, %c0_i32 : i32, i32
  }
  func.func @transform_1(%arg0: i32, %arg1: i32) -> (i32, i32) {
    %c0_i32 = arith.constant 0 : i32
    %c0_i32_0 = arith.constant 0 : i32
    return %c0_i32, %arg1 : i32, i32
  }
  func.func @transform_2(%arg0: i32, %arg1: i32) -> (i32, i32) {
    %c0_i32 = arith.constant 0 : i32
    %c0_i32_0 = arith.constant 0 : i32
    return %c0_i32, %arg1 : i32, i32
  }
  func.func @transform_3(%arg0: i32, %arg1: i32) -> (i32, i32) {
    %c0_i32 = arith.constant 0 : i32
    return %arg0, %arg1 : i32, i32
  }
}

module attributes {stable_mosaic.version = 11 : i64} {
  func.func @_mm_full_res_kernel(%arg0: i32, %arg1: i32, %arg2: memref<128x432xbf16, #tpu.memory_space<vmem>>, %arg3: memref<432x128xbf16, #tpu.memory_space<vmem>>, %arg4: memref<1x128xf32, #tpu.memory_space<vmem>>, %arg5: memref<128x128xbf16, #tpu.memory_space<vmem>>, %arg6: memref<128x128xbf16, #tpu.memory_space<vmem>>) attributes {dimension_semantics = [#tpu.dimension_semantics<parallel>, #tpu.dimension_semantics<parallel>], iteration_bounds = array<i64: 1, 1>, scalar_prefetch = 0 : i64, scratch_operands = 0 : i64, tpu.core_type = #tpu.core_type<tc>, window_params = [{transform_indices = @transform_0, window_bounds = array<i64: 128, 432>}, {transform_indices = @transform_1, window_bounds = array<i64: 432, 128>}, {transform_indices = @transform_2, window_bounds = array<i64: 1, 128>}, {transform_indices = @transform_3, window_bounds = array<i64: 128, 128>}, {transform_indices = @transform_4, window_bounds = array<i64: 128, 128>}]} {
    %c0 = arith.constant 0 : index
    %c0_0 = arith.constant 0 : index
    %0 = vector.load %arg2[%c0, %c0_0] : memref<128x432xbf16, #tpu.memory_space<vmem>>, vector<128x432xbf16>
    %c0_1 = arith.constant 0 : index
    %c0_2 = arith.constant 0 : index
    %1 = vector.load %arg3[%c0_1, %c0_2] : memref<432x128xbf16, #tpu.memory_space<vmem>>, vector<432x128xbf16>
    %cst = arith.constant dense<0.000000e+00> : vector<128x128xf32>
    %2 = tpu.matmul %0, %1, %cst {dimension_numbers = #tpu.dot_dimension_numbers<[1], [0], [0], [1], [0, 0, 1, 1], [], []>} : vector<128x432xbf16>, vector<432x128xbf16>, vector<128x128xf32> -> vector<128x128xf32>
    %c0_3 = arith.constant 0 : index
    %c0_4 = arith.constant 0 : index
    %3 = vector.load %arg4[%c0_3, %c0_4] : memref<1x128xf32, #tpu.memory_space<vmem>>, vector<1x128xf32>
    %4 = vector.broadcast %3 : vector<1x128xf32> to vector<128x128xf32>
    %5 = arith.addf %2, %4 : vector<128x128xf32>
    %c0_5 = arith.constant 0 : index
    %c0_6 = arith.constant 0 : index
    %6 = vector.load %arg5[%c0_5, %c0_6] : memref<128x128xbf16, #tpu.memory_space<vmem>>, vector<128x128xbf16>
    %7 = arith.extf %6 : vector<128x128xbf16> to vector<128x128xf32>
    %8 = arith.addf %5, %7 : vector<128x128xf32>
    %9 = arith.truncf %8 : vector<128x128xf32> to vector<128x128xbf16>
    %c0_7 = arith.constant 0 : index
    %c0_8 = arith.constant 0 : index
    %10 = vector.load %arg6[%c0_7, %c0_8] : memref<128x128xbf16, #tpu.memory_space<vmem>>, vector<128x128xbf16>
    tpu.vector_store %arg6[%c0_7, %c0_8], %9 {strides = array<i32>} : memref<128x128xbf16, #tpu.memory_space<vmem>>, vector<128x128xbf16>,
    return
  }
  func.func @transform_0(%arg0: i32, %arg1: i32) -> (i32, i32) {
    %c0_i32 = arith.constant 0 : i32
    %c0_i32_0 = arith.constant 0 : i32
    return %arg0, %c0_i32 : i32, i32
  }
  func.func @transform_1(%arg0: i32, %arg1: i32) -> (i32, i32) {
    %c0_i32 = arith.constant 0 : i32
    %c0_i32_0 = arith.constant 0 : i32
    return %c0_i32, %arg1 : i32, i32
  }
  func.func @transform_2(%arg0: i32, %arg1: i32) -> (i32, i32) {
    %c0_i32 = arith.constant 0 : i32
    %c0_i32_0 = arith.constant 0 : i32
    return %c0_i32, %arg1 : i32, i32
  }
  func.func @transform_3(%arg0: i32, %arg1: i32) -> (i32, i32) {
    %c0_i32 = arith.constant 0 : i32
    return %arg0, %arg1 : i32, i32
  }
  func.func @transform_4(%arg0: i32, %arg1: i32) -> (i32, i32) {
    %c0_i32 = arith.constant 0 : i32
    return %arg0, %arg1 : i32, i32
  }
}

module attributes {stable_mosaic.version = 11 : i64} {
  func.func @_gn_apply_silu_kernel(%arg0: i32, %arg1: i32, %arg2: memref<1x64x16xbf16, #tpu.memory_space<vmem>>, %arg3: memref<1x1x16xf32, #tpu.memory_space<vmem>>, %arg4: memref<1x1x16xf32, #tpu.memory_space<vmem>>, %arg5: memref<1x64x16xf32, #tpu.memory_space<vmem>>) attributes {dimension_semantics = [#tpu.dimension_semantics<parallel>, #tpu.dimension_semantics<parallel>], iteration_bounds = array<i64: 2, 1>, scalar_prefetch = 0 : i64, scratch_operands = 0 : i64, tpu.core_type = #tpu.core_type<tc>, window_params = [{transform_indices = @transform_0, window_bounds = array<i64: 1, 64, 16>}, {transform_indices = @transform_1, window_bounds = array<i64: 1, 1, 16>}, {transform_indices = @transform_2, window_bounds = array<i64: 1, 1, 16>}, {transform_indices = @transform_3, window_bounds = array<i64: 1, 64, 16>}]} {
    %c0 = arith.constant 0 : index
    %c0_0 = arith.constant 0 : index
    %c0_1 = arith.constant 0 : index
    %0 = vector.load %arg2[%c0, %c0_0, %c0_1] : memref<1x64x16xbf16, #tpu.memory_space<vmem>>, vector<1x64x16xbf16>
    %1 = arith.extf %0 : vector<1x64x16xbf16> to vector<1x64x16xf32>
    %c0_2 = arith.constant 0 : index
    %c0_3 = arith.constant 0 : index
    %c0_4 = arith.constant 0 : index
    %2 = vector.load %arg3[%c0_2, %c0_3, %c0_4] : memref<1x1x16xf32, #tpu.memory_space<vmem>>, vector<1x1x16xf32>
    %3 = vector.broadcast %2 : vector<1x1x16xf32> to vector<1x64x16xf32>
    %4 = arith.mulf %1, %3 : vector<1x64x16xf32>
    %c0_5 = arith.constant 0 : index
    %c0_6 = arith.constant 0 : index
    %c0_7 = arith.constant 0 : index
    %5 = vector.load %arg4[%c0_5, %c0_6, %c0_7] : memref<1x1x16xf32, #tpu.memory_space<vmem>>, vector<1x1x16xf32>
    %6 = vector.broadcast %5 : vector<1x1x16xf32> to vector<1x64x16xf32>
    %7 = arith.addf %4, %6 : vector<1x64x16xf32>
    %cst = arith.constant 0.000000e+00 : f32
    %8 = vector.broadcast %cst : f32 to vector<1x64x16xf32>
    %9 = arith.subf %8, %7 : vector<1x64x16xf32>
    %10 = math.exp %9 : vector<1x64x16xf32>
    %cst_8 = arith.constant 1.000000e+00 : f32
    %11 = vector.broadcast %cst_8 : f32 to vector<1x64x16xf32>
    %12 = arith.addf %11, %10 : vector<1x64x16xf32>
    %13 = tpu.reciprocal %12 {approx = true} : vector<1x64x16xf32> -> vector<1x64x16xf32>
    %14 = arith.mulf %7, %13 : vector<1x64x16xf32>
    %c0_9 = arith.constant 0 : index
    %c0_10 = arith.constant 0 : index
    %c0_11 = arith.constant 0 : index
    %15 = vector.load %arg5[%c0_9, %c0_10, %c0_11] : memref<1x64x16xf32, #tpu.memory_space<vmem>>, vector<1x64x16xf32>
    tpu.vector_store %arg5[%c0_9, %c0_10, %c0_11], %14 {strides = array<i32>} : memref<1x64x16xf32, #tpu.memory_space<vmem>>, vector<1x64x16xf32>,
    return
  }
  func.func @transform_0(%arg0: i32, %arg1: i32) -> (i32, i32, i32) {
    %c0_i32 = arith.constant 0 : i32
    %c0_i32_0 = arith.constant 0 : i32
    return %arg0, %arg1, %c0_i32 : i32, i32, i32
  }
  func.func @transform_1(%arg0: i32, %arg1: i32) -> (i32, i32, i32) {
    %c0_i32 = arith.constant 0 : i32
    %c0_i32_0 = arith.constant 0 : i32
    %c0_i32_1 = arith.constant 0 : i32
    return %arg0, %c0_i32, %c0_i32_0 : i32, i32, i32
  }
  func.func @transform_2(%arg0: i32, %arg1: i32) -> (i32, i32, i32) {
    %c0_i32 = arith.constant 0 : i32
    %c0_i32_0 = arith.constant 0 : i32
    %c0_i32_1 = arith.constant 0 : i32
    return %arg0, %c0_i32, %c0_i32_0 : i32, i32, i32
  }
  func.func @transform_3(%arg0: i32, %arg1: i32) -> (i32, i32, i32) {
    %c0_i32 = arith.constant 0 : i32
    %c0_i32_0 = arith.constant 0 : i32
    return %arg0, %arg1, %c0_i32 : i32, i32, i32
  }
}

</mosaic_0001>

<llo_original>
// kernel: _lambda_.10
$region0: #{_lambda_.10}
  #allocation0 [shape = 'u32[]', space=smem, size = 0x4, offset = 0x4, fixed_abs, tag = 'smem constant byte address 0x4 - core index']
  #allocation1 [shape = 'u32[144,128]{1,0:T(1,128)}', space=vmem, size = 0x12000, scoped, tag = 'internal scratch']
  %s0 = inlined_call_operand.vmem [shape: bf16[1024,81], index: 0, kind: input, shape index: {}]
  %s1 = inlined_call_operand.vmem [shape: bf16[81,128], index: 1, kind: input, shape index: {}]
  %s2 = inlined_call_operand.vmem [shape: f32[1,128], index: 2, kind: input, shape index: {}]
  %s3 = inlined_call_operand.vmem [shape: bf16[1024,128], index: 3, kind: output, shape index: {}]
  %s4 = sld [smem:[#allocation0]]
  $region45: #{_lambda_.10} parent=0
    _
  %s6 = ssub.s32 1, %s4
  %s7 = scalar_select 0, %s6, %s4
  loop: start=0, step=1, limit=6
  $region2: #{_lambda_.10} parent=0 // loop_pre_header
    _
  $region3: #{_lambda_.10} parent=0 // loop_header
    %s9 = sphi 0, %s13
    %p10 = scmp.ge.s32.totalorder %s9, 6
    %s16 = sphi 0, %s28
    %s17 = sphi 0, %s24
    %s18 = sphi 0, %s16
    %s19 = sphi 0, %s17
    %s20 = sphi 0, %s18
    %s21 = sphi 0, %s19
    %s31 = sphi 0, %s33
    %s34 = sphi 0, %s31
    %s35 = sphi 0, %s34
    %s51 = sphi 0, %s35
    %s57 = sphi 0, %s59
    %s60 = sphi 0, %s57
    %s61 = sphi 0, %s60
    %s77 = sphi 0, %s61
    %s83 = sphi 0, %s85
    %s86 = sphi 0, %s83
    %s87 = sphi 0, %s86
    %s103 = sphi 0, %s87
    %s111 = sphi 0, %s113
    %s114 = sphi 0, %s111
    %s115 = sphi 0, %s114
    %s131 = sphi 0, %s115
  $region4: #{_lambda_.10} parent=0 // loop_header_branch
    %12 = sbr.rel (%p10) target = $region8
  $region5: #{_lambda_.10} parent=0 // loop_body
    %s14 = ssub.s32 %s9, 1
    %s15 = ssub.s32 %s9, 2
    %s22 = sadd.s32 1, %s17
    %p23 = scmp.ge.s32.totalorder %s22, 1
    %s24 = scalar_select %p23, 0, %s22
    %s25 = sadd.s32 1, %s16
    %s26 = scalar_select %p23, %s25, %s16
    %p27 = scmp.ge.s32.totalorder %s26, 4
    %s28 = scalar_select %p27, 0, %s26
    %s29 = ssub.s32 %s16, %s28
    %p30 = scmp.eq.s32.totalorder %s29, 0
    %s32 = sadd.s32 %s31, 1
    %s33 = scalar_select %p30, %s31, %s32
    %p36 = pneg %p30
    %p37 = scmp.eq.s32.totalorder %s9, 3
    %p38 = por %p36, %p37
    %p39 = scmp.ne.s32.totalorder %s31, %s34
    %p40 = scmp.eq.s32.totalorder %s9, 0
    %p41 = por %p39, %p40
    %p42 = scmp.ne.s32.totalorder %s31, %s34
    %p43 = scmp.eq.s32.totalorder %s14, 3
    %p44 = por %p42, %p43
    %p45 = scmp.ne.s32.totalorder %s34, %s35
    %p46 = scmp.eq.s32.totalorder %s14, 0
    %p47 = por %p45, %p46
    %p48 = scmp.ne.s32.totalorder %s34, %s35
    %p49 = scmp.eq.s32.totalorder %s15, 3
    %p50 = por %p48, %p49
    %p52 = scmp.ne.s32.totalorder %s35, %s51
    %p53 = scmp.eq.s32.totalorder %s15, 0
    %p54 = por %p52, %p53
    %s55 = ssub.s32 %s17, %s24
    %p56 = scmp.eq.s32.totalorder %s55, 0
    %s58 = sadd.s32 %s57, 1
    %s59 = scalar_select %p56, %s57, %s58
    %p62 = pneg %p56
    %p63 = scmp.eq.s32.totalorder %s9, 3
    %p64 = por %p62, %p63
    %p65 = scmp.ne.s32.totalorder %s57, %s60
    %p66 = scmp.eq.s32.totalorder %s9, 0
    %p67 = por %p65, %p66
    %p68 = scmp.ne.s32.totalorder %s57, %s60
    %p69 = scmp.eq.s32.totalorder %s14, 3
    %p70 = por %p68, %p69
    %p71 = scmp.ne.s32.totalorder %s60, %s61
    %p72 = scmp.eq.s32.totalorder %s14, 0
    %p73 = por %p71, %p72
    %p74 = scmp.ne.s32.totalorder %s60, %s61
    %p75 = scmp.eq.s32.totalorder %s15, 3
    %p76 = por %p74, %p75
    %p78 = scmp.ne.s32.totalorder %s61, %s77
    %p79 = scmp.eq.s32.totalorder %s15, 0
    %p80 = por %p78, %p79
    %s81 = ssub.s32 %s17, %s24
    %p82 = scmp.eq.s32.totalorder %s81, 0
    %s84 = sadd.s32 %s83, 1
    %s85 = scalar_select %p82, %s83, %s84
    %p88 = pneg %p82
    %p89 = scmp.eq.s32.totalorder %s9, 3
    %p90 = por %p88, %p89
    %p91 = scmp.ne.s32.totalorder %s83, %s86
    %p92 = scmp.eq.s32.totalorder %s9, 0
    %p93 = por %p91, %p92
    %p94 = scmp.ne.s32.totalorder %s83, %s86
    %p95 = scmp.eq.s32.totalorder %s14, 3
    %p96 = por %p94, %p95
    %p97 = scmp.ne.s32.totalorder %s86, %s87
    %p98 = scmp.eq.s32.totalorder %s14, 0
    %p99 = por %p97, %p98
    %p100 = scmp.ne.s32.totalorder %s86, %s87
    %p101 = scmp.eq.s32.totalorder %s15, 3
    %p102 = por %p100, %p101
    %p104 = scmp.ne.s32.totalorder %s87, %s103
    %p105 = scmp.eq.s32.totalorder %s15, 0
    %p106 = por %p104, %p105
    %s107 = ssub.s32 %s16, %s28
    %s108 = ssub.s32 %s17, %s24
    %s109 = sor.u32 %s107, %s108
    %p110 = scmp.eq.s32.totalorder %s109, 0
    %s112 = sadd.s32 %s111, 1
    %s113 = scalar_select %p110, %s111, %s112
    %p116 = pneg %p110
    %p117 = scmp.eq.s32.totalorder %s9, 3
    %p118 = por %p116, %p117
    %p119 = scmp.ne.s32.totalorder %s111, %s114
    %p120 = scmp.eq.s32.totalorder %s9, 0
    %p121 = por %p119, %p120
    %p122 = scmp.ne.s32.totalorder %s111, %s114
    %p123 = scmp.eq.s32.totalorder %s14, 3
    %p124 = por %p122, %p123
    %p125 = scmp.ne.s32.totalorder %s114, %s115
    %p126 = scmp.eq.s32.totalorder %s14, 0
    %p127 = por %p125, %p126
    %p128 = scmp.ne.s32.totalorder %s114, %s115
    %p129 = scmp.eq.s32.totalorder %s15, 3
    %p130 = por %p128, %p129
    %p132 = scmp.ne.s32.totalorder %s115, %s131
    %p133 = scmp.eq.s32.totalorder %s15, 0
    %p134 = por %p132, %p133
    %p135 = scmp.le.s32.totalorder 1, %s9
    %p136 = scmp.lt.s32.totalorder %s9, 5
    %p137 = pnand %p135, %p136
    %p138 = pneg %p137
    // Predicated region
    $region9: #{_lambda_.10} parent=5 // pred_check
      _
    $region10: #{_lambda_.10} parent=5 // pred_check_branch
      %140 = sbr.rel (%p137) target = $region12
    $region11: #{_lambda_.10} parent=5 // pred_region
      %s141 = ssub.s32 %s9, 1
      // Predicated region
      $region13: #{_lambda_.10} parent=11 // pred_check
        %p142 = pneg %p73
      $region14: #{_lambda_.10} parent=11 // pred_check_branch
        %144 = sbr.rel (%p142) target = $region16
      $region15: #{_lambda_.10} parent=11 // pred_region
        %p145 = scmp.lt.s32.totalorder %s19, 0
        %s146 = scalar_select %p145, %s19, 0
        %s147 = smul.addr %s146, 4
        %s148 = scalar_lea.vmem %s1, %s147
      $region16: #{_lambda_.10} parent=11 // pred_fallthru
        _
      // Predicated region
      $region17: #{_lambda_.10} parent=11 // pred_check
        %p149 = pneg %p99
      $region18: #{_lambda_.10} parent=11 // pred_check_branch
        %151 = sbr.rel (%p149) target = $region20
      $region19: #{_lambda_.10} parent=11 // pred_region
        %p152 = scmp.lt.s32.totalorder %s19, 0
        %s153 = scalar_select %p152, %s19, 0
        %s154 = scalar_lea.vmem %s2, %s153
      $region20: #{_lambda_.10} parent=11 // pred_fallthru
        _
    $region12: #{_lambda_.10} parent=5 // pred_fallthru
      _
    %p155 = scmp.lt.s32.totalorder %s9, 4
    // Predicated region
    $region21: #{_lambda_.10} parent=5 // pred_check
      %p156 = pneg %p155
    $region22: #{_lambda_.10} parent=5 // pred_check_branch
      %158 = sbr.rel (%p156) target = $region24
    $region23: #{_lambda_.10} parent=5 // pred_region
      // Predicated region
      $region25: #{_lambda_.10} parent=23 // pred_check
        %p159 = pneg %p41
      $region26: #{_lambda_.10} parent=23 // pred_check_branch
        %161 = sbr.rel (%p159) target = $region28
      $region27: #{_lambda_.10} parent=23 // pred_region
        %s162 = smul.u32 32, %s16
        %p163 = scmp.lt.s32.totalorder %s162, 127
        %s164 = scalar_select %p163, %s162, 127
        %s165 = smul.addr %s164, 4
        %s166 = scalar_lea.vmem %s0, %s165
        %s167 = smul.u32 32, %s16
      $region28: #{_lambda_.10} parent=23 // pred_fallthru
        _
    $region24: #{_lambda_.10} parent=5 // pred_fallthru
      _
    %p168 = scmp.le.s32.totalorder 1, %s9
    %p169 = scmp.lt.s32.totalorder %s9, 5
    %p170 = pnand %p168, %p169
    %p171 = pneg %p170
    // Predicated region
    $region29: #{_lambda_.10} parent=5 // pred_check
      _
    $region30: #{_lambda_.10} parent=5 // pred_check_branch
      %173 = sbr.rel (%p170) target = $region32
    $region31: #{_lambda_.10} parent=5 // pred_region
      %s174 = ssub.s32 %s9, 1
      %s175 = smul.u32 32, %s18
      %p176 = scmp.lt.s32.totalorder %s175, 127
      %s177 = scalar_select %p176, %s175, 127
      %s178 = smul.addr %s177, 4
      %s179 = scalar_lea.vmem %s0, %s178
      %p180 = pneg %p47
      %p181 = pneg %p44
      %p182 = scmp.lt.s32.totalorder %s19, 0
      %s183 = scalar_select %p182, %s19, 0
      %s184 = smul.addr %s183, 4
      %s185 = scalar_lea.vmem %s1, %s184
      %p186 = pneg %p73
      %p187 = pneg %p70
      %p188 = scmp.lt.s32.totalorder %s19, 0
      %s189 = scalar_select %p188, %s19, 0
      %s190 = scalar_lea.vmem %s2, %s189
      %p191 = pneg %p99
      %p192 = pneg %p96
      %p193 = pneg %p127
      %p194 = pneg %p124
      %s195 = smul.u32 32, %s18
      %p196 = scmp.lt.s32.totalorder %s195, 127
      %s197 = scalar_select %p196, %s195, 127
      %p198 = scmp.lt.s32.totalorder %s19, 0
      %s199 = scalar_select %p198, %s19, 0
      %s200 = sadd.s32 %s199, %s197
      %s201 = smul.addr %s200, 4
      %s202 = scalar_lea.vmem %s3, %s201
      %s203 = smul.u32 32, %s18
      %p204 = scmp.lt.s32.totalorder %s203, 127
      %s205 = scalar_select %p204, %s203, 127
      %s206 = smul.addr %s205, 4
      %s207 = scalar_lea.vmem %s0, %s206
      %s208 = smul.u32 32, %s18
      %p209 = scmp.lt.s32.totalorder %s19, 0
      %s210 = scalar_select %p209, %s19, 0
      %s211 = smul.addr %s210, 4
      %s212 = scalar_lea.vmem %s1, %s211
      %p213 = scmp.lt.s32.totalorder %s19, 0
      %s214 = scalar_select %p213, %s19, 0
      %s215 = scalar_lea.vmem %s2, %s214
      %s216 = smul.u32 32, %s18
      %p217 = scmp.lt.s32.totalorder %s216, 127
      %s218 = scalar_select %p217, %s216, 127
      %p219 = scmp.lt.s32.totalorder %s19, 0
      %s220 = scalar_select %p219, %s19, 0
      %s221 = sadd.s32 %s220, %s218
      %s222 = smul.addr %s221, 4
      %s223 = scalar_lea.vmem %s3, %s222
      %s224 = smul.u32 32, %s18
      %v226 = vld [vmem:[%s207] sm:$0xf]
      %v227 = vld [vmem:[%s207 + $0x4] sm:$0xf]
      %v228 = vld [vmem:[%s207 + $0x8] sm:$0xf]
      %v229 = vld [vmem:[%s207 + $0xc] sm:$0xf]
      %v230 = vld [vmem:[%s207 + $0x10] sm:$0xf]
      %v231 = vld [vmem:[%s207 + $0x14] sm:$0xf]
      %v232 = vld [vmem:[%s207 + $0x18] sm:$0xf]
      %v233 = vld [vmem:[%s207 + $0x1c] sm:$0xf]
      %v234 = vld [vmem:[%s207 + $0x20] sm:$0xf]
      %v235 = vld [vmem:[%s207 + $0x24] sm:$0xf]
      %v236 = vld [vmem:[%s207 + $0x28] sm:$0xf]
      %v237 = vld [vmem:[%s207 + $0x2c] sm:$0xf]
      %v238 = vld [vmem:[%s207 + $0x30] sm:$0xf]
      %v239 = vld [vmem:[%s207 + $0x34] sm:$0xf]
      %v240 = vld [vmem:[%s207 + $0x38] sm:$0xf]
      %v241 = vld [vmem:[%s207 + $0x3c] sm:$0xf]
      %v242 = vld [vmem:[%s207 + $0x40] sm:$0xf]
      %v243 = vld [vmem:[%s207 + $0x44] sm:$0xf]
      %v244 = vld [vmem:[%s207 + $0x48] sm:$0xf]
      %v245 = vld [vmem:[%s207 + $0x4c] sm:$0xf]
      %v246 = vld [vmem:[%s207 + $0x50] sm:$0xf]
      %v247 = vld [vmem:[%s207 + $0x54] sm:$0xf]
      %v248 = vld [vmem:[%s207 + $0x58] sm:$0xf]
      %v249 = vld [vmem:[%s207 + $0x5c] sm:$0xf]
      %v250 = vld [vmem:[%s207 + $0x60] sm:$0xf]
      %v251 = vld [vmem:[%s207 + $0x64] sm:$0xf]
      %v252 = vld [vmem:[%s207 + $0x68] sm:$0xf]
      %v253 = vld [vmem:[%s207 + $0x6c] sm:$0xf]
      %v254 = vld [vmem:[%s207 + $0x70] sm:$0xf]
      %v255 = vld [vmem:[%s207 + $0x74] sm:$0xf]
      %v256 = vld [vmem:[%s207 + $0x78] sm:$0xf]
      %v257 = vld [vmem:[%s207 + $0x7c] sm:$0xf]
      %v258 = vld [vmem:[%s212] sm:$0xf]
      %v259 = vld [vmem:[%s212 + $0x4] sm:$0xf]
      %v260 = vld [vmem:[%s212 + $0x8] sm:$0xf]
      %v261 = vld [vmem:[%s212 + $0xc] sm:$0xf]
      %v262 = vld [vmem:[%s212 + $0x10] sm:$0xf]
      %v263 = vld [vmem:[%s212 + $0x14] sm:$0xf]
      %v264 = vld [vmem:[%s212 + $0x18] sm:$0xf]
      %v265 = vld [vmem:[%s212 + $0x1c] sm:$0xf]
      %v266 = vld [vmem:[%s212 + $0x20] sm:$0xf]
      %v267 = vld [vmem:[%s212 + $0x24] sm:$0xf]
      %v268 = vld [vmem:[%s212 + $0x28] sm:$0x1]
      %v269 = vld [vmem:[%s215] sm:$0x1]
      %v271 = vlaneseq
      %v272 = vshrl.u32 %v271, 7
      %v273 = vsub.s32 0, %v272
      %v274 = vrot.slane %v269, %v273
      %v308 = vunpack.c.l.b16 %v226
      %v309 = vunpack.c.l.b16 %v227
      %v310 = vunpack.c.l.b16 %v228
      %v311 = vunpack.c.l.b16 %v229
      %v312 = vunpack.c.l.b16 %v230
      %v313 = vunpack.c.l.b16 %v231
      %v314 = vunpack.c.l.b16 %v232
      %v315 = vunpack.c.l.b16 %v233
      %v316 = vunpack.c.l.b16 %v234
      %v317 = vunpack.c.l.b16 %v235
      %v318 = vunpack.c.l.b16 %v236
      %v319 = vunpack.c.l.b16 %v237
      %v320 = vunpack.c.l.b16 %v238
      %v321 = vunpack.c.l.b16 %v239
      %v322 = vunpack.c.l.b16 %v240
      %v323 = vunpack.c.l.b16 %v241
      %v324 = vunpack.c.l.b16 %v242
      %v325 = vunpack.c.l.b16 %v243
      %v326 = vunpack.c.l.b16 %v244
      %v327 = vunpack.c.l.b16 %v245
      %v328 = vunpack.c.l.b16 %v246
      %v329 = vunpack.c.l.b16 %v247
      %v330 = vunpack.c.l.b16 %v248
      %v331 = vunpack.c.l.b16 %v249
      %v332 = vunpack.c.l.b16 %v250
      %v333 = vunpack.c.l.b16 %v251
      %v334 = vunpack.c.l.b16 %v252
      %v335 = vunpack.c.l.b16 %v253
      %v336 = vunpack.c.l.b16 %v254
      %v337 = vunpack.c.l.b16 %v255
      %v338 = vunpack.c.l.b16 %v256
      %v339 = vunpack.c.l.b16 %v257
      %v340 = vpack.c.b16 %v309, %v308
      %v341 = vpack.c.b16 %v311, %v310
      %v342 = vpack.c.b16 %v313, %v312
      %v343 = vpack.c.b16 %v315, %v314
      %v344 = vpack.c.b16 %v317, %v316
      %v345 = vpack.c.b16 %v319, %v318
      %v346 = vpack.c.b16 %v321, %v320
      %v347 = vpack.c.b16 %v323, %v322
      %v348 = vpack.c.b16 %v325, %v324
      %v349 = vpack.c.b16 %v327, %v326
      %v350 = vpack.c.b16 %v329, %v328
      %v351 = vpack.c.b16 %v331, %v330
      %v352 = vpack.c.b16 %v333, %v332
      %v353 = vpack.c.b16 %v335, %v334
      %v354 = vpack.c.b16 %v337, %v336
      %v355 = vpack.c.b16 %v339, %v338
      %v367 = vunpack.c.l.b16 %v258
      %v368 = vunpack.c.l.b16 %v259
      %v369 = vunpack.c.l.b16 %v260
      %v370 = vunpack.c.l.b16 %v261
      %v371 = vunpack.c.l.b16 %v262
      %v372 = vunpack.c.l.b16 %v263
      %v373 = vunpack.c.l.b16 %v264
      %v374 = vunpack.c.l.b16 %v265
      %v375 = vunpack.c.l.b16 %v266
      %v376 = vunpack.c.l.b16 %v267
      %v377 = vunpack.c.l.b16 %v268
      %v378 = vpack.c.b16 %v368, %v367
      %v379 = vpack.c.b16 %v370, %v369
      %v380 = vpack.c.b16 %v372, %v371
      %v381 = vpack.c.b16 %v374, %v373
      %v382 = vpack.c.b16 %v376, %v375
      %v383 = vpack.c.b16 %v377, %v377
      %vm389 = vcmask 662528
      %v391 = vsel %vm389, %v340, 0
      %v394 = vsel %vm389, %v341, 0
      %v397 = vsel %vm389, %v342, 0
      %v400 = vsel %vm389, %v343, 0
      %v403 = vsel %vm389, %v344, 0
      %v406 = vsel %vm389, %v345, 0
      %v409 = vsel %vm389, %v346, 0
      %v412 = vsel %vm389, %v347, 0
      %v415 = vsel %vm389, %v348, 0
      %v418 = vsel %vm389, %v349, 0
      %v421 = vsel %vm389, %v350, 0
      %v424 = vsel %vm389, %v351, 0
      %v427 = vsel %vm389, %v352, 0
      %v430 = vsel %vm389, %v353, 0
      %v433 = vsel %vm389, %v354, 0
      %v436 = vsel %vm389, %v355, 0
      %vm438 = vcmask 1040384
      %v439 = vsel 0, 4294967295, 65535
      %v440 = vsel %vm438, %v439, 0
      %v442 = vand.u32 %v383, %v440
      %444 = vmatprep.subr.bf16.mxu0 0
      %445 = vmatpush1.bf16.msra.mxu0 %v378
      %446 = vmatprep.subr.bf16.mxu0 0
      %447 = vmatpush1.bf16.msra.mxu0 %v379
      %448 = vmatprep.subr.bf16.mxu0 0
      %449 = vmatpush1.bf16.msra.mxu0 %v380
      %450 = vmatprep.subr.bf16.mxu0 0
      %451 = vmatpush1.bf16.msra.mxu0 %v381
      %452 = vmatprep.subr.bf16.mxu0 0
      %453 = vmatpush1.bf16.msra.mxu0 %v382
      %454 = vmatprep.subr.bf16.mxu0 0
      %455 = vmatpush1.bf16.msra.mxu0 %v442
      %456 = vmatprep.subr.bf16.mxu0 0
      %457 = vmatpush1.bf16.msra.mxu0 0
      %458 = vmatprep.subr.bf16.mxu0 0
      %459 = vmatpush1.bf16.msra.mxu0 0
      %460 = vmatprep.subr.bf16.mxu0 0
      %461 = vmatpush1.bf16.msra.mxu0 0
      %462 = vmatprep.subr.bf16.mxu0 0
      %463 = vmatpush1.bf16.msra.mxu0 0
      %464 = vmatprep.subr.bf16.mxu0 0
      %465 = vmatpush1.bf16.msra.mxu0 0
      %466 = vmatprep.subr.bf16.mxu0 0
      %467 = vmatpush1.bf16.msra.mxu0 0
      %468 = vmatprep.subr.bf16.mxu0 0
      %469 = vmatpush1.bf16.msra.mxu0 0
      %470 = vmatprep.subr.bf16.mxu0 0
      %471 = vmatpush1.bf16.msra.mxu0 0
      %472 = vmatprep.subr.bf16.mxu0 0
      %473 = vmatpush1.bf16.msra.mxu0 0
      %474 = vmatprep.subr.bf16.mxu0 0
      %475 = vmatpush1.bf16.msra.mxu0 0
      %476 = vmatprep.mubr.bf16.mxu0 0
      %477 = vmatmul.mubr.bf16.gmra.mrb[0].mxu0 %v391
      %v478 = vpop.f32.mrb[0].mxu0
      %v479 = vadd.f32 %v274, %v478
      %v480 = vpop.f32.mrb[0].mxu0
      %v481 = vpop.f32.mrb[0].mxu0
      %v482 = vadd.f32 %v274, %v481
      %v483 = vpop.f32.mrb[0].mxu0
      %484 = vmatprep.mubr.bf16.mxu0 0
      %485 = vmatmul.mubr.bf16.gmra.mrb[0].mxu0 %v394
      %v486 = vpop.f32.mrb[0].mxu0
      %v487 = vadd.f32 %v274, %v486
      %v488 = vpop.f32.mrb[0].mxu0
      %v489 = vpop.f32.mrb[0].mxu0
      %v490 = vadd.f32 %v274, %v489
      %v491 = vpop.f32.mrb[0].mxu0
      %492 = vmatprep.mubr.bf16.mxu0 0
      %493 = vmatmul.mubr.bf16.gmra.mrb[0].mxu0 %v397
      %v494 = vpop.f32.mrb[0].mxu0
      %v495 = vadd.f32 %v274, %v494
      %v496 = vpop.f32.mrb[0].mxu0
      %v497 = vpop.f32.mrb[0].mxu0
      %v498 = vadd.f32 %v274, %v497
      %v499 = vpop.f32.mrb[0].mxu0
      %500 = vmatprep.mubr.bf16.mxu0 0
      %501 = vmatmul.mubr.bf16.gmra.mrb[0].mxu0 %v400
      %v502 = vpop.f32.mrb[0].mxu0
      %v503 = vadd.f32 %v274, %v502
      %v504 = vpop.f32.mrb[0].mxu0
      %v505 = vpop.f32.mrb[0].mxu0
      %v506 = vadd.f32 %v274, %v505
      %v507 = vpop.f32.mrb[0].mxu0
      %508 = vmatprep.mubr.bf16.mxu0 0
      %509 = vmatmul.mubr.bf16.gmra.mrb[0].mxu0 %v403
      %v510 = vpop.f32.mrb[0].mxu0
      %v511 = vadd.f32 %v274, %v510
      %v512 = vpop.f32.mrb[0].mxu0
      %v513 = vpop.f32.mrb[0].mxu0
      %v514 = vadd.f32 %v274, %v513
      %v515 = vpop.f32.mrb[0].mxu0
      %516 = vmatprep.mubr.bf16.mxu0 0
      %517 = vmatmul.mubr.bf16.gmra.mrb[0].mxu0 %v406
      %v518 = vpop.f32.mrb[0].mxu0
      %v519 = vadd.f32 %v274, %v518
      %v520 = vpop.f32.mrb[0].mxu0
      %v521 = vpop.f32.mrb[0].mxu0
      %v522 = vadd.f32 %v274, %v521
      %v523 = vpop.f32.mrb[0].mxu0
      %524 = vmatprep.mubr.bf16.mxu0 0
      %525 = vmatmul.mubr.bf16.gmra.mrb[0].mxu0 %v409
      %v526 = vpop.f32.mrb[0].mxu0
      %v527 = vadd.f32 %v274, %v526
      %v528 = vpop.f32.mrb[0].mxu0
      %v529 = vpop.f32.mrb[0].mxu0
      %v530 = vadd.f32 %v274, %v529
      %v531 = vpop.f32.mrb[0].mxu0
      %532 = vmatprep.mubr.bf16.mxu0 0
      %533 = vmatmul.mubr.bf16.gmra.mrb[0].mxu0 %v412
      %v534 = vpop.f32.mrb[0].mxu0
      %v535 = vadd.f32 %v274, %v534
      %v536 = vpop.f32.mrb[0].mxu0
      %v537 = vpop.f32.mrb[0].mxu0
      %v538 = vadd.f32 %v274, %v537
      %v539 = vpop.f32.mrb[0].mxu0
      %540 = vmatprep.mubr.bf16.mxu0 0
      %541 = vmatmul.mubr.bf16.gmra.mrb[0].mxu0 %v415
      %v542 = vpop.f32.mrb[0].mxu0
      %v543 = vadd.f32 %v274, %v542
      %v544 = vpop.f32.mrb[0].mxu0
      %v545 = vpop.f32.mrb[0].mxu0
      %v546 = vadd.f32 %v274, %v545
      %v547 = vpop.f32.mrb[0].mxu0
      %548 = vmatprep.mubr.bf16.mxu0 0
      %549 = vmatmul.mubr.bf16.gmra.mrb[0].mxu0 %v418
      %v550 = vpop.f32.mrb[0].mxu0
      %v551 = vadd.f32 %v274, %v550
      %v552 = vpop.f32.mrb[0].mxu0
      %v553 = vpop.f32.mrb[0].mxu0
      %v554 = vadd.f32 %v274, %v553
      %v555 = vpop.f32.mrb[0].mxu0
      %556 = vmatprep.mubr.bf16.mxu0 0
      %557 = vmatmul.mubr.bf16.gmra.mrb[0].mxu0 %v421
      %v558 = vpop.f32.mrb[0].mxu0
      %v559 = vadd.f32 %v274, %v558
      %v560 = vpop.f32.mrb[0].mxu0
      %v561 = vpop.f32.mrb[0].mxu0
      %v562 = vadd.f32 %v274, %v561
      %v563 = vpop.f32.mrb[0].mxu0
      %564 = vmatprep.mubr.bf16.mxu0 0
      %565 = vmatmul.mubr.bf16.gmra.mrb[0].mxu0 %v424
      %v566 = vpop.f32.mrb[0].mxu0
      %v567 = vadd.f32 %v274, %v566
      %v568 = vpop.f32.mrb[0].mxu0
      %v569 = vpop.f32.mrb[0].mxu0
      %v570 = vadd.f32 %v274, %v569
      %v571 = vpop.f32.mrb[0].mxu0
      %572 = vmatprep.mubr.bf16.mxu0 0
      %573 = vmatmul.mubr.bf16.gmra.mrb[0].mxu0 %v427
      %v574 = vpop.f32.mrb[0].mxu0
      %v575 = vadd.f32 %v274, %v574
      %v576 = vpop.f32.mrb[0].mxu0
      %v577 = vpop.f32.mrb[0].mxu0
      %v578 = vadd.f32 %v274, %v577
      %v579 = vpop.f32.mrb[0].mxu0
      %580 = vmatprep.mubr.bf16.mxu0 0
      %581 = vmatmul.mubr.bf16.gmra.mrb[0].mxu0 %v430
      %v582 = vpop.f32.mrb[0].mxu0
      %v583 = vadd.f32 %v274, %v582
      %v584 = vpop.f32.mrb[0].mxu0
      %v585 = vpop.f32.mrb[0].mxu0
      %v586 = vadd.f32 %v274, %v585
      %v587 = vpop.f32.mrb[0].mxu0
      %588 = vmatprep.mubr.bf16.mxu0 0
      %589 = vmatmul.mubr.bf16.gmra.mrb[0].mxu0 %v433
      %v590 = vpop.f32.mrb[0].mxu0
      %v591 = vadd.f32 %v274, %v590
      %v592 = vpop.f32.mrb[0].mxu0
      %v593 = vpop.f32.mrb[0].mxu0
      %v594 = vadd.f32 %v274, %v593
      %v595 = vpop.f32.mrb[0].mxu0
      %596 = vmatprep.mubr.bf16.mxu0 0
      %597 = vmatmul.mubr.bf16.gmra.mrb[0].mxu0 %v436
      %v598 = vpop.f32.mrb[0].mxu0
      %v599 = vadd.f32 %v274, %v598
      %v600 = vpop.f32.mrb[0].mxu0
      %v601 = vpop.f32.mrb[0].mxu0
      %v602 = vadd.f32 %v274, %v601
      %v603 = vpop.f32.mrb[0].mxu0
      %604 = vdwg.mxu0
      %v605 = vpack.c.bf16 %v482, %v479
      %v606 = vpack.c.bf16 %v490, %v487
      %v607 = vpack.c.bf16 %v498, %v495
      %v608 = vpack.c.bf16 %v506, %v503
      %v609 = vpack.c.bf16 %v514, %v511
      %v610 = vpack.c.bf16 %v522, %v519
      %v611 = vpack.c.bf16 %v530, %v527
      %v612 = vpack.c.bf16 %v538, %v535
      %v613 = vpack.c.bf16 %v546, %v543
      %v614 = vpack.c.bf16 %v554, %v551
      %v615 = vpack.c.bf16 %v562, %v559
      %v616 = vpack.c.bf16 %v570, %v567
      %v617 = vpack.c.bf16 %v578, %v575
      %v618 = vpack.c.bf16 %v586, %v583
      %v619 = vpack.c.bf16 %v594, %v591
      %v620 = vpack.c.bf16 %v602, %v599
      %v637 = vunpack.c.l.b16 %v605
      %v638 = vunpack.c.h.b16 %v605
      %v639 = vunpack.c.l.b16 %v606
      %v640 = vunpack.c.h.b16 %v606
      %v641 = vunpack.c.l.b16 %v607
      %v642 = vunpack.c.h.b16 %v607
      %v643 = vunpack.c.l.b16 %v608
      %v644 = vunpack.c.h.b16 %v608
      %v645 = vunpack.c.l.b16 %v609
      %v646 = vunpack.c.h.b16 %v609
      %v647 = vunpack.c.l.b16 %v610
      %v648 = vunpack.c.h.b16 %v610
      %v649 = vunpack.c.l.b16 %v611
      %v650 = vunpack.c.h.b16 %v611
      %v651 = vunpack.c.l.b16 %v612
      %v652 = vunpack.c.h.b16 %v612
      %v653 = vunpack.c.l.b16 %v613
      %v654 = vunpack.c.h.b16 %v613
      %v655 = vunpack.c.l.b16 %v614
      %v656 = vunpack.c.h.b16 %v614
      %v657 = vunpack.c.l.b16 %v615
      %v658 = vunpack.c.h.b16 %v615
      %v659 = vunpack.c.l.b16 %v616
      %v660 = vunpack.c.h.b16 %v616
      %v661 = vunpack.c.l.b16 %v617
      %v662 = vunpack.c.h.b16 %v617
      %v663 = vunpack.c.l.b16 %v618
      %v664 = vunpack.c.h.b16 %v618
      %v665 = vunpack.c.l.b16 %v619
      %v666 = vunpack.c.h.b16 %v619
      %v667 = vunpack.c.l.b16 %v620
      %v668 = vunpack.c.h.b16 %v620
      %v669 = vpack.c.b16 %v637, %v637
      %v670 = vpack.c.b16 %v638, %v638
      %v671 = vpack.c.b16 %v639, %v639
      %v672 = vpack.c.b16 %v640, %v640
      %v673 = vpack.c.b16 %v641, %v641
      %v674 = vpack.c.b16 %v642, %v642
      %v675 = vpack.c.b16 %v643, %v643
      %v676 = vpack.c.b16 %v644, %v644
      %v677 = vpack.c.b16 %v645, %v645
      %v678 = vpack.c.b16 %v646, %v646
      %v679 = vpack.c.b16 %v647, %v647
      %v680 = vpack.c.b16 %v648, %v648
      %v681 = vpack.c.b16 %v649, %v649
      %v682 = vpack.c.b16 %v650, %v650
      %v683 = vpack.c.b16 %v651, %v651
      %v684 = vpack.c.b16 %v652, %v652
      %v685 = vpack.c.b16 %v653, %v653
      %v686 = vpack.c.b16 %v654, %v654
      %v687 = vpack.c.b16 %v655, %v655
      %v688 = vpack.c.b16 %v656, %v656
      %v689 = vpack.c.b16 %v657, %v657
      %v690 = vpack.c.b16 %v658, %v658
      %v691 = vpack.c.b16 %v659, %v659
      %v692 = vpack.c.b16 %v660, %v660
      %v693 = vpack.c.b16 %v661, %v661
      %v694 = vpack.c.b16 %v662, %v662
      %v695 = vpack.c.b16 %v663, %v663
      %v696 = vpack.c.b16 %v664, %v664
      %v697 = vpack.c.b16 %v665, %v665
      %v698 = vpack.c.b16 %v666, %v666
      %v699 = vpack.c.b16 %v667, %v667
      %v700 = vpack.c.b16 %v668, %v668
      %733 = vst [vmem:[%s223] sm:$0xf] %v669
      %734 = vst [vmem:[%s223 + $0x4] sm:$0xf] %v670
      %735 = vst [vmem:[%s223 + $0x8] sm:$0xf] %v671
      %736 = vst [vmem:[%s223 + $0xc] sm:$0xf] %v672
      %737 = vst [vmem:[%s223 + $0x10] sm:$0xf] %v673
      %738 = vst [vmem:[%s223 + $0x14] sm:$0xf] %v674
      %739 = vst [vmem:[%s223 + $0x18] sm:$0xf] %v675
      %740 = vst [vmem:[%s223 + $0x1c] sm:$0xf] %v676
      %741 = vst [vmem:[%s223 + $0x20] sm:$0xf] %v677
      %742 = vst [vmem:[%s223 + $0x24] sm:$0xf] %v678
      %743 = vst [vmem:[%s223 + $0x28] sm:$0xf] %v679
      %744 = vst [vmem:[%s223 + $0x2c] sm:$0xf] %v680
      %745 = vst [vmem:[%s223 + $0x30] sm:$0xf] %v681
      %746 = vst [vmem:[%s223 + $0x34] sm:$0xf] %v682
      %747 = vst [vmem:[%s223 + $0x38] sm:$0xf] %v683
      %748 = vst [vmem:[%s223 + $0x3c] sm:$0xf] %v684
      %749 = vst [vmem:[%s223 + $0x40] sm:$0xf] %v685
      %750 = vst [vmem:[%s223 + $0x44] sm:$0xf] %v686
      %751 = vst [vmem:[%s223 + $0x48] sm:$0xf] %v687
      %752 = vst [vmem:[%s223 + $0x4c] sm:$0xf] %v688
      %753 = vst [vmem:[%s223 + $0x50] sm:$0xf] %v689
      %754 = vst [vmem:[%s223 + $0x54] sm:$0xf] %v690
      %755 = vst [vmem:[%s223 + $0x58] sm:$0xf] %v691
      %756 = vst [vmem:[%s223 + $0x5c] sm:$0xf] %v692
      %757 = vst [vmem:[%s223 + $0x60] sm:$0xf] %v693
      %758 = vst [vmem:[%s223 + $0x64] sm:$0xf] %v694
      %759 = vst [vmem:[%s223 + $0x68] sm:$0xf] %v695
      %760 = vst [vmem:[%s223 + $0x6c] sm:$0xf] %v696
      %761 = vst [vmem:[%s223 + $0x70] sm:$0xf] %v697
      %762 = vst [vmem:[%s223 + $0x74] sm:$0xf] %v698
      %763 = vst [vmem:[%s223 + $0x78] sm:$0xf] %v699
      %764 = vst [vmem:[%s223 + $0x7c] sm:$0xf] %v700
      %s765 = smul.u32 32, %s18
      %p766 = scmp.lt.s32.totalorder %s765, 127
      %s767 = scalar_select %p766, %s765, 127
      %p768 = scmp.lt.s32.totalorder %s19, 0
      %s769 = scalar_select %p768, %s19, 0
      %s770 = sadd.s32 %s769, %s767
      %s771 = smul.addr %s770, 4
      %s772 = scalar_lea.vmem %s3, %s771
      // Predicated region
      $region33: #{_lambda_.10} parent=31 // pred_check
        %p773 = pneg %p124
      $region34: #{_lambda_.10} parent=31 // pred_check_branch
        %775 = sbr.rel (%p773) target = $region36
      $region35: #{_lambda_.10} parent=31 // pred_region
        %s776 = smul.u32 32, %s18
      $region36: #{_lambda_.10} parent=31 // pred_fallthru
        _
    $region32: #{_lambda_.10} parent=5 // pred_fallthru
      _
    %p777 = scmp.le.s32.totalorder 2, %s9
    // Predicated region
    $region37: #{_lambda_.10} parent=5 // pred_check
      %p778 = pneg %p777
    $region38: #{_lambda_.10} parent=5 // pred_check_branch
      %780 = sbr.rel (%p778) target = $region40
    $region39: #{_lambda_.10} parent=5 // pred_region
      %s781 = ssub.s32 %s9, 2
      // Predicated region
      $region41: #{_lambda_.10} parent=39 // pred_check
        %p782 = pneg %p130
      $region42: #{_lambda_.10} parent=39 // pred_check_branch
        %784 = sbr.rel (%p782) target = $region44
      $region43: #{_lambda_.10} parent=39 // pred_region
        %s785 = smul.u32 32, %s20
        %p786 = scmp.lt.s32.totalorder %s785, 127
        %s787 = scalar_select %p786, %s785, 127
        %p788 = scmp.lt.s32.totalorder %s21, 0
        %s789 = scalar_select %p788, %s21, 0
        %s790 = sadd.s32 %s789, %s787
        %s791 = smul.addr %s790, 4
        %s792 = scalar_lea.vmem %s3, %s791
      $region44: #{_lambda_.10} parent=39 // pred_fallthru
        _
    $region40: #{_lambda_.10} parent=5 // pred_fallthru
      _
  $region6: #{_lambda_.10} parent=0 // loop_footer
    %s13 = sadd.s32 1, %s9
  $region7: #{_lambda_.10} parent=0 // loop_footer_branch
    %8 = sbr.rel target = $region3
  $region8: #{_lambda_.10} parent=0 // loop_exit
    _

// kernel: _lambda_.11
$region0: #{_lambda_.11}
  #allocation0 [shape = 'u32[]', space=smem, size = 0x4, offset = 0x4, fixed_abs, tag = 'smem constant byte address 0x4 - core index']
  #allocation1 [shape = 'u32[144,128]{1,0:T(1,128)}', space=vmem, size = 0x12000, scoped, tag = 'internal scratch']
  %s0 = inlined_call_operand.vmem [shape: bf16[128,512], index: 0, kind: input, shape index: {}]
  %s1 = inlined_call_operand.vmem [shape: bf16[512,128], index: 1, kind: input, shape index: {}]
  %s2 = inlined_call_operand.vmem [shape: f32[1,128], index: 2, kind: input, shape index: {}]
  %s3 = inlined_call_operand.vmem [shape: bf16[128,128], index: 3, kind: output, shape index: {}]
  %s4 = sld [smem:[#allocation0]]
  $region22: #{_lambda_.11} parent=0
    _
  %s6 = ssub.s32 1, %s4
  %s7 = scalar_select 0, %s6, %s4
  // Predicated region
  $region2: #{_lambda_.11} parent=0 // pred_check
    _
  $region3: #{_lambda_.11} parent=0 // pred_check_branch
    %9 = sbr.rel (0) target = $region5
  $region4: #{_lambda_.11} parent=0 // pred_region
    _
  $region5: #{_lambda_.11} parent=0 // pred_fallthru
    _
  // Predicated region
  $region6: #{_lambda_.11} parent=0 // pred_check
    _
  $region7: #{_lambda_.11} parent=0 // pred_check_branch
    %11 = sbr.rel (0) target = $region9
  $region8: #{_lambda_.11} parent=0 // pred_region
    _
  $region9: #{_lambda_.11} parent=0 // pred_fallthru
    _
  // Predicated region
  $region10: #{_lambda_.11} parent=0 // pred_check
    _
  $region11: #{_lambda_.11} parent=0 // pred_check_branch
    %13 = sbr.rel (0) target = $region13
  $region12: #{_lambda_.11} parent=0 // pred_region
    _
  $region13: #{_lambda_.11} parent=0 // pred_fallthru
    _
  %v15 = vld [vmem:[%s0] sm:$0xff]
  %v16 = vld [vmem:[%s0 + $0x8] sm:$0xff]
  %v17 = vld [vmem:[%s0 + $0x10] sm:$0xff]
  %v18 = vld [vmem:[%s0 + $0x18] sm:$0xff]
  %v19 = vld [vmem:[%s0 + $0x20] sm:$0xff]
  %v20 = vld [vmem:[%s0 + $0x28] sm:$0xff]
  %v21 = vld [vmem:[%s0 + $0x30] sm:$0xff]
  %v22 = vld [vmem:[%s0 + $0x38] sm:$0xff]
  %v23 = vld [vmem:[%s0 + $0x40] sm:$0xff]
  %v24 = vld [vmem:[%s0 + $0x48] sm:$0xff]
  %v25 = vld [vmem:[%s0 + $0x50] sm:$0xff]
  %v26 = vld [vmem:[%s0 + $0x58] sm:$0xff]
  %v27 = vld [vmem:[%s0 + $0x60] sm:$0xff]
  %v28 = vld [vmem:[%s0 + $0x68] sm:$0xff]
  %v29 = vld [vmem:[%s0 + $0x70] sm:$0xff]
  %v30 = vld [vmem:[%s0 + $0x78] sm:$0xff]
  %v31 = vld [vmem:[%s0 + $0x80] sm:$0xff]
  %v32 = vld [vmem:[%s0 + $0x88] sm:$0xff]
  %v33 = vld [vmem:[%s0 + $0x90] sm:$0xff]
  %v34 = vld [vmem:[%s0 + $0x98] sm:$0xff]
  %v35 = vld [vmem:[%s0 + $0xa0] sm:$0xff]
  %v36 = vld [vmem:[%s0 + $0xa8] sm:$0xff]
  %v37 = vld [vmem:[%s0 + $0xb0] sm:$0xff]
  %v38 = vld [vmem:[%s0 + $0xb8] sm:$0xff]
  %v39 = vld [vmem:[%s0 + $0xc0] sm:$0xff]
  %v40 = vld [vmem:[%s0 + $0xc8] sm:$0xff]
  %v41 = vld [vmem:[%s0 + $0xd0] sm:$0xff]
  %v42 = vld [vmem:[%s0 + $0xd8] sm:$0xff]
  %v43 = vld [vmem:[%s0 + $0xe0] sm:$0xff]
  %v44 = vld [vmem:[%s0 + $0xe8] sm:$0xff]
  %v45 = vld [vmem:[%s0 + $0xf0] sm:$0xff]
  %v46 = vld [vmem:[%s0 + $0xf8] sm:$0xff]
  %v47 = vld [vmem:[%s1] sm:$0xf]
  %v48 = vld [vmem:[%s1 + $0x4] sm:$0xf]
  %v49 = vld [vmem:[%s1 + $0x8] sm:$0xf]
  %v50 = vld [vmem:[%s1 + $0xc] sm:$0xf]
  %v51 = vld [vmem:[%s1 + $0x10] sm:$0xf]
  %v52 = vld [vmem:[%s1 + $0x14] sm:$0xf]
  %v53 = vld [vmem:[%s1 + $0x18] sm:$0xf]
  %v54 = vld [vmem:[%s1 + $0x1c] sm:$0xf]
  %v55 = vld [vmem:[%s1 + $0x20] sm:$0xf]
  %v56 = vld [vmem:[%s1 + $0x24] sm:$0xf]
  %v57 = vld [vmem:[%s1 + $0x28] sm:$0xf]
  %v58 = vld [vmem:[%s1 + $0x2c] sm:$0xf]
  %v59 = vld [vmem:[%s1 + $0x30] sm:$0xf]
  %v60 = vld [vmem:[%s1 + $0x34] sm:$0xf]
  %v61 = vld [vmem:[%s1 + $0x38] sm:$0xf]
  %v62 = vld [vmem:[%s1 + $0x3c] sm:$0xf]
  %v63 = vld [vmem:[%s1 + $0x40] sm:$0xf]
  %v64 = vld [vmem:[%s1 + $0x44] sm:$0xf]
  %v65 = vld [vmem:[%s1 + $0x48] sm:$0xf]
  %v66 = vld [vmem:[%s1 + $0x4c] sm:$0xf]
  %v67 = vld [vmem:[%s1 + $0x50] sm:$0xf]
  %v68 = vld [vmem:[%s1 + $0x54] sm:$0xf]
  %v69 = vld [vmem:[%s1 + $0x58] sm:$0xf]
  %v70 = vld [vmem:[%s1 + $0x5c] sm:$0xf]
  %v71 = vld [vmem:[%s1 + $0x60] sm:$0xf]
  %v72 = vld [vmem:[%s1 + $0x64] sm:$0xf]
  %v73 = vld [vmem:[%s1 + $0x68] sm:$0xf]
  %v74 = vld [vmem:[%s1 + $0x6c] sm:$0xf]
  %v75 = vld [vmem:[%s1 + $0x70] sm:$0xf]
  %v76 = vld [vmem:[%s1 + $0x74] sm:$0xf]
  %v77 = vld [vmem:[%s1 + $0x78] sm:$0xf]
  %v78 = vld [vmem:[%s1 + $0x7c] sm:$0xf]
  %v79 = vld [vmem:[%s1 + $0x80] sm:$0xf]
  %v80 = vld [vmem:[%s1 + $0x84] sm:$0xf]
  %v81 = vld [vmem:[%s1 + $0x88] sm:$0xf]
  %v82 = vld [vmem:[%s1 + $0x8c] sm:$0xf]
  %v83 = vld [vmem:[%s1 + $0x90] sm:$0xf]
  %v84 = vld [vmem:[%s1 + $0x94] sm:$0xf]
  %v85 = vld [vmem:[%s1 + $0x98] sm:$0xf]
  %v86 = vld [vmem:[%s1 + $0x9c] sm:$0xf]
  %v87 = vld [vmem:[%s1 + $0xa0] sm:$0xf]
  %v88 = vld [vmem:[%s1 + $0xa4] sm:$0xf]
  %v89 = vld [vmem:[%s1 + $0xa8] sm:$0xf]
  %v90 = vld [vmem:[%s1 + $0xac] sm:$0xf]
  %v91 = vld [vmem:[%s1 + $0xb0] sm:$0xf]
  %v92 = vld [vmem:[%s1 + $0xb4] sm:$0xf]
  %v93 = vld [vmem:[%s1 + $0xb8] sm:$0xf]
  %v94 = vld [vmem:[%s1 + $0xbc] sm:$0xf]
  %v95 = vld [vmem:[%s1 + $0xc0] sm:$0xf]
  %v96 = vld [vmem:[%s1 + $0xc4] sm:$0xf]
  %v97 = vld [vmem:[%s1 + $0xc8] sm:$0xf]
  %v98 = vld [vmem:[%s1 + $0xcc] sm:$0xf]
  %v99 = vld [vmem:[%s1 + $0xd0] sm:$0xf]
  %v100 = vld [vmem:[%s1 + $0xd4] sm:$0xf]
  %v101 = vld [vmem:[%s1 + $0xd8] sm:$0xf]
  %v102 = vld [vmem:[%s1 + $0xdc] sm:$0xf]
  %v103 = vld [vmem:[%s1 + $0xe0] sm:$0xf]
  %v104 = vld [vmem:[%s1 + $0xe4] sm:$0xf]
  %v105 = vld [vmem:[%s1 + $0xe8] sm:$0xf]
  %v106 = vld [vmem:[%s1 + $0xec] sm:$0xf]
  %v107 = vld [vmem:[%s1 + $0xf0] sm:$0xf]
  %v108 = vld [vmem:[%s1 + $0xf4] sm:$0xf]
  %v109 = vld [vmem:[%s1 + $0xf8] sm:$0xf]
  %v110 = vld [vmem:[%s1 + $0xfc] sm:$0xf]
  %v111 = vld [vmem:[%s2] sm:$0x1]
  %v113 = vlaneseq
  %v114 = vshrl.u32 %v113, 7
  %v115 = vsub.s32 0, %v114
  %v116 = vrot.slane %v111, %v115
  %v150 = vunpack.c.l.b16 %v15
  %v151 = vunpack.c.h.b16 %v15
  %v152 = vunpack.c.l.b16 %v16
  %v153 = vunpack.c.h.b16 %v16
  %v154 = vunpack.c.l.b16 %v17
  %v155 = vunpack.c.h.b16 %v17
  %v156 = vunpack.c.l.b16 %v18
  %v157 = vunpack.c.h.b16 %v18
  %v158 = vunpack.c.l.b16 %v19
  %v159 = vunpack.c.h.b16 %v19
  %v160 = vunpack.c.l.b16 %v20
  %v161 = vunpack.c.h.b16 %v20
  %v162 = vunpack.c.l.b16 %v21
  %v163 = vunpack.c.h.b16 %v21
  %v164 = vunpack.c.l.b16 %v22
  %v165 = vunpack.c.h.b16 %v22
  %v166 = vunpack.c.l.b16 %v23
  %v167 = vunpack.c.h.b16 %v23
  %v168 = vunpack.c.l.b16 %v24
  %v169 = vunpack.c.h.b16 %v24
  %v170 = vunpack.c.l.b16 %v25
  %v171 = vunpack.c.h.b16 %v25
  %v172 = vunpack.c.l.b16 %v26
  %v173 = vunpack.c.h.b16 %v26
  %v174 = vunpack.c.l.b16 %v27
  %v175 = vunpack.c.h.b16 %v27
  %v176 = vunpack.c.l.b16 %v28
  %v177 = vunpack.c.h.b16 %v28
  %v178 = vunpack.c.l.b16 %v29
  %v179 = vunpack.c.h.b16 %v29
  %v180 = vunpack.c.l.b16 %v30
  %v181 = vunpack.c.h.b16 %v30
  %v182 = vunpack.c.l.b16 %v31
  %v183 = vunpack.c.h.b16 %v31
  %v184 = vunpack.c.l.b16 %v32
  %v185 = vunpack.c.h.b16 %v32
  %v186 = vunpack.c.l.b16 %v33
  %v187 = vunpack.c.h.b16 %v33
  %v188 = vunpack.c.l.b16 %v34
  %v189 = vunpack.c.h.b16 %v34
  %v190 = vunpack.c.l.b16 %v35
  %v191 = vunpack.c.h.b16 %v35
  %v192 = vunpack.c.l.b16 %v36
  %v193 = vunpack.c.h.b16 %v36
  %v194 = vunpack.c.l.b16 %v37
  %v195 = vunpack.c.h.b16 %v37
  %v196 = vunpack.c.l.b16 %v38
  %v197 = vunpack.c.h.b16 %v38
  %v198 = vunpack.c.l.b16 %v39
  %v199 = vunpack.c.h.b16 %v39
  %v200 = vunpack.c.l.b16 %v40
  %v201 = vunpack.c.h.b16 %v40
  %v202 = vunpack.c.l.b16 %v41
  %v203 = vunpack.c.h.b16 %v41
  %v204 = vunpack.c.l.b16 %v42
  %v205 = vunpack.c.h.b16 %v42
  %v206 = vunpack.c.l.b16 %v43
  %v207 = vunpack.c.h.b16 %v43
  %v208 = vunpack.c.l.b16 %v44
  %v209 = vunpack.c.h.b16 %v44
  %v210 = vunpack.c.l.b16 %v45
  %v211 = vunpack.c.h.b16 %v45
  %v212 = vunpack.c.l.b16 %v46
  %v213 = vunpack.c.h.b16 %v46
  %v214 = vpack.c.b16 %v154, %v150
  %v215 = vpack.c.b16 %v155, %v151
  %v216 = vpack.c.b16 %v156, %v152
  %v217 = vpack.c.b16 %v157, %v153
  %v218 = vpack.c.b16 %v162, %v158
  %v219 = vpack.c.b16 %v163, %v159
  %v220 = vpack.c.b16 %v164, %v160
  %v221 = vpack.c.b16 %v165, %v161
  %v222 = vpack.c.b16 %v170, %v166
  %v223 = vpack.c.b16 %v171, %v167
  %v224 = vpack.c.b16 %v172, %v168
  %v225 = vpack.c.b16 %v173, %v169
  %v226 = vpack.c.b16 %v178, %v174
  %v227 = vpack.c.b16 %v179, %v175
  %v228 = vpack.c.b16 %v180, %v176
  %v229 = vpack.c.b16 %v181, %v177
  %v230 = vpack.c.b16 %v186, %v182
  %v231 = vpack.c.b16 %v187, %v183
  %v232 = vpack.c.b16 %v188, %v184
  %v233 = vpack.c.b16 %v189, %v185
  %v234 = vpack.c.b16 %v194, %v190
  %v235 = vpack.c.b16 %v195, %v191
  %v236 = vpack.c.b16 %v196, %v192
  %v237 = vpack.c.b16 %v197, %v193
  %v238 = vpack.c.b16 %v202, %v198
  %v239 = vpack.c.b16 %v203, %v199
  %v240 = vpack.c.b16 %v204, %v200
  %v241 = vpack.c.b16 %v205, %v201
  %v242 = vpack.c.b16 %v210, %v206
  %v243 = vpack.c.b16 %v211, %v207
  %v244 = vpack.c.b16 %v212, %v208
  %v245 = vpack.c.b16 %v213, %v209
  %v342 = vunpack.c.l.b16 %v47
  %v343 = vunpack.c.l.b16 %v48
  %v344 = vunpack.c.l.b16 %v49
  %v345 = vunpack.c.l.b16 %v50
  %v346 = vunpack.c.l.b16 %v51
  %v347 = vunpack.c.l.b16 %v52
  %v348 = vunpack.c.l.b16 %v53
  %v349 = vunpack.c.l.b16 %v54
  %v350 = vunpack.c.l.b16 %v55
  %v351 = vunpack.c.l.b16 %v56
  %v352 = vunpack.c.l.b16 %v57
  %v353 = vunpack.c.l.b16 %v58
  %v354 = vunpack.c.l.b16 %v59
  %v355 = vunpack.c.l.b16 %v60
  %v356 = vunpack.c.l.b16 %v61
  %v357 = vunpack.c.l.b16 %v62
  %v358 = vunpack.c.l.b16 %v63
  %v359 = vunpack.c.l.b16 %v64
  %v360 = vunpack.c.l.b16 %v65
  %v361 = vunpack.c.l.b16 %v66
  %v362 = vunpack.c.l.b16 %v67
  %v363 = vunpack.c.l.b16 %v68
  %v364 = vunpack.c.l.b16 %v69
  %v365 = vunpack.c.l.b16 %v70
  %v366 = vunpack.c.l.b16 %v71
  %v367 = vunpack.c.l.b16 %v72
  %v368 = vunpack.c.l.b16 %v73
  %v369 = vunpack.c.l.b16 %v74
  %v370 = vunpack.c.l.b16 %v75
  %v371 = vunpack.c.l.b16 %v76
  %v372 = vunpack.c.l.b16 %v77
  %v373 = vunpack.c.l.b16 %v78
  %v374 = vunpack.c.l.b16 %v79
  %v375 = vunpack.c.l.b16 %v80
  %v376 = vunpack.c.l.b16 %v81
  %v377 = vunpack.c.l.b16 %v82
  %v378 = vunpack.c.l.b16 %v83
  %v379 = vunpack.c.l.b16 %v84
  %v380 = vunpack.c.l.b16 %v85
  %v381 = vunpack.c.l.b16 %v86
  %v382 = vunpack.c.l.b16 %v87
  %v383 = vunpack.c.l.b16 %v88
  %v384 = vunpack.c.l.b16 %v89
  %v385 = vunpack.c.l.b16 %v90
  %v386 = vunpack.c.l.b16 %v91
  %v387 = vunpack.c.l.b16 %v92
  %v388 = vunpack.c.l.b16 %v93
  %v389 = vunpack.c.l.b16 %v94
  %v390 = vunpack.c.l.b16 %v95
  %v391 = vunpack.c.l.b16 %v96
  %v392 = vunpack.c.l.b16 %v97
  %v393 = vunpack.c.l.b16 %v98
  %v394 = vunpack.c.l.b16 %v99
  %v395 = vunpack.c.l.b16 %v100
  %v396 = vunpack.c.l.b16 %v101
  %v397 = vunpack.c.l.b16 %v102
  %v398 = vunpack.c.l.b16 %v103
  %v399 = vunpack.c.l.b16 %v104
  %v400 = vunpack.c.l.b16 %v105
  %v401 = vunpack.c.l.b16 %v106
  %v402 = vunpack.c.l.b16 %v107
  %v403 = vunpack.c.l.b16 %v108
  %v404 = vunpack.c.l.b16 %v109
  %v405 = vunpack.c.l.b16 %v110
  %v406 = vpack.c.b16 %v343, %v342
  %v407 = vpack.c.b16 %v345, %v344
  %v408 = vpack.c.b16 %v347, %v346
  %v409 = vpack.c.b16 %v349, %v348
  %v410 = vpack.c.b16 %v351, %v350
  %v411 = vpack.c.b16 %v353, %v352
  %v412 = vpack.c.b16 %v355, %v354
  %v413 = vpack.c.b16 %v357, %v356
  %v414 = vpack.c.b16 %v359, %v358
  %v415 = vpack.c.b16 %v361, %v360
  %v416 = vpack.c.b16 %v363, %v362
  %v417 = vpack.c.b16 %v365, %v364
  %v418 = vpack.c.b16 %v367, %v366
  %v419 = vpack.c.b16 %v369, %v368
  %v420 = vpack.c.b16 %v371, %v370
  %v421 = vpack.c.b16 %v373, %v372
  %v422 = vpack.c.b16 %v375, %v374
  %v423 = vpack.c.b16 %v377, %v376
  %v424 = vpack.c.b16 %v379, %v378
  %v425 = vpack.c.b16 %v381, %v380
  %v426 = vpack.c.b16 %v383, %v382
  %v427 = vpack.c.b16 %v385, %v384
  %v428 = vpack.c.b16 %v387, %v386
  %v429 = vpack.c.b16 %v389, %v388
  %v430 = vpack.c.b16 %v391, %v390
  %v431 = vpack.c.b16 %v393, %v392
  %v432 = vpack.c.b16 %v395, %v394
  %v433 = vpack.c.b16 %v397, %v396
  %v434 = vpack.c.b16 %v399, %v398
  %v435 = vpack.c.b16 %v401, %v400
  %v436 = vpack.c.b16 %v403, %v402
  %v437 = vpack.c.b16 %v405, %v404
  %470 = vmatprep.subr.bf16.mxu0 0
  %471 = vmatpush1.bf16.msra.mxu0 %v406
  %472 = vmatprep.subr.bf16.mxu0 0
  %473 = vmatpush1.bf16.msra.mxu0 %v407
  %474 = vmatprep.subr.bf16.mxu0 0
  %475 = vmatpush1.bf16.msra.mxu0 %v408
  %476 = vmatprep.subr.bf16.mxu0 0
  %477 = vmatpush1.bf16.msra.mxu0 %v409
  %478 = vmatprep.subr.bf16.mxu0 0
  %479 = vmatpush1.bf16.msra.mxu0 %v410
  %480 = vmatprep.subr.bf16.mxu0 0
  %481 = vmatpush1.bf16.msra.mxu0 %v411
  %482 = vmatprep.subr.bf16.mxu0 0
  %483 = vmatpush1.bf16.msra.mxu0 %v412
  %484 = vmatprep.subr.bf16.mxu0 0
  %485 = vmatpush1.bf16.msra.mxu0 %v413
  %486 = vmatprep.subr.bf16.mxu0 0
  %487 = vmatpush1.bf16.msra.mxu0 %v414
  %488 = vmatprep.subr.bf16.mxu0 0
  %489 = vmatpush1.bf16.msra.mxu0 %v415
  %490 = vmatprep.subr.bf16.mxu0 0
  %491 = vmatpush1.bf16.msra.mxu0 %v416
  %492 = vmatprep.subr.bf16.mxu0 0
  %493 = vmatpush1.bf16.msra.mxu0 %v417
  %494 = vmatprep.subr.bf16.mxu0 0
  %495 = vmatpush1.bf16.msra.mxu0 %v418
  %496 = vmatprep.subr.bf16.mxu0 0
  %497 = vmatpush1.bf16.msra.mxu0 %v419
  %498 = vmatprep.subr.bf16.mxu0 0
  %499 = vmatpush1.bf16.msra.mxu0 %v420
  %500 = vmatprep.subr.bf16.mxu0 0
  %501 = vmatpush1.bf16.msra.mxu0 %v421
  %502 = vmatprep.mubr.bf16.mxu0 %v215
  %503 = vmatmul.mubr.bf16.gmra.mrb[0].mxu0 %v214
  %v504 = vpop.f32.mrb[0].mxu0
  %v505 = vadd.f32 %v116, %v504
  %v506 = vpop.f32.mrb[0].mxu0
  %v507 = vpop.f32.mrb[0].mxu0
  %v508 = vadd.f32 %v116, %v507
  %v509 = vpop.f32.mrb[0].mxu0
  %510 = vmatprep.mubr.bf16.mxu0 %v219
  %511 = vmatmul.mubr.bf16.gmra.mrb[0].mxu0 %v218
  %v512 = vpop.f32.mrb[0].mxu0
  %v513 = vadd.f32 %v116, %v512
  %v514 = vpop.f32.mrb[0].mxu0
  %v515 = vpop.f32.mrb[0].mxu0
  %v516 = vadd.f32 %v116, %v515
  %v517 = vpop.f32.mrb[0].mxu0
  %518 = vmatprep.mubr.bf16.mxu0 %v223
  %519 = vmatmul.mubr.bf16.gmra.mrb[0].mxu0 %v222
  %v520 = vpop.f32.mrb[0].mxu0
  %v521 = vadd.f32 %v116, %v520
  %v522 = vpop.f32.mrb[0].mxu0
  %v523 = vpop.f32.mrb[0].mxu0
  %v524 = vadd.f32 %v116, %v523
  %v525 = vpop.f32.mrb[0].mxu0
  %526 = vmatprep.mubr.bf16.mxu0 %v227
  %527 = vmatmul.mubr.bf16.gmra.mrb[0].mxu0 %v226
  %v528 = vpop.f32.mrb[0].mxu0
  %v529 = vadd.f32 %v116, %v528
  %v530 = vpop.f32.mrb[0].mxu0
  %v531 = vpop.f32.mrb[0].mxu0
  %v532 = vadd.f32 %v116, %v531
  %v533 = vpop.f32.mrb[0].mxu0
  %534 = vmatprep.mubr.bf16.mxu0 %v231
  %535 = vmatmul.mubr.bf16.gmra.mrb[0].mxu0 %v230
  %v536 = vpop.f32.mrb[0].mxu0
  %v537 = vadd.f32 %v116, %v536
  %v538 = vpop.f32.mrb[0].mxu0
  %v539 = vpop.f32.mrb[0].mxu0
  %v540 = vadd.f32 %v116, %v539
  %v541 = vpop.f32.mrb[0].mxu0
  %542 = vmatprep.mubr.bf16.mxu0 %v235
  %543 = vmatmul.mubr.bf16.gmra.mrb[0].mxu0 %v234
  %v544 = vpop.f32.mrb[0].mxu0
  %v545 = vadd.f32 %v116, %v544
  %v546 = vpop.f32.mrb[0].mxu0
  %v547 = vpop.f32.mrb[0].mxu0
  %v548 = vadd.f32 %v116, %v547
  %v549 = vpop.f32.mrb[0].mxu0
  %550 = vmatprep.mubr.bf16.mxu0 %v239
  %551 = vmatmul.mubr.bf16.gmra.mrb[0].mxu0 %v238
  %v552 = vpop.f32.mrb[0].mxu0
  %v553 = vadd.f32 %v116, %v552
  %v554 = vpop.f32.mrb[0].mxu0
  %v555 = vpop.f32.mrb[0].mxu0
  %v556 = vadd.f32 %v116, %v555
  %v557 = vpop.f32.mrb[0].mxu0
  %558 = vmatprep.mubr.bf16.mxu0 %v243
  %559 = vmatmul.mubr.bf16.gmra.mrb[0].mxu0 %v242
  %v560 = vpop.f32.mrb[0].mxu0
  %v561 = vadd.f32 %v116, %v560
  %v562 = vpop.f32.mrb[0].mxu0
  %v563 = vpop.f32.mrb[0].mxu0
  %v564 = vadd.f32 %v116, %v563
  %v565 = vpop.f32.mrb[0].mxu0
  %566 = vdwg.mxu0
  %567 = vmatprep.subr.bf16.mxu0 0
  %568 = vmatpush1.bf16.msra.mxu0 %v422
  %569 = vmatprep.subr.bf16.mxu0 0
  %570 = vmatpush1.bf16.msra.mxu0 %v423
  %571 = vmatprep.subr.bf16.mxu0 0
  %572 = vmatpush1.bf16.msra.mxu0 %v424
  %573 = vmatprep.subr.bf16.mxu0 0
  %574 = vmatpush1.bf16.msra.mxu0 %v425
  %575 = vmatprep.subr.bf16.mxu0 0
  %576 = vmatpush1.bf16.msra.mxu0 %v426
  %577 = vmatprep.subr.bf16.mxu0 0
  %578 = vmatpush1.bf16.msra.mxu0 %v427
  %579 = vmatprep.subr.bf16.mxu0 0
  %580 = vmatpush1.bf16.msra.mxu0 %v428
  %581 = vmatprep.subr.bf16.mxu0 0
  %582 = vmatpush1.bf16.msra.mxu0 %v429
  %583 = vmatprep.subr.bf16.mxu0 0
  %584 = vmatpush1.bf16.msra.mxu0 %v430
  %585 = vmatprep.subr.bf16.mxu0 0
  %586 = vmatpush1.bf16.msra.mxu0 %v431
  %587 = vmatprep.subr.bf16.mxu0 0
  %588 = vmatpush1.bf16.msra.mxu0 %v432
  %589 = vmatprep.subr.bf16.mxu0 0
  %590 = vmatpush1.bf16.msra.mxu0 %v433
  %591 = vmatprep.subr.bf16.mxu0 0
  %592 = vmatpush1.bf16.msra.mxu0 %v434
  %593 = vmatprep.subr.bf16.mxu0 0
  %594 = vmatpush1.bf16.msra.mxu0 %v435
  %595 = vmatprep.subr.bf16.mxu0 0
  %596 = vmatpush1.bf16.msra.mxu0 %v436
  %597 = vmatprep.subr.bf16.mxu0 0
  %598 = vmatpush1.bf16.msra.mxu0 %v437
  %599 = vmatprep.mubr.bf16.mxu0 %v217
  %600 = vmatmul.mubr.bf16.gmra.mrb[0].mxu0 %v216
  %v601 = vpop.f32.mrb[0].mxu0
  %v602 = vadd.f32 %v505, %v601
  %v603 = vpop.f32.mrb[0].mxu0
  %v604 = vpop.f32.mrb[0].mxu0
  %v605 = vadd.f32 %v508, %v604
  %v606 = vpop.f32.mrb[0].mxu0
  %607 = vmatprep.mubr.bf16.mxu0 %v221
  %608 = vmatmul.mubr.bf16.gmra.mrb[0].mxu0 %v220
  %v609 = vpop.f32.mrb[0].mxu0
  %v610 = vadd.f32 %v513, %v609
  %v611 = vpop.f32.mrb[0].mxu0
  %v612 = vpop.f32.mrb[0].mxu0
  %v613 = vadd.f32 %v516, %v612
  %v614 = vpop.f32.mrb[0].mxu0
  %615 = vmatprep.mubr.bf16.mxu0 %v225
  %616 = vmatmul.mubr.bf16.gmra.mrb[0].mxu0 %v224
  %v617 = vpop.f32.mrb[0].mxu0
  %v618 = vadd.f32 %v521, %v617
  %v619 = vpop.f32.mrb[0].mxu0
  %v620 = vpop.f32.mrb[0].mxu0
  %v621 = vadd.f32 %v524, %v620
  %v622 = vpop.f32.mrb[0].mxu0
  %623 = vmatprep.mubr.bf16.mxu0 %v229
  %624 = vmatmul.mubr.bf16.gmra.mrb[0].mxu0 %v228
  %v625 = vpop.f32.mrb[0].mxu0
  %v626 = vadd.f32 %v529, %v625
  %v627 = vpop.f32.mrb[0].mxu0
  %v628 = vpop.f32.mrb[0].mxu0
  %v629 = vadd.f32 %v532, %v628
  %v630 = vpop.f32.mrb[0].mxu0
  %631 = vmatprep.mubr.bf16.mxu0 %v233
  %632 = vmatmul.mubr.bf16.gmra.mrb[0].mxu0 %v232
  %v633 = vpop.f32.mrb[0].mxu0
  %v634 = vadd.f32 %v537, %v633
  %v635 = vpop.f32.mrb[0].mxu0
  %v636 = vpop.f32.mrb[0].mxu0
  %v637 = vadd.f32 %v540, %v636
  %v638 = vpop.f32.mrb[0].mxu0
  %639 = vmatprep.mubr.bf16.mxu0 %v237
  %640 = vmatmul.mubr.bf16.gmra.mrb[0].mxu0 %v236
  %v641 = vpop.f32.mrb[0].mxu0
  %v642 = vadd.f32 %v545, %v641
  %v643 = vpop.f32.mrb[0].mxu0
  %v644 = vpop.f32.mrb[0].mxu0
  %v645 = vadd.f32 %v548, %v644
  %v646 = vpop.f32.mrb[0].mxu0
  %647 = vmatprep.mubr.bf16.mxu0 %v241
  %648 = vmatmul.mubr.bf16.gmra.mrb[0].mxu0 %v240
  %v649 = vpop.f32.mrb[0].mxu0
  %v650 = vadd.f32 %v553, %v649
  %v651 = vpop.f32.mrb[0].mxu0
  %v652 = vpop.f32.mrb[0].mxu0
  %v653 = vadd.f32 %v556, %v652
  %v654 = vpop.f32.mrb[0].mxu0
  %655 = vmatprep.mubr.bf16.mxu0 %v245
  %656 = vmatmul.mubr.bf16.gmra.mrb[0].mxu0 %v244
  %v657 = vpop.f32.mrb[0].mxu0
  %v658 = vadd.f32 %v561, %v657
  %v659 = vpop.f32.mrb[0].mxu0
  %v660 = vpop.f32.mrb[0].mxu0
  %v661 = vadd.f32 %v564, %v660
  %v662 = vpop.f32.mrb[0].mxu0
  %663 = vdwg.mxu0
  %v664 = vpack.c.bf16 %v605, %v602
  %v665 = vpack.c.bf16 %v613, %v610
  %v666 = vpack.c.bf16 %v621, %v618
  %v667 = vpack.c.bf16 %v629, %v626
  %v668 = vpack.c.bf16 %v637, %v634
  %v669 = vpack.c.bf16 %v645, %v642
  %v670 = vpack.c.bf16 %v653, %v650
  %v671 = vpack.c.bf16 %v661, %v658
  %v680 = vunpack.c.l.b16 %v664
  %v681 = vunpack.c.h.b16 %v664
  %v682 = vunpack.c.l.b16 %v665
  %v683 = vunpack.c.h.b16 %v665
  %v684 = vunpack.c.l.b16 %v666
  %v685 = vunpack.c.h.b16 %v666
  %v686 = vunpack.c.l.b16 %v667
  %v687 = vunpack.c.h.b16 %v667
  %v688 = vunpack.c.l.b16 %v668
  %v689 = vunpack.c.h.b16 %v668
  %v690 = vunpack.c.l.b16 %v669
  %v691 = vunpack.c.h.b16 %v669
  %v692 = vunpack.c.l.b16 %v670
  %v693 = vunpack.c.h.b16 %v670
  %v694 = vunpack.c.l.b16 %v671
  %v695 = vunpack.c.h.b16 %v671
  %v696 = vpack.c.b16 %v680, %v680
  %v697 = vpack.c.b16 %v681, %v681
  %v698 = vpack.c.b16 %v682, %v682
  %v699 = vpack.c.b16 %v683, %v683
  %v700 = vpack.c.b16 %v684, %v684
  %v701 = vpack.c.b16 %v685, %v685
  %v702 = vpack.c.b16 %v686, %v686
  %v703 = vpack.c.b16 %v687, %v687
  %v704 = vpack.c.b16 %v688, %v688
  %v705 = vpack.c.b16 %v689, %v689
  %v706 = vpack.c.b16 %v690, %v690
  %v707 = vpack.c.b16 %v691, %v691
  %v708 = vpack.c.b16 %v692, %v692
  %v709 = vpack.c.b16 %v693, %v693
  %v710 = vpack.c.b16 %v694, %v694
  %v711 = vpack.c.b16 %v695, %v695
  %728 = vst [vmem:[%s3] sm:$0xf] %v696
  %729 = vst [vmem:[%s3 + $0x4] sm:$0xf] %v697
  %730 = vst [vmem:[%s3 + $0x8] sm:$0xf] %v698
  %731 = vst [vmem:[%s3 + $0xc] sm:$0xf] %v699
  %732 = vst [vmem:[%s3 + $0x10] sm:$0xf] %v700
  %733 = vst [vmem:[%s3 + $0x14] sm:$0xf] %v701
  %734 = vst [vmem:[%s3 + $0x18] sm:$0xf] %v702
  %735 = vst [vmem:[%s3 + $0x1c] sm:$0xf] %v703
  %736 = vst [vmem:[%s3 + $0x20] sm:$0xf] %v704
  %737 = vst [vmem:[%s3 + $0x24] sm:$0xf] %v705
  %738 = vst [vmem:[%s3 + $0x28] sm:$0xf] %v706
  %739 = vst [vmem:[%s3 + $0x2c] sm:$0xf] %v707
  %740 = vst [vmem:[%s3 + $0x30] sm:$0xf] %v708
  %741 = vst [vmem:[%s3 + $0x34] sm:$0xf] %v709
  %742 = vst [vmem:[%s3 + $0x38] sm:$0xf] %v710
  %743 = vst [vmem:[%s3 + $0x3c] sm:$0xf] %v711
  // Predicated region
  $region14: #{_lambda_.11} parent=0 // pred_check
    _
  $region15: #{_lambda_.11} parent=0 // pred_check_branch
    %745 = sbr.rel (0) target = $region17
  $region16: #{_lambda_.11} parent=0 // pred_region
    _
  $region17: #{_lambda_.11} parent=0 // pred_fallthru
    _
  // Predicated region
  $region18: #{_lambda_.11} parent=0 // pred_check
    _
  $region19: #{_lambda_.11} parent=0 // pred_check_branch
    %747 = sbr.rel (0) target = $region21
  $region20: #{_lambda_.11} parent=0 // pred_region
    _
  $region21: #{_lambda_.11} parent=0 // pred_fallthru
    _

// kernel: _lambda_.12
$region0: #{_lambda_.12}
  #allocation0 [shape = 'u32[]', space=smem, size = 0x4, offset = 0x4, fixed_abs, tag = 'smem constant byte address 0x4 - core index']
  #allocation1 [shape = 'u32[144,128]{1,0:T(1,128)}', space=vmem, size = 0x12000, scoped, tag = 'internal scratch']
  %s0 = inlined_call_operand.vmem [shape: bf16[2,64,16], index: 0, kind: input, shape index: {}]
  %s1 = inlined_call_operand.vmem [shape: f32[2,1,16], index: 1, kind: output, shape index: {0}]
  %s2 = inlined_call_operand.vmem [shape: f32[2,1,16], index: 2, kind: output, shape index: {1}]
  %3 = xla_tuple %s1, %s2
  %s4 = sld [smem:[#allocation0]]
  $region45: #{_lambda_.12} parent=0
    _
  %s6 = ssub.s32 1, %s4
  %s7 = scalar_select 0, %s6, %s4
  loop: start=0, step=1, limit=4
  $region2: #{_lambda_.12} parent=0 // loop_pre_header
    _
  $region3: #{_lambda_.12} parent=0 // loop_header
    %s9 = sphi 0, %s13
    %p10 = scmp.ge.s32.totalorder %s9, 4
    %s16 = sphi 0, %s28
    %s17 = sphi 0, %s24
    %s18 = sphi 0, %s16
    %s19 = sphi 0, %s17
    %s20 = sphi 0, %s18
    %s21 = sphi 0, %s19
    %s33 = sphi 0, %s35
    %s36 = sphi 0, %s33
    %s37 = sphi 0, %s36
    %s53 = sphi 0, %s37
    %s61 = sphi 0, %s63
    %s64 = sphi 0, %s61
    %s65 = sphi 0, %s64
    %s81 = sphi 0, %s65
    %s89 = sphi 0, %s91
    %s92 = sphi 0, %s89
    %s93 = sphi 0, %s92
    %s109 = sphi 0, %s93
  $region4: #{_lambda_.12} parent=0 // loop_header_branch
    %12 = sbr.rel (%p10) target = $region8
  $region5: #{_lambda_.12} parent=0 // loop_body
    %s14 = ssub.s32 %s9, 1
    %s15 = ssub.s32 %s9, 2
    %s22 = sadd.s32 1, %s17
    %p23 = scmp.ge.s32.totalorder %s22, 1
    %s24 = scalar_select %p23, 0, %s22
    %s25 = sadd.s32 1, %s16
    %s26 = scalar_select %p23, %s25, %s16
    %p27 = scmp.ge.s32.totalorder %s26, 2
    %s28 = scalar_select %p27, 0, %s26
    %s29 = ssub.s32 %s16, %s28
    %s30 = ssub.s32 %s17, %s24
    %s31 = sor.u32 %s29, %s30
    %p32 = scmp.eq.s32.totalorder %s31, 0
    %s34 = sadd.s32 %s33, 1
    %s35 = scalar_select %p32, %s33, %s34
    %p38 = pneg %p32
    %p39 = scmp.eq.s32.totalorder %s9, 1
    %p40 = por %p38, %p39
    %p41 = scmp.ne.s32.totalorder %s33, %s36
    %p42 = scmp.eq.s32.totalorder %s9, 0
    %p43 = por %p41, %p42
    %p44 = scmp.ne.s32.totalorder %s33, %s36
    %p45 = scmp.eq.s32.totalorder %s14, 1
    %p46 = por %p44, %p45
    %p47 = scmp.ne.s32.totalorder %s36, %s37
    %p48 = scmp.eq.s32.totalorder %s14, 0
    %p49 = por %p47, %p48
    %p50 = scmp.ne.s32.totalorder %s36, %s37
    %p51 = scmp.eq.s32.totalorder %s15, 1
    %p52 = por %p50, %p51
    %p54 = scmp.ne.s32.totalorder %s37, %s53
    %p55 = scmp.eq.s32.totalorder %s15, 0
    %p56 = por %p54, %p55
    %s57 = ssub.s32 %s16, %s28
    %s58 = ssub.s32 %s17, %s24
    %s59 = sor.u32 %s57, %s58
    %p60 = scmp.eq.s32.totalorder %s59, 0
    %s62 = sadd.s32 %s61, 1
    %s63 = scalar_select %p60, %s61, %s62
    %p66 = pneg %p60
    %p67 = scmp.eq.s32.totalorder %s9, 1
    %p68 = por %p66, %p67
    %p69 = scmp.ne.s32.totalorder %s61, %s64
    %p70 = scmp.eq.s32.totalorder %s9, 0
    %p71 = por %p69, %p70
    %p72 = scmp.ne.s32.totalorder %s61, %s64
    %p73 = scmp.eq.s32.totalorder %s14, 1
    %p74 = por %p72, %p73
    %p75 = scmp.ne.s32.totalorder %s64, %s65
    %p76 = scmp.eq.s32.totalorder %s14, 0
    %p77 = por %p75, %p76
    %p78 = scmp.ne.s32.totalorder %s64, %s65
    %p79 = scmp.eq.s32.totalorder %s15, 1
    %p80 = por %p78, %p79
    %p82 = scmp.ne.s32.totalorder %s65, %s81
    %p83 = scmp.eq.s32.totalorder %s15, 0
    %p84 = por %p82, %p83
    %s85 = ssub.s32 %s16, %s28
    %s86 = ssub.s32 %s17, %s24
    %s87 = sor.u32 %s85, %s86
    %p88 = scmp.eq.s32.totalorder %s87, 0
    %s90 = sadd.s32 %s89, 1
    %s91 = scalar_select %p88, %s89, %s90
    %p94 = pneg %p88
    %p95 = scmp.eq.s32.totalorder %s9, 1
    %p96 = por %p94, %p95
    %p97 = scmp.ne.s32.totalorder %s89, %s92
    %p98 = scmp.eq.s32.totalorder %s9, 0
    %p99 = por %p97, %p98
    %p100 = scmp.ne.s32.totalorder %s89, %s92
    %p101 = scmp.eq.s32.totalorder %s14, 1
    %p102 = por %p100, %p101
    %p103 = scmp.ne.s32.totalorder %s92, %s93
    %p104 = scmp.eq.s32.totalorder %s14, 0
    %p105 = por %p103, %p104
    %p106 = scmp.ne.s32.totalorder %s92, %s93
    %p107 = scmp.eq.s32.totalorder %s15, 1
    %p108 = por %p106, %p107
    %p110 = scmp.ne.s32.totalorder %s93, %s109
    %p111 = scmp.eq.s32.totalorder %s15, 0
    %p112 = por %p110, %p111
    %p113 = scmp.le.s32.totalorder 1, %s9
    %p114 = scmp.lt.s32.totalorder %s9, 3
    %p115 = pnand %p113, %p114
    %p116 = pneg %p115
    // Predicated region
    $region9: #{_lambda_.12} parent=5 // pred_check
      _
    $region10: #{_lambda_.12} parent=5 // pred_check_branch
      %118 = sbr.rel (%p115) target = $region12
    $region11: #{_lambda_.12} parent=5 // pred_region
      %s119 = ssub.s32 %s9, 1
    $region12: #{_lambda_.12} parent=5 // pred_fallthru
      _
    %p120 = scmp.lt.s32.totalorder %s9, 2
    // Predicated region
    $region13: #{_lambda_.12} parent=5 // pred_check
      %p121 = pneg %p120
    $region14: #{_lambda_.12} parent=5 // pred_check_branch
      %123 = sbr.rel (%p121) target = $region16
    $region15: #{_lambda_.12} parent=5 // pred_region
      // Predicated region
      $region17: #{_lambda_.12} parent=15 // pred_check
        %p124 = pneg %p43
      $region18: #{_lambda_.12} parent=15 // pred_check_branch
        %126 = sbr.rel (%p124) target = $region20
      $region19: #{_lambda_.12} parent=15 // pred_region
        %s127 = smul.u32 8, %s17
        %p128 = scmp.lt.s32.totalorder %s16, 1
        %s129 = scalar_select %p128, %s16, 1
        %p130 = scmp.lt.s32.totalorder %s127, 7
        %s131 = scalar_select %p130, %s127, 7
        %s132 = smul.addr %s129, 8
        %s133 = sadd.s32 %s131, %s132
        %s134 = smul.addr %s133, 4
        %s135 = scalar_lea.vmem %s0, %s134
        %s136 = smul.u32 8, %s17
      $region20: #{_lambda_.12} parent=15 // pred_fallthru
        _
    $region16: #{_lambda_.12} parent=5 // pred_fallthru
      _
    %p137 = scmp.le.s32.totalorder 1, %s9
    %p138 = scmp.lt.s32.totalorder %s9, 3
    %p139 = pnand %p137, %p138
    %p140 = pneg %p139
    // Predicated region
    $region21: #{_lambda_.12} parent=5 // pred_check
      _
    $region22: #{_lambda_.12} parent=5 // pred_check_branch
      %142 = sbr.rel (%p139) target = $region24
    $region23: #{_lambda_.12} parent=5 // pred_region
      %s143 = ssub.s32 %s9, 1
      %s144 = smul.u32 8, %s19
      %p145 = scmp.lt.s32.totalorder %s18, 1
      %s146 = scalar_select %p145, %s18, 1
      %p147 = scmp.lt.s32.totalorder %s144, 7
      %s148 = scalar_select %p147, %s144, 7
      %s149 = smul.addr %s146, 8
      %s150 = sadd.s32 %s148, %s149
      %s151 = smul.addr %s150, 4
      %s152 = scalar_lea.vmem %s0, %s151
      %p153 = pneg %p49
      %p154 = pneg %p46
      %p155 = pneg %p77
      %p156 = pneg %p74
      %p157 = scmp.lt.s32.totalorder %s18, 1
      %s158 = scalar_select %p157, %s18, 1
      %p159 = scmp.lt.s32.totalorder %s19, 0
      %s160 = scalar_select %p159, %s19, 0
      %s161 = sadd.s32 %s160, %s158
      %s162 = scalar_lea.vmem %s1, %s161
      %p163 = pneg %p105
      %p164 = pneg %p102
      %p165 = scmp.lt.s32.totalorder %s18, 1
      %s166 = scalar_select %p165, %s18, 1
      %p167 = scmp.lt.s32.totalorder %s19, 0
      %s168 = scalar_select %p167, %s19, 0
      %s169 = sadd.s32 %s168, %s166
      %s170 = scalar_lea.vmem %s2, %s169
      %s171 = smul.u32 8, %s19
      %p172 = scmp.lt.s32.totalorder %s18, 1
      %s173 = scalar_select %p172, %s18, 1
      %p174 = scmp.lt.s32.totalorder %s171, 7
      %s175 = scalar_select %p174, %s171, 7
      %s176 = smul.addr %s173, 8
      %s177 = sadd.s32 %s175, %s176
      %s178 = smul.addr %s177, 4
      %s179 = scalar_lea.vmem %s0, %s178
      %s180 = smul.u32 8, %s19
      %p181 = scmp.lt.s32.totalorder %s18, 1
      %s182 = scalar_select %p181, %s18, 1
      %p183 = scmp.lt.s32.totalorder %s19, 0
      %s184 = scalar_select %p183, %s19, 0
      %s185 = sadd.s32 %s184, %s182
      %s186 = scalar_lea.vmem %s1, %s185
      %p187 = scmp.lt.s32.totalorder %s18, 1
      %s188 = scalar_select %p187, %s18, 1
      %p189 = scmp.lt.s32.totalorder %s19, 0
      %s190 = scalar_select %p189, %s19, 0
      %s191 = sadd.s32 %s190, %s188
      %s192 = scalar_lea.vmem %s2, %s191
      %v193 = vld [vmem:[%s179] sm:$0xf]
      %v194 = vld [vmem:[%s179 + $0x4] sm:$0xf]
      %v195 = vld [vmem:[%s179 + $0x8] sm:$0xf]
      %v196 = vld [vmem:[%s179 + $0xc] sm:$0xf]
      %v197 = vld [vmem:[%s179 + $0x10] sm:$0xf]
      %v198 = vld [vmem:[%s179 + $0x14] sm:$0xf]
      %v199 = vld [vmem:[%s179 + $0x18] sm:$0xf]
      %v200 = vld [vmem:[%s179 + $0x1c] sm:$0xf]
      %v201 = vunpack.c.l.bf16 %v193
      %v202 = vunpack.c.l.bf16 %v194
      %v203 = vunpack.c.l.bf16 %v195
      %v204 = vunpack.c.l.bf16 %v196
      %v205 = vunpack.c.l.bf16 %v197
      %v206 = vunpack.c.l.bf16 %v198
      %v207 = vunpack.c.l.bf16 %v199
      %v208 = vunpack.c.l.bf16 %v200
      %vm209 = vcmask 130048
      %v210 = vsel %vm209, %v201, 0.0
      %v211 = vsel %vm209, %v202, 0.0
      %v212 = vadd.f32 %v210, %v211
      %v213 = vsel %vm209, %v203, 0.0
      %v214 = vadd.f32 %v212, %v213
      %v215 = vsel %vm209, %v204, 0.0
      %v216 = vadd.f32 %v214, %v215
      %v217 = vsel %vm209, %v205, 0.0
      %v218 = vadd.f32 %v216, %v217
      %v219 = vsel %vm209, %v206, 0.0
      %v220 = vadd.f32 %v218, %v219
      %v221 = vsel %vm209, %v207, 0.0
      %v222 = vadd.f32 %v220, %v221
      %v223 = vsel %vm209, %v208, 0.0
      %v224 = vadd.f32 %v222, %v223
      %v225 = vrot.slane %v224, 4
      %v226 = vadd.f32 %v224, %v225
      %v227 = vrot.slane %v226, 2
      %v228 = vadd.f32 %v226, %v227
      %v229 = vrot.slane %v228, 1
      %v230 = vadd.f32 %v228, %v229
      %vm231 = vcmask 122880
      %232 = vst.msk [vmem:[%s186] sm:$0x1] %vm231, %v230
      %v233 = vmul.f32 %v201, %v201
      %v234 = vmul.f32 %v202, %v202
      %v235 = vmul.f32 %v203, %v203
      %v236 = vmul.f32 %v204, %v204
      %v237 = vmul.f32 %v205, %v205
      %v238 = vmul.f32 %v206, %v206
      %v239 = vmul.f32 %v207, %v207
      %v240 = vmul.f32 %v208, %v208
      %v241 = vsel %vm209, %v233, 0.0
      %v242 = vsel %vm209, %v234, 0.0
      %v243 = vadd.f32 %v241, %v242
      %v244 = vsel %vm209, %v235, 0.0
      %v245 = vadd.f32 %v243, %v244
      %v246 = vsel %vm209, %v236, 0.0
      %v247 = vadd.f32 %v245, %v246
      %v248 = vsel %vm209, %v237, 0.0
      %v249 = vadd.f32 %v247, %v248
      %v250 = vsel %vm209, %v238, 0.0
      %v251 = vadd.f32 %v249, %v250
      %v252 = vsel %vm209, %v239, 0.0
      %v253 = vadd.f32 %v251, %v252
      %v254 = vsel %vm209, %v240, 0.0
      %v255 = vadd.f32 %v253, %v254
      %v256 = vrot.slane %v255, 4
      %v257 = vadd.f32 %v255, %v256
      %v258 = vrot.slane %v257, 2
      %v259 = vadd.f32 %v257, %v258
      %v260 = vrot.slane %v259, 1
      %v261 = vadd.f32 %v259, %v260
      %262 = vst.msk [vmem:[%s192] sm:$0x1] %vm231, %v261
      %p263 = scmp.lt.s32.totalorder %s18, 1
      %s264 = scalar_select %p263, %s18, 1
      %p265 = scmp.lt.s32.totalorder %s19, 0
      %s266 = scalar_select %p265, %s19, 0
      %s267 = sadd.s32 %s266, %s264
      %s268 = scalar_lea.vmem %s1, %s267
      %p269 = scmp.lt.s32.totalorder %s18, 1
      %s270 = scalar_select %p269, %s18, 1
      %p271 = scmp.lt.s32.totalorder %s19, 0
      %s272 = scalar_select %p271, %s19, 0
      %s273 = sadd.s32 %s272, %s270
      %s274 = scalar_lea.vmem %s2, %s273
      // Predicated region
      $region25: #{_lambda_.12} parent=23 // pred_check
        %p275 = pneg %p74
      $region26: #{_lambda_.12} parent=23 // pred_check_branch
        %277 = sbr.rel (%p275) target = $region28
      $region27: #{_lambda_.12} parent=23 // pred_region
        _
      $region28: #{_lambda_.12} parent=23 // pred_fallthru
        _
      // Predicated region
      $region29: #{_lambda_.12} parent=23 // pred_check
        %p278 = pneg %p102
      $region30: #{_lambda_.12} parent=23 // pred_check_branch
        %280 = sbr.rel (%p278) target = $region32
      $region31: #{_lambda_.12} parent=23 // pred_region
        _
      $region32: #{_lambda_.12} parent=23 // pred_fallthru
        _
    $region24: #{_lambda_.12} parent=5 // pred_fallthru
      _
    %p281 = scmp.le.s32.totalorder 2, %s9
    // Predicated region
    $region33: #{_lambda_.12} parent=5 // pred_check
      %p282 = pneg %p281
    $region34: #{_lambda_.12} parent=5 // pred_check_branch
      %284 = sbr.rel (%p282) target = $region36
    $region35: #{_lambda_.12} parent=5 // pred_region
      %s285 = ssub.s32 %s9, 2
      // Predicated region
      $region37: #{_lambda_.12} parent=35 // pred_check
        %p286 = pneg %p80
      $region38: #{_lambda_.12} parent=35 // pred_check_branch
        %288 = sbr.rel (%p286) target = $region40
      $region39: #{_lambda_.12} parent=35 // pred_region
        %p289 = scmp.lt.s32.totalorder %s20, 1
        %s290 = scalar_select %p289, %s20, 1
        %p291 = scmp.lt.s32.totalorder %s21, 0
        %s292 = scalar_select %p291, %s21, 0
        %s293 = sadd.s32 %s292, %s290
        %s294 = scalar_lea.vmem %s1, %s293
      $region40: #{_lambda_.12} parent=35 // pred_fallthru
        _
      // Predicated region
      $region41: #{_lambda_.12} parent=35 // pred_check
        %p295 = pneg %p108
      $region42: #{_lambda_.12} parent=35 // pred_check_branch
        %297 = sbr.rel (%p295) target = $region44
      $region43: #{_lambda_.12} parent=35 // pred_region
        %p298 = scmp.lt.s32.totalorder %s20, 1
        %s299 = scalar_select %p298, %s20, 1
        %p300 = scmp.lt.s32.totalorder %s21, 0
        %s301 = scalar_select %p300, %s21, 0
        %s302 = sadd.s32 %s301, %s299
        %s303 = scalar_lea.vmem %s2, %s302
      $region44: #{_lambda_.12} parent=35 // pred_fallthru
        _
    $region36: #{_lambda_.12} parent=5 // pred_fallthru
      _
  $region6: #{_lambda_.12} parent=0 // loop_footer
    %s13 = sadd.s32 1, %s9
  $region7: #{_lambda_.12} parent=0 // loop_footer_branch
    %8 = sbr.rel target = $region3
  $region8: #{_lambda_.12} parent=0 // loop_exit
    _

// kernel: _lambda_.13
$region0: #{_lambda_.13}
  #allocation0 [shape = 'u32[]', space=smem, size = 0x4, offset = 0x4, fixed_abs, tag = 'smem constant byte address 0x4 - core index']
  #allocation1 [shape = 'u32[144,128]{1,0:T(1,128)}', space=vmem, size = 0x12000, scoped, tag = 'internal scratch']
  %s0 = inlined_call_operand.vmem [shape: bf16[2,64,16], index: 0, kind: input, shape index: {}]
  %s1 = inlined_call_operand.vmem [shape: f32[2,1,16], index: 1, kind: input, shape index: {}]
  %s2 = inlined_call_operand.vmem [shape: f32[2,1,16], index: 2, kind: input, shape index: {}]
  %s3 = inlined_call_operand.vmem [shape: bf16[2,64,16], index: 3, kind: output, shape index: {}]
  %s4 = sld [smem:[#allocation0]]
  $region45: #{_lambda_.13} parent=0
    _
  %s6 = ssub.s32 1, %s4
  %s7 = scalar_select 0, %s6, %s4
  loop: start=0, step=1, limit=4
  $region2: #{_lambda_.13} parent=0 // loop_pre_header
    _
  $region3: #{_lambda_.13} parent=0 // loop_header
    %s9 = sphi 0, %s13
    %p10 = scmp.ge.s32.totalorder %s9, 4
    %s16 = sphi 0, %s28
    %s17 = sphi 0, %s24
    %s18 = sphi 0, %s16
    %s19 = sphi 0, %s17
    %s20 = sphi 0, %s18
    %s21 = sphi 0, %s19
    %s33 = sphi 0, %s35
    %s36 = sphi 0, %s33
    %s37 = sphi 0, %s36
    %s53 = sphi 0, %s37
    %s59 = sphi 0, %s61
    %s62 = sphi 0, %s59
    %s63 = sphi 0, %s62
    %s79 = sphi 0, %s63
    %s85 = sphi 0, %s87
    %s88 = sphi 0, %s85
    %s89 = sphi 0, %s88
    %s105 = sphi 0, %s89
    %s113 = sphi 0, %s115
    %s116 = sphi 0, %s113
    %s117 = sphi 0, %s116
    %s133 = sphi 0, %s117
  $region4: #{_lambda_.13} parent=0 // loop_header_branch
    %12 = sbr.rel (%p10) target = $region8
  $region5: #{_lambda_.13} parent=0 // loop_body
    %s14 = ssub.s32 %s9, 1
    %s15 = ssub.s32 %s9, 2
    %s22 = sadd.s32 1, %s17
    %p23 = scmp.ge.s32.totalorder %s22, 1
    %s24 = scalar_select %p23, 0, %s22
    %s25 = sadd.s32 1, %s16
    %s26 = scalar_select %p23, %s25, %s16
    %p27 = scmp.ge.s32.totalorder %s26, 2
    %s28 = scalar_select %p27, 0, %s26
    %s29 = ssub.s32 %s16, %s28
    %s30 = ssub.s32 %s17, %s24
    %s31 = sor.u32 %s29, %s30
    %p32 = scmp.eq.s32.totalorder %s31, 0
    %s34 = sadd.s32 %s33, 1
    %s35 = scalar_select %p32, %s33, %s34
    %p38 = pneg %p32
    %p39 = scmp.eq.s32.totalorder %s9, 1
    %p40 = por %p38, %p39
    %p41 = scmp.ne.s32.totalorder %s33, %s36
    %p42 = scmp.eq.s32.totalorder %s9, 0
    %p43 = por %p41, %p42
    %p44 = scmp.ne.s32.totalorder %s33, %s36
    %p45 = scmp.eq.s32.totalorder %s14, 1
    %p46 = por %p44, %p45
    %p47 = scmp.ne.s32.totalorder %s36, %s37
    %p48 = scmp.eq.s32.totalorder %s14, 0
    %p49 = por %p47, %p48
    %p50 = scmp.ne.s32.totalorder %s36, %s37
    %p51 = scmp.eq.s32.totalorder %s15, 1
    %p52 = por %p50, %p51
    %p54 = scmp.ne.s32.totalorder %s37, %s53
    %p55 = scmp.eq.s32.totalorder %s15, 0
    %p56 = por %p54, %p55
    %s57 = ssub.s32 %s16, %s28
    %p58 = scmp.eq.s32.totalorder %s57, 0
    %s60 = sadd.s32 %s59, 1
    %s61 = scalar_select %p58, %s59, %s60
    %p64 = pneg %p58
    %p65 = scmp.eq.s32.totalorder %s9, 1
    %p66 = por %p64, %p65
    %p67 = scmp.ne.s32.totalorder %s59, %s62
    %p68 = scmp.eq.s32.totalorder %s9, 0
    %p69 = por %p67, %p68
    %p70 = scmp.ne.s32.totalorder %s59, %s62
    %p71 = scmp.eq.s32.totalorder %s14, 1
    %p72 = por %p70, %p71
    %p73 = scmp.ne.s32.totalorder %s62, %s63
    %p74 = scmp.eq.s32.totalorder %s14, 0
    %p75 = por %p73, %p74
    %p76 = scmp.ne.s32.totalorder %s62, %s63
    %p77 = scmp.eq.s32.totalorder %s15, 1
    %p78 = por %p76, %p77
    %p80 = scmp.ne.s32.totalorder %s63, %s79
    %p81 = scmp.eq.s32.totalorder %s15, 0
    %p82 = por %p80, %p81
    %s83 = ssub.s32 %s16, %s28
    %p84 = scmp.eq.s32.totalorder %s83, 0
    %s86 = sadd.s32 %s85, 1
    %s87 = scalar_select %p84, %s85, %s86
    %p90 = pneg %p84
    %p91 = scmp.eq.s32.totalorder %s9, 1
    %p92 = por %p90, %p91
    %p93 = scmp.ne.s32.totalorder %s85, %s88
    %p94 = scmp.eq.s32.totalorder %s9, 0
    %p95 = por %p93, %p94
    %p96 = scmp.ne.s32.totalorder %s85, %s88
    %p97 = scmp.eq.s32.totalorder %s14, 1
    %p98 = por %p96, %p97
    %p99 = scmp.ne.s32.totalorder %s88, %s89
    %p100 = scmp.eq.s32.totalorder %s14, 0
    %p101 = por %p99, %p100
    %p102 = scmp.ne.s32.totalorder %s88, %s89
    %p103 = scmp.eq.s32.totalorder %s15, 1
    %p104 = por %p102, %p103
    %p106 = scmp.ne.s32.totalorder %s89, %s105
    %p107 = scmp.eq.s32.totalorder %s15, 0
    %p108 = por %p106, %p107
    %s109 = ssub.s32 %s16, %s28
    %s110 = ssub.s32 %s17, %s24
    %s111 = sor.u32 %s109, %s110
    %p112 = scmp.eq.s32.totalorder %s111, 0
    %s114 = sadd.s32 %s113, 1
    %s115 = scalar_select %p112, %s113, %s114
    %p118 = pneg %p112
    %p119 = scmp.eq.s32.totalorder %s9, 1
    %p120 = por %p118, %p119
    %p121 = scmp.ne.s32.totalorder %s113, %s116
    %p122 = scmp.eq.s32.totalorder %s9, 0
    %p123 = por %p121, %p122
    %p124 = scmp.ne.s32.totalorder %s113, %s116
    %p125 = scmp.eq.s32.totalorder %s14, 1
    %p126 = por %p124, %p125
    %p127 = scmp.ne.s32.totalorder %s116, %s117
    %p128 = scmp.eq.s32.totalorder %s14, 0
    %p129 = por %p127, %p128
    %p130 = scmp.ne.s32.totalorder %s116, %s117
    %p131 = scmp.eq.s32.totalorder %s15, 1
    %p132 = por %p130, %p131
    %p134 = scmp.ne.s32.totalorder %s117, %s133
    %p135 = scmp.eq.s32.totalorder %s15, 0
    %p136 = por %p134, %p135
    %p137 = scmp.le.s32.totalorder 1, %s9
    %p138 = scmp.lt.s32.totalorder %s9, 3
    %p139 = pnand %p137, %p138
    %p140 = pneg %p139
    // Predicated region
    $region9: #{_lambda_.13} parent=5 // pred_check
      _
    $region10: #{_lambda_.13} parent=5 // pred_check_branch
      %142 = sbr.rel (%p139) target = $region12
    $region11: #{_lambda_.13} parent=5 // pred_region
      %s143 = ssub.s32 %s9, 1
    $region12: #{_lambda_.13} parent=5 // pred_fallthru
      _
    %p144 = scmp.lt.s32.totalorder %s9, 2
    // Predicated region
    $region13: #{_lambda_.13} parent=5 // pred_check
      %p145 = pneg %p144
    $region14: #{_lambda_.13} parent=5 // pred_check_branch
      %147 = sbr.rel (%p145) target = $region16
    $region15: #{_lambda_.13} parent=5 // pred_region
      // Predicated region
      $region17: #{_lambda_.13} parent=15 // pred_check
        %p148 = pneg %p43
      $region18: #{_lambda_.13} parent=15 // pred_check_branch
        %150 = sbr.rel (%p148) target = $region20
      $region19: #{_lambda_.13} parent=15 // pred_region
        %s151 = smul.u32 8, %s17
        %p152 = scmp.lt.s32.totalorder %s16, 1
        %s153 = scalar_select %p152, %s16, 1
        %p154 = scmp.lt.s32.totalorder %s151, 7
        %s155 = scalar_select %p154, %s151, 7
        %s156 = smul.addr %s153, 8
        %s157 = sadd.s32 %s155, %s156
        %s158 = smul.addr %s157, 4
        %s159 = scalar_lea.vmem %s0, %s158
        %s160 = smul.u32 8, %s17
      $region20: #{_lambda_.13} parent=15 // pred_fallthru
        _
      // Predicated region
      $region21: #{_lambda_.13} parent=15 // pred_check
        %p161 = pneg %p69
      $region22: #{_lambda_.13} parent=15 // pred_check_branch
        %163 = sbr.rel (%p161) target = $region24
      $region23: #{_lambda_.13} parent=15 // pred_region
        %p164 = scmp.lt.s32.totalorder %s16, 1
        %s165 = scalar_select %p164, %s16, 1
        %s166 = scalar_lea.vmem %s1, %s165
      $region24: #{_lambda_.13} parent=15 // pred_fallthru
        _
      // Predicated region
      $region25: #{_lambda_.13} parent=15 // pred_check
        %p167 = pneg %p95
      $region26: #{_lambda_.13} parent=15 // pred_check_branch
        %169 = sbr.rel (%p167) target = $region28
      $region27: #{_lambda_.13} parent=15 // pred_region
        %p170 = scmp.lt.s32.totalorder %s16, 1
        %s171 = scalar_select %p170, %s16, 1
        %s172 = scalar_lea.vmem %s2, %s171
      $region28: #{_lambda_.13} parent=15 // pred_fallthru
        _
    $region16: #{_lambda_.13} parent=5 // pred_fallthru
      _
    %p173 = scmp.le.s32.totalorder 1, %s9
    %p174 = scmp.lt.s32.totalorder %s9, 3
    %p175 = pnand %p173, %p174
    %p176 = pneg %p175
    // Predicated region
    $region29: #{_lambda_.13} parent=5 // pred_check
      _
    $region30: #{_lambda_.13} parent=5 // pred_check_branch
      %178 = sbr.rel (%p175) target = $region32
    $region31: #{_lambda_.13} parent=5 // pred_region
      %s179 = ssub.s32 %s9, 1
      %s180 = smul.u32 8, %s19
      %p181 = scmp.lt.s32.totalorder %s18, 1
      %s182 = scalar_select %p181, %s18, 1
      %p183 = scmp.lt.s32.totalorder %s180, 7
      %s184 = scalar_select %p183, %s180, 7
      %s185 = smul.addr %s182, 8
      %s186 = sadd.s32 %s184, %s185
      %s187 = smul.addr %s186, 4
      %s188 = scalar_lea.vmem %s0, %s187
      %p189 = pneg %p49
      %p190 = pneg %p46
      %p191 = scmp.lt.s32.totalorder %s18, 1
      %s192 = scalar_select %p191, %s18, 1
      %s193 = scalar_lea.vmem %s1, %s192
      %p194 = pneg %p75
      %p195 = pneg %p72
      %p196 = scmp.lt.s32.totalorder %s18, 1
      %s197 = scalar_select %p196, %s18, 1
      %s198 = scalar_lea.vmem %s2, %s197
      %p199 = pneg %p101
      %p200 = pneg %p98
      %p201 = pneg %p129
      %p202 = pneg %p126
      %s203 = smul.u32 8, %s19
      %p204 = scmp.lt.s32.totalorder %s18, 1
      %s205 = scalar_select %p204, %s18, 1
      %p206 = scmp.lt.s32.totalorder %s203, 7
      %s207 = scalar_select %p206, %s203, 7
      %s208 = smul.addr %s205, 8
      %s209 = sadd.s32 %s207, %s208
      %s210 = smul.addr %s209, 4
      %s211 = scalar_lea.vmem %s3, %s210
      %s212 = smul.u32 8, %s19
      %p213 = scmp.lt.s32.totalorder %s18, 1
      %s214 = scalar_select %p213, %s18, 1
      %p215 = scmp.lt.s32.totalorder %s212, 7
      %s216 = scalar_select %p215, %s212, 7
      %s217 = smul.addr %s214, 8
      %s218 = sadd.s32 %s216, %s217
      %s219 = smul.addr %s218, 4
      %s220 = scalar_lea.vmem %s0, %s219
      %s221 = smul.u32 8, %s19
      %p222 = scmp.lt.s32.totalorder %s18, 1
      %s223 = scalar_select %p222, %s18, 1
      %s224 = scalar_lea.vmem %s1, %s223
      %p225 = scmp.lt.s32.totalorder %s18, 1
      %s226 = scalar_select %p225, %s18, 1
      %s227 = scalar_lea.vmem %s2, %s226
      %s228 = smul.u32 8, %s19
      %p229 = scmp.lt.s32.totalorder %s18, 1
      %s230 = scalar_select %p229, %s18, 1
      %p231 = scmp.lt.s32.totalorder %s228, 7
      %s232 = scalar_select %p231, %s228, 7
      %s233 = smul.addr %s230, 8
      %s234 = sadd.s32 %s232, %s233
      %s235 = smul.addr %s234, 4
      %s236 = scalar_lea.vmem %s3, %s235
      %s237 = smul.u32 8, %s19
      %v238 = vld [vmem:[%s220] sm:$0xf]
      %v239 = vld [vmem:[%s220 + $0x4] sm:$0xf]
      %v240 = vld [vmem:[%s220 + $0x8] sm:$0xf]
      %v241 = vld [vmem:[%s220 + $0xc] sm:$0xf]
      %v242 = vld [vmem:[%s220 + $0x10] sm:$0xf]
      %v243 = vld [vmem:[%s220 + $0x14] sm:$0xf]
      %v244 = vld [vmem:[%s220 + $0x18] sm:$0xf]
      %v245 = vld [vmem:[%s220 + $0x1c] sm:$0xf]
      %v246 = vunpack.c.l.bf16 %v238
      %v247 = vunpack.c.l.bf16 %v239
      %v248 = vunpack.c.l.bf16 %v240
      %v249 = vunpack.c.l.bf16 %v241
      %v250 = vunpack.c.l.bf16 %v242
      %v251 = vunpack.c.l.bf16 %v243
      %v252 = vunpack.c.l.bf16 %v244
      %v253 = vunpack.c.l.bf16 %v245
      %v254 = vld [vmem:[%s224] sm:$0x1]
      %v256 = vlaneseq
      %v257 = vshrl.u32 %v256, 7
      %v258 = vsub.s32 0, %v257
      %v259 = vrot.slane %v254, %v258
      %v261 = vmul.f32 %v246, %v259
      %v262 = vmul.f32 %v247, %v259
      %v263 = vmul.f32 %v248, %v259
      %v264 = vmul.f32 %v249, %v259
      %v265 = vmul.f32 %v250, %v259
      %v266 = vmul.f32 %v251, %v259
      %v267 = vmul.f32 %v252, %v259
      %v268 = vmul.f32 %v253, %v259
      %v269 = vld [vmem:[%s227] sm:$0x1]
      %v271 = vlaneseq
      %v272 = vshrl.u32 %v271, 7
      %v273 = vsub.s32 0, %v272
      %v274 = vrot.slane %v269, %v273
      %v276 = vadd.f32 %v261, %v274
      %v277 = vadd.f32 %v262, %v274
      %v278 = vadd.f32 %v263, %v274
      %v279 = vadd.f32 %v264, %v274
      %v280 = vadd.f32 %v265, %v274
      %v281 = vadd.f32 %v266, %v274
      %v282 = vadd.f32 %v267, %v274
      %v283 = vadd.f32 %v268, %v274
      %v284 = vsub.f32 0.0, %v276
      %v285 = vsub.f32 0.0, %v277
      %v286 = vsub.f32 0.0, %v278
      %v287 = vsub.f32 0.0, %v279
      %v288 = vsub.f32 0.0, %v280
      %v289 = vsub.f32 0.0, %v281
      %v290 = vsub.f32 0.0, %v282
      %v291 = vsub.f32 0.0, %v283
      %v292 = vmul.f32 %v284, 1.442695
      %v293 = vpow.pop %v292
      %v294 = vmul.f32 %v285, 1.442695
      %v295 = vpow.pop %v294
      %v296 = vmul.f32 %v286, 1.442695
      %v297 = vpow.pop %v296
      %v298 = vmul.f32 %v287, 1.442695
      %v299 = vpow.pop %v298
      %v300 = vmul.f32 %v288, 1.442695
      %v301 = vpow.pop %v300
      %v302 = vmul.f32 %v289, 1.442695
      %v303 = vpow.pop %v302
      %v304 = vmul.f32 %v290, 1.442695
      %v305 = vpow.pop %v304
      %v306 = vmul.f32 %v291, 1.442695
      %v307 = vpow.pop %v306
      %v308 = vadd.f32 %v293, 1.0
      %v309 = vadd.f32 %v295, 1.0
      %v310 = vadd.f32 %v297, 1.0
      %v311 = vadd.f32 %v299, 1.0
      %v312 = vadd.f32 %v301, 1.0
      %v313 = vadd.f32 %v303, 1.0
      %v314 = vadd.f32 %v305, 1.0
      %v315 = vadd.f32 %v307, 1.0
      %v316 = vrcp.pop %v308
      %v317 = vrcp.pop %v309
      %v318 = vrcp.pop %v310
      %v319 = vrcp.pop %v311
      %v320 = vrcp.pop %v312
      %v321 = vrcp.pop %v313
      %v322 = vrcp.pop %v314
      %v323 = vrcp.pop %v315
      %v324 = vmul.f32 %v276, %v316
      %v325 = vmul.f32 %v277, %v317
      %v326 = vmul.f32 %v278, %v318
      %v327 = vmul.f32 %v279, %v319
      %v328 = vmul.f32 %v280, %v320
      %v329 = vmul.f32 %v281, %v321
      %v330 = vmul.f32 %v282, %v322
      %v331 = vmul.f32 %v283, %v323
      %v332 = vpack.c.bf16 %v325, %v324
      %v333 = vpack.c.bf16 %v327, %v326
      %v334 = vpack.c.bf16 %v329, %v328
      %v335 = vpack.c.bf16 %v331, %v330
      %v340 = vunpack.c.l.b16 %v332
      %v341 = vunpack.c.h.b16 %v332
      %v342 = vunpack.c.l.b16 %v333
      %v343 = vunpack.c.h.b16 %v333
      %v344 = vunpack.c.l.b16 %v334
      %v345 = vunpack.c.h.b16 %v334
      %v346 = vunpack.c.l.b16 %v335
      %v347 = vunpack.c.h.b16 %v335
      %v348 = vpack.c.b16 %v340, %v340
      %v349 = vpack.c.b16 %v341, %v341
      %v350 = vpack.c.b16 %v342, %v342
      %v351 = vpack.c.b16 %v343, %v343
      %v352 = vpack.c.b16 %v344, %v344
      %v353 = vpack.c.b16 %v345, %v345
      %v354 = vpack.c.b16 %v346, %v346
      %v355 = vpack.c.b16 %v347, %v347
      %vm364 = vcmask 125952
      %365 = vst.msk [vmem:[%s236] sm:$0xf] %vm364, %v348
      %366 = vst.msk [vmem:[%s236 + $0x4] sm:$0xf] %vm364, %v349
      %367 = vst.msk [vmem:[%s236 + $0x8] sm:$0xf] %vm364, %v350
      %368 = vst.msk [vmem:[%s236 + $0xc] sm:$0xf] %vm364, %v351
      %369 = vst.msk [vmem:[%s236 + $0x10] sm:$0xf] %vm364, %v352
      %370 = vst.msk [vmem:[%s236 + $0x14] sm:$0xf] %vm364, %v353
      %371 = vst.msk [vmem:[%s236 + $0x18] sm:$0xf] %vm364, %v354
      %372 = vst.msk [vmem:[%s236 + $0x1c] sm:$0xf] %vm364, %v355
      %s373 = smul.u32 8, %s19
      %p374 = scmp.lt.s32.totalorder %s18, 1
      %s375 = scalar_select %p374, %s18, 1
      %p376 = scmp.lt.s32.totalorder %s373, 7
      %s377 = scalar_select %p376, %s373, 7
      %s378 = smul.addr %s375, 8
      %s379 = sadd.s32 %s377, %s378
      %s380 = smul.addr %s379, 4
      %s381 = scalar_lea.vmem %s3, %s380
      // Predicated region
      $region33: #{_lambda_.13} parent=31 // pred_check
        %p382 = pneg %p126
      $region34: #{_lambda_.13} parent=31 // pred_check_branch
        %384 = sbr.rel (%p382) target = $region36
      $region35: #{_lambda_.13} parent=31 // pred_region
        %s385 = smul.u32 8, %s19
      $region36: #{_lambda_.13} parent=31 // pred_fallthru
        _
    $region32: #{_lambda_.13} parent=5 // pred_fallthru
      _
    %p386 = scmp.le.s32.totalorder 2, %s9
    // Predicated region
    $region37: #{_lambda_.13} parent=5 // pred_check
      %p387 = pneg %p386
    $region38: #{_lambda_.13} parent=5 // pred_check_branch
      %389 = sbr.rel (%p387) target = $region40
    $region39: #{_lambda_.13} parent=5 // pred_region
      %s390 = ssub.s32 %s9, 2
      // Predicated region
      $region41: #{_lambda_.13} parent=39 // pred_check
        %p391 = pneg %p132
      $region42: #{_lambda_.13} parent=39 // pred_check_branch
        %393 = sbr.rel (%p391) target = $region44
      $region43: #{_lambda_.13} parent=39 // pred_region
        %s394 = smul.u32 8, %s21
        %p395 = scmp.lt.s32.totalorder %s20, 1
        %s396 = scalar_select %p395, %s20, 1
        %p397 = scmp.lt.s32.totalorder %s394, 7
        %s398 = scalar_select %p397, %s394, 7
        %s399 = smul.addr %s396, 8
        %s400 = sadd.s32 %s398, %s399
        %s401 = smul.addr %s400, 4
        %s402 = scalar_lea.vmem %s3, %s401
      $region44: #{_lambda_.13} parent=39 // pred_fallthru
        _
    $region40: #{_lambda_.13} parent=5 // pred_fallthru
      _
  $region6: #{_lambda_.13} parent=0 // loop_footer
    %s13 = sadd.s32 1, %s9
  $region7: #{_lambda_.13} parent=0 // loop_footer_branch
    %8 = sbr.rel target = $region3
  $region8: #{_lambda_.13} parent=0 // loop_exit
    _

// kernel: _lambda_.14
$region0: #{_lambda_.14}
  #allocation0 [shape = 'u32[]', space=smem, size = 0x4, offset = 0x4, fixed_abs, tag = 'smem constant byte address 0x4 - core index']
  #allocation1 [shape = 'u32[144,128]{1,0:T(1,128)}', space=vmem, size = 0x12000, scoped, tag = 'internal scratch']
  %s0 = inlined_call_operand.vmem [shape: bf16[128,432], index: 0, kind: input, shape index: {}]
  %s1 = inlined_call_operand.vmem [shape: bf16[432,128], index: 1, kind: input, shape index: {}]
  %s2 = inlined_call_operand.vmem [shape: f32[1,128], index: 2, kind: input, shape index: {}]
  %s3 = inlined_call_operand.vmem [shape: bf16[128,128], index: 3, kind: output, shape index: {}]
  %s4 = sld [smem:[#allocation0]]
  $region22: #{_lambda_.14} parent=0
    _
  %s6 = ssub.s32 1, %s4
  %s7 = scalar_select 0, %s6, %s4
  // Predicated region
  $region2: #{_lambda_.14} parent=0 // pred_check
    _
  $region3: #{_lambda_.14} parent=0 // pred_check_branch
    %9 = sbr.rel (0) target = $region5
  $region4: #{_lambda_.14} parent=0 // pred_region
    _
  $region5: #{_lambda_.14} parent=0 // pred_fallthru
    _
  // Predicated region
  $region6: #{_lambda_.14} parent=0 // pred_check
    _
  $region7: #{_lambda_.14} parent=0 // pred_check_branch
    %11 = sbr.rel (0) target = $region9
  $region8: #{_lambda_.14} parent=0 // pred_region
    _
  $region9: #{_lambda_.14} parent=0 // pred_fallthru
    _
  // Predicated region
  $region10: #{_lambda_.14} parent=0 // pred_check
    _
  $region11: #{_lambda_.14} parent=0 // pred_check_branch
    %13 = sbr.rel (0) target = $region13
  $region12: #{_lambda_.14} parent=0 // pred_region
    _
  $region13: #{_lambda_.14} parent=0 // pred_fallthru
    _
  %v15 = vld [vmem:[%s0] sm:$0xff]
  %v16 = vld [vmem:[%s0 + $0x8] sm:$0xff]
  %v17 = vld [vmem:[%s0 + $0x10] sm:$0xff]
  %v18 = vld [vmem:[%s0 + $0x18] sm:$0xff]
  %v19 = vld [vmem:[%s0 + $0x20] sm:$0xff]
  %v20 = vld [vmem:[%s0 + $0x28] sm:$0xff]
  %v21 = vld [vmem:[%s0 + $0x30] sm:$0xff]
  %v22 = vld [vmem:[%s0 + $0x38] sm:$0xff]
  %v23 = vld [vmem:[%s0 + $0x40] sm:$0xff]
  %v24 = vld [vmem:[%s0 + $0x48] sm:$0xff]
  %v25 = vld [vmem:[%s0 + $0x50] sm:$0xff]
  %v26 = vld [vmem:[%s0 + $0x58] sm:$0xff]
  %v27 = vld [vmem:[%s0 + $0x60] sm:$0xff]
  %v28 = vld [vmem:[%s0 + $0x68] sm:$0xff]
  %v29 = vld [vmem:[%s0 + $0x70] sm:$0xff]
  %v30 = vld [vmem:[%s0 + $0x78] sm:$0xff]
  %v31 = vld [vmem:[%s0 + $0x80] sm:$0xff]
  %v32 = vld [vmem:[%s0 + $0x88] sm:$0xff]
  %v33 = vld [vmem:[%s0 + $0x90] sm:$0xff]
  %v34 = vld [vmem:[%s0 + $0x98] sm:$0xff]
  %v35 = vld [vmem:[%s0 + $0xa0] sm:$0xff]
  %v36 = vld [vmem:[%s0 + $0xa8] sm:$0xff]
  %v37 = vld [vmem:[%s0 + $0xb0] sm:$0xff]
  %v38 = vld [vmem:[%s0 + $0xb8] sm:$0xff]
  %v39 = vld [vmem:[%s0 + $0xc0] sm:$0xff]
  %v40 = vld [vmem:[%s0 + $0xc8] sm:$0xff]
  %v41 = vld [vmem:[%s0 + $0xd0] sm:$0xff]
  %v42 = vld [vmem:[%s0 + $0xd8] sm:$0xff]
  %v43 = vld [vmem:[%s0 + $0xe0] sm:$0xff]
  %v44 = vld [vmem:[%s0 + $0xe8] sm:$0xff]
  %v45 = vld [vmem:[%s0 + $0xf0] sm:$0xff]
  %v46 = vld [vmem:[%s0 + $0xf8] sm:$0xff]
  %v47 = vld [vmem:[%s1] sm:$0xf]
  %v48 = vld [vmem:[%s1 + $0x4] sm:$0xf]
  %v49 = vld [vmem:[%s1 + $0x8] sm:$0xf]
  %v50 = vld [vmem:[%s1 + $0xc] sm:$0xf]
  %v51 = vld [vmem:[%s1 + $0x10] sm:$0xf]
  %v52 = vld [vmem:[%s1 + $0x14] sm:$0xf]
  %v53 = vld [vmem:[%s1 + $0x18] sm:$0xf]
  %v54 = vld [vmem:[%s1 + $0x1c] sm:$0xf]
  %v55 = vld [vmem:[%s1 + $0x20] sm:$0xf]
  %v56 = vld [vmem:[%s1 + $0x24] sm:$0xf]
  %v57 = vld [vmem:[%s1 + $0x28] sm:$0xf]
  %v58 = vld [vmem:[%s1 + $0x2c] sm:$0xf]
  %v59 = vld [vmem:[%s1 + $0x30] sm:$0xf]
  %v60 = vld [vmem:[%s1 + $0x34] sm:$0xf]
  %v61 = vld [vmem:[%s1 + $0x38] sm:$0xf]
  %v62 = vld [vmem:[%s1 + $0x3c] sm:$0xf]
  %v63 = vld [vmem:[%s1 + $0x40] sm:$0xf]
  %v64 = vld [vmem:[%s1 + $0x44] sm:$0xf]
  %v65 = vld [vmem:[%s1 + $0x48] sm:$0xf]
  %v66 = vld [vmem:[%s1 + $0x4c] sm:$0xf]
  %v67 = vld [vmem:[%s1 + $0x50] sm:$0xf]
  %v68 = vld [vmem:[%s1 + $0x54] sm:$0xf]
  %v69 = vld [vmem:[%s1 + $0x58] sm:$0xf]
  %v70 = vld [vmem:[%s1 + $0x5c] sm:$0xf]
  %v71 = vld [vmem:[%s1 + $0x60] sm:$0xf]
  %v72 = vld [vmem:[%s1 + $0x64] sm:$0xf]
  %v73 = vld [vmem:[%s1 + $0x68] sm:$0xf]
  %v74 = vld [vmem:[%s1 + $0x6c] sm:$0xf]
  %v75 = vld [vmem:[%s1 + $0x70] sm:$0xf]
  %v76 = vld [vmem:[%s1 + $0x74] sm:$0xf]
  %v77 = vld [vmem:[%s1 + $0x78] sm:$0xf]
  %v78 = vld [vmem:[%s1 + $0x7c] sm:$0xf]
  %v79 = vld [vmem:[%s1 + $0x80] sm:$0xf]
  %v80 = vld [vmem:[%s1 + $0x84] sm:$0xf]
  %v81 = vld [vmem:[%s1 + $0x88] sm:$0xf]
  %v82 = vld [vmem:[%s1 + $0x8c] sm:$0xf]
  %v83 = vld [vmem:[%s1 + $0x90] sm:$0xf]
  %v84 = vld [vmem:[%s1 + $0x94] sm:$0xf]
  %v85 = vld [vmem:[%s1 + $0x98] sm:$0xf]
  %v86 = vld [vmem:[%s1 + $0x9c] sm:$0xf]
  %v87 = vld [vmem:[%s1 + $0xa0] sm:$0xf]
  %v88 = vld [vmem:[%s1 + $0xa4] sm:$0xf]
  %v89 = vld [vmem:[%s1 + $0xa8] sm:$0xf]
  %v90 = vld [vmem:[%s1 + $0xac] sm:$0xf]
  %v91 = vld [vmem:[%s1 + $0xb0] sm:$0xf]
  %v92 = vld [vmem:[%s1 + $0xb4] sm:$0xf]
  %v93 = vld [vmem:[%s1 + $0xb8] sm:$0xf]
  %v94 = vld [vmem:[%s1 + $0xbc] sm:$0xf]
  %v95 = vld [vmem:[%s1 + $0xc0] sm:$0xf]
  %v96 = vld [vmem:[%s1 + $0xc4] sm:$0xf]
  %v97 = vld [vmem:[%s1 + $0xc8] sm:$0xf]
  %v98 = vld [vmem:[%s1 + $0xcc] sm:$0xf]
  %v99 = vld [vmem:[%s1 + $0xd0] sm:$0xf]
  %v100 = vld [vmem:[%s1 + $0xd4] sm:$0xf]
  %v101 = vld [vmem:[%s2] sm:$0x1]
  %v103 = vlaneseq
  %v104 = vshrl.u32 %v103, 7
  %v105 = vsub.s32 0, %v104
  %v106 = vrot.slane %v101, %v105
  %v140 = vunpack.c.l.b16 %v15
  %v141 = vunpack.c.h.b16 %v15
  %v142 = vunpack.c.l.b16 %v16
  %v143 = vunpack.c.h.b16 %v16
  %v144 = vunpack.c.l.b16 %v17
  %v145 = vunpack.c.h.b16 %v17
  %v146 = vunpack.c.l.b16 %v18
  %v147 = vunpack.c.h.b16 %v18
  %v148 = vunpack.c.l.b16 %v19
  %v149 = vunpack.c.h.b16 %v19
  %v150 = vunpack.c.l.b16 %v20
  %v151 = vunpack.c.h.b16 %v20
  %v152 = vunpack.c.l.b16 %v21
  %v153 = vunpack.c.h.b16 %v21
  %v154 = vunpack.c.l.b16 %v22
  %v155 = vunpack.c.h.b16 %v22
  %v156 = vunpack.c.l.b16 %v23
  %v157 = vunpack.c.h.b16 %v23
  %v158 = vunpack.c.l.b16 %v24
  %v159 = vunpack.c.h.b16 %v24
  %v160 = vunpack.c.l.b16 %v25
  %v161 = vunpack.c.h.b16 %v25
  %v162 = vunpack.c.l.b16 %v26
  %v163 = vunpack.c.h.b16 %v26
  %v164 = vunpack.c.l.b16 %v27
  %v165 = vunpack.c.h.b16 %v27
  %v166 = vunpack.c.l.b16 %v28
  %v167 = vunpack.c.h.b16 %v28
  %v168 = vunpack.c.l.b16 %v29
  %v169 = vunpack.c.h.b16 %v29
  %v170 = vunpack.c.l.b16 %v30
  %v171 = vunpack.c.h.b16 %v30
  %v172 = vunpack.c.l.b16 %v31
  %v173 = vunpack.c.h.b16 %v31
  %v174 = vunpack.c.l.b16 %v32
  %v175 = vunpack.c.h.b16 %v32
  %v176 = vunpack.c.l.b16 %v33
  %v177 = vunpack.c.h.b16 %v33
  %v178 = vunpack.c.l.b16 %v34
  %v179 = vunpack.c.h.b16 %v34
  %v180 = vunpack.c.l.b16 %v35
  %v181 = vunpack.c.h.b16 %v35
  %v182 = vunpack.c.l.b16 %v36
  %v183 = vunpack.c.h.b16 %v36
  %v184 = vunpack.c.l.b16 %v37
  %v185 = vunpack.c.h.b16 %v37
  %v186 = vunpack.c.l.b16 %v38
  %v187 = vunpack.c.h.b16 %v38
  %v188 = vunpack.c.l.b16 %v39
  %v189 = vunpack.c.h.b16 %v39
  %v190 = vunpack.c.l.b16 %v40
  %v191 = vunpack.c.h.b16 %v40
  %v192 = vunpack.c.l.b16 %v41
  %v193 = vunpack.c.h.b16 %v41
  %v194 = vunpack.c.l.b16 %v42
  %v195 = vunpack.c.h.b16 %v42
  %v196 = vunpack.c.l.b16 %v43
  %v197 = vunpack.c.h.b16 %v43
  %v198 = vunpack.c.l.b16 %v44
  %v199 = vunpack.c.h.b16 %v44
  %v200 = vunpack.c.l.b16 %v45
  %v201 = vunpack.c.h.b16 %v45
  %v202 = vunpack.c.l.b16 %v46
  %v203 = vunpack.c.h.b16 %v46
  %v204 = vpack.c.b16 %v144, %v140
  %v205 = vpack.c.b16 %v145, %v141
  %v206 = vpack.c.b16 %v146, %v142
  %v207 = vpack.c.b16 %v147, %v143
  %v208 = vpack.c.b16 %v152, %v148
  %v209 = vpack.c.b16 %v153, %v149
  %v210 = vpack.c.b16 %v154, %v150
  %v211 = vpack.c.b16 %v155, %v151
  %v212 = vpack.c.b16 %v160, %v156
  %v213 = vpack.c.b16 %v161, %v157
  %v214 = vpack.c.b16 %v162, %v158
  %v215 = vpack.c.b16 %v163, %v159
  %v216 = vpack.c.b16 %v168, %v164
  %v217 = vpack.c.b16 %v169, %v165
  %v218 = vpack.c.b16 %v170, %v166
  %v219 = vpack.c.b16 %v171, %v167
  %v220 = vpack.c.b16 %v176, %v172
  %v221 = vpack.c.b16 %v177, %v173
  %v222 = vpack.c.b16 %v178, %v174
  %v223 = vpack.c.b16 %v179, %v175
  %v224 = vpack.c.b16 %v184, %v180
  %v225 = vpack.c.b16 %v185, %v181
  %v226 = vpack.c.b16 %v186, %v182
  %v227 = vpack.c.b16 %v187, %v183
  %v228 = vpack.c.b16 %v192, %v188
  %v229 = vpack.c.b16 %v193, %v189
  %v230 = vpack.c.b16 %v194, %v190
  %v231 = vpack.c.b16 %v195, %v191
  %v232 = vpack.c.b16 %v200, %v196
  %v233 = vpack.c.b16 %v201, %v197
  %v234 = vpack.c.b16 %v202, %v198
  %v235 = vpack.c.b16 %v203, %v199
  %v314 = vunpack.c.l.b16 %v47
  %v315 = vunpack.c.l.b16 %v48
  %v316 = vunpack.c.l.b16 %v49
  %v317 = vunpack.c.l.b16 %v50
  %v318 = vunpack.c.l.b16 %v51
  %v319 = vunpack.c.l.b16 %v52
  %v320 = vunpack.c.l.b16 %v53
  %v321 = vunpack.c.l.b16 %v54
  %v322 = vunpack.c.l.b16 %v55
  %v323 = vunpack.c.l.b16 %v56
  %v324 = vunpack.c.l.b16 %v57
  %v325 = vunpack.c.l.b16 %v58
  %v326 = vunpack.c.l.b16 %v59
  %v327 = vunpack.c.l.b16 %v60
  %v328 = vunpack.c.l.b16 %v61
  %v329 = vunpack.c.l.b16 %v62
  %v330 = vunpack.c.l.b16 %v63
  %v331 = vunpack.c.l.b16 %v64
  %v332 = vunpack.c.l.b16 %v65
  %v333 = vunpack.c.l.b16 %v66
  %v334 = vunpack.c.l.b16 %v67
  %v335 = vunpack.c.l.b16 %v68
  %v336 = vunpack.c.l.b16 %v69
  %v337 = vunpack.c.l.b16 %v70
  %v338 = vunpack.c.l.b16 %v71
  %v339 = vunpack.c.l.b16 %v72
  %v340 = vunpack.c.l.b16 %v73
  %v341 = vunpack.c.l.b16 %v74
  %v342 = vunpack.c.l.b16 %v75
  %v343 = vunpack.c.l.b16 %v76
  %v344 = vunpack.c.l.b16 %v77
  %v345 = vunpack.c.l.b16 %v78
  %v346 = vunpack.c.l.b16 %v79
  %v347 = vunpack.c.l.b16 %v80
  %v348 = vunpack.c.l.b16 %v81
  %v349 = vunpack.c.l.b16 %v82
  %v350 = vunpack.c.l.b16 %v83
  %v351 = vunpack.c.l.b16 %v84
  %v352 = vunpack.c.l.b16 %v85
  %v353 = vunpack.c.l.b16 %v86
  %v354 = vunpack.c.l.b16 %v87
  %v355 = vunpack.c.l.b16 %v88
  %v356 = vunpack.c.l.b16 %v89
  %v357 = vunpack.c.l.b16 %v90
  %v358 = vunpack.c.l.b16 %v91
  %v359 = vunpack.c.l.b16 %v92
  %v360 = vunpack.c.l.b16 %v93
  %v361 = vunpack.c.l.b16 %v94
  %v362 = vunpack.c.l.b16 %v95
  %v363 = vunpack.c.l.b16 %v96
  %v364 = vunpack.c.l.b16 %v97
  %v365 = vunpack.c.l.b16 %v98
  %v366 = vunpack.c.l.b16 %v99
  %v367 = vunpack.c.l.b16 %v100
  %v368 = vpack.c.b16 %v315, %v314
  %v369 = vpack.c.b16 %v317, %v316
  %v370 = vpack.c.b16 %v319, %v318
  %v371 = vpack.c.b16 %v321, %v320
  %v372 = vpack.c.b16 %v323, %v322
  %v373 = vpack.c.b16 %v325, %v324
  %v374 = vpack.c.b16 %v327, %v326
  %v375 = vpack.c.b16 %v329, %v328
  %v376 = vpack.c.b16 %v331, %v330
  %v377 = vpack.c.b16 %v333, %v332
  %v378 = vpack.c.b16 %v335, %v334
  %v379 = vpack.c.b16 %v337, %v336
  %v380 = vpack.c.b16 %v339, %v338
  %v381 = vpack.c.b16 %v341, %v340
  %v382 = vpack.c.b16 %v343, %v342
  %v383 = vpack.c.b16 %v345, %v344
  %v384 = vpack.c.b16 %v347, %v346
  %v385 = vpack.c.b16 %v349, %v348
  %v386 = vpack.c.b16 %v351, %v350
  %v387 = vpack.c.b16 %v353, %v352
  %v388 = vpack.c.b16 %v355, %v354
  %v389 = vpack.c.b16 %v357, %v356
  %v390 = vpack.c.b16 %v359, %v358
  %v391 = vpack.c.b16 %v361, %v360
  %v392 = vpack.c.b16 %v363, %v362
  %v393 = vpack.c.b16 %v365, %v364
  %v394 = vpack.c.b16 %v367, %v366
  %vm422 = vcmask 392192
  %v424 = vsel %vm422, %v207, 0
  %v427 = vsel %vm422, %v211, 0
  %v430 = vsel %vm422, %v215, 0
  %v433 = vsel %vm422, %v219, 0
  %v436 = vsel %vm422, %v223, 0
  %v439 = vsel %vm422, %v227, 0
  %v442 = vsel %vm422, %v231, 0
  %v445 = vsel %vm422, %v235, 0
  %447 = vmatprep.subr.bf16.mxu0 0
  %448 = vmatpush1.bf16.msra.mxu0 %v368
  %449 = vmatprep.subr.bf16.mxu0 0
  %450 = vmatpush1.bf16.msra.mxu0 %v369
  %451 = vmatprep.subr.bf16.mxu0 0
  %452 = vmatpush1.bf16.msra.mxu0 %v370
  %453 = vmatprep.subr.bf16.mxu0 0
  %454 = vmatpush1.bf16.msra.mxu0 %v371
  %455 = vmatprep.subr.bf16.mxu0 0
  %456 = vmatpush1.bf16.msra.mxu0 %v372
  %457 = vmatprep.subr.bf16.mxu0 0
  %458 = vmatpush1.bf16.msra.mxu0 %v373
  %459 = vmatprep.subr.bf16.mxu0 0
  %460 = vmatpush1.bf16.msra.mxu0 %v374
  %461 = vmatprep.subr.bf16.mxu0 0
  %462 = vmatpush1.bf16.msra.mxu0 %v375
  %463 = vmatprep.subr.bf16.mxu0 0
  %464 = vmatpush1.bf16.msra.mxu0 %v376
  %465 = vmatprep.subr.bf16.mxu0 0
  %466 = vmatpush1.bf16.msra.mxu0 %v377
  %467 = vmatprep.subr.bf16.mxu0 0
  %468 = vmatpush1.bf16.msra.mxu0 %v378
  %469 = vmatprep.subr.bf16.mxu0 0
  %470 = vmatpush1.bf16.msra.mxu0 %v379
  %471 = vmatprep.subr.bf16.mxu0 0
  %472 = vmatpush1.bf16.msra.mxu0 %v380
  %473 = vmatprep.subr.bf16.mxu0 0
  %474 = vmatpush1.bf16.msra.mxu0 %v381
  %475 = vmatprep.subr.bf16.mxu0 0
  %476 = vmatpush1.bf16.msra.mxu0 %v382
  %477 = vmatprep.subr.bf16.mxu0 0
  %478 = vmatpush1.bf16.msra.mxu0 %v383
  %479 = vmatprep.mubr.bf16.mxu0 %v205
  %480 = vmatmul.mubr.bf16.gmra.mrb[0].mxu0 %v204
  %v481 = vpop.f32.mrb[0].mxu0
  %v482 = vadd.f32 %v106, %v481
  %v483 = vpop.f32.mrb[0].mxu0
  %v484 = vpop.f32.mrb[0].mxu0
  %v485 = vadd.f32 %v106, %v484
  %v486 = vpop.f32.mrb[0].mxu0
  %487 = vmatprep.mubr.bf16.mxu0 %v209
  %488 = vmatmul.mubr.bf16.gmra.mrb[0].mxu0 %v208
  %v489 = vpop.f32.mrb[0].mxu0
  %v490 = vadd.f32 %v106, %v489
  %v491 = vpop.f32.mrb[0].mxu0
  %v492 = vpop.f32.mrb[0].mxu0
  %v493 = vadd.f32 %v106, %v492
  %v494 = vpop.f32.mrb[0].mxu0
  %495 = vmatprep.mubr.bf16.mxu0 %v213
  %496 = vmatmul.mubr.bf16.gmra.mrb[0].mxu0 %v212
  %v497 = vpop.f32.mrb[0].mxu0
  %v498 = vadd.f32 %v106, %v497
  %v499 = vpop.f32.mrb[0].mxu0
  %v500 = vpop.f32.mrb[0].mxu0
  %v501 = vadd.f32 %v106, %v500
  %v502 = vpop.f32.mrb[0].mxu0
  %503 = vmatprep.mubr.bf16.mxu0 %v217
  %504 = vmatmul.mubr.bf16.gmra.mrb[0].mxu0 %v216
  %v505 = vpop.f32.mrb[0].mxu0
  %v506 = vadd.f32 %v106, %v505
  %v507 = vpop.f32.mrb[0].mxu0
  %v508 = vpop.f32.mrb[0].mxu0
  %v509 = vadd.f32 %v106, %v508
  %v510 = vpop.f32.mrb[0].mxu0
  %511 = vmatprep.mubr.bf16.mxu0 %v221
  %512 = vmatmul.mubr.bf16.gmra.mrb[0].mxu0 %v220
  %v513 = vpop.f32.mrb[0].mxu0
  %v514 = vadd.f32 %v106, %v513
  %v515 = vpop.f32.mrb[0].mxu0
  %v516 = vpop.f32.mrb[0].mxu0
  %v517 = vadd.f32 %v106, %v516
  %v518 = vpop.f32.mrb[0].mxu0
  %519 = vmatprep.mubr.bf16.mxu0 %v225
  %520 = vmatmul.mubr.bf16.gmra.mrb[0].mxu0 %v224
  %v521 = vpop.f32.mrb[0].mxu0
  %v522 = vadd.f32 %v106, %v521
  %v523 = vpop.f32.mrb[0].mxu0
  %v524 = vpop.f32.mrb[0].mxu0
  %v525 = vadd.f32 %v106, %v524
  %v526 = vpop.f32.mrb[0].mxu0
  %527 = vmatprep.mubr.bf16.mxu0 %v229
  %528 = vmatmul.mubr.bf16.gmra.mrb[0].mxu0 %v228
  %v529 = vpop.f32.mrb[0].mxu0
  %v530 = vadd.f32 %v106, %v529
  %v531 = vpop.f32.mrb[0].mxu0
  %v532 = vpop.f32.mrb[0].mxu0
  %v533 = vadd.f32 %v106, %v532
  %v534 = vpop.f32.mrb[0].mxu0
  %535 = vmatprep.mubr.bf16.mxu0 %v233
  %536 = vmatmul.mubr.bf16.gmra.mrb[0].mxu0 %v232
  %v537 = vpop.f32.mrb[0].mxu0
  %v538 = vadd.f32 %v106, %v537
  %v539 = vpop.f32.mrb[0].mxu0
  %v540 = vpop.f32.mrb[0].mxu0
  %v541 = vadd.f32 %v106, %v540
  %v542 = vpop.f32.mrb[0].mxu0
  %543 = vdwg.mxu0
  %544 = vmatprep.subr.bf16.mxu0 0
  %545 = vmatpush1.bf16.msra.mxu0 %v384
  %546 = vmatprep.subr.bf16.mxu0 0
  %547 = vmatpush1.bf16.msra.mxu0 %v385
  %548 = vmatprep.subr.bf16.mxu0 0
  %549 = vmatpush1.bf16.msra.mxu0 %v386
  %550 = vmatprep.subr.bf16.mxu0 0
  %551 = vmatpush1.bf16.msra.mxu0 %v387
  %552 = vmatprep.subr.bf16.mxu0 0
  %553 = vmatpush1.bf16.msra.mxu0 %v388
  %554 = vmatprep.subr.bf16.mxu0 0
  %555 = vmatpush1.bf16.msra.mxu0 %v389
  %556 = vmatprep.subr.bf16.mxu0 0
  %557 = vmatpush1.bf16.msra.mxu0 %v390
  %558 = vmatprep.subr.bf16.mxu0 0
  %559 = vmatpush1.bf16.msra.mxu0 %v391
  %560 = vmatprep.subr.bf16.mxu0 0
  %561 = vmatpush1.bf16.msra.mxu0 %v392
  %562 = vmatprep.subr.bf16.mxu0 0
  %563 = vmatpush1.bf16.msra.mxu0 %v393
  %564 = vmatprep.subr.bf16.mxu0 0
  %565 = vmatpush1.bf16.msra.mxu0 %v394
  %566 = vmatprep.subr.bf16.mxu0 0
  %567 = vmatpush1.bf16.msra.mxu0 0
  %568 = vmatprep.subr.bf16.mxu0 0
  %569 = vmatpush1.bf16.msra.mxu0 0
  %570 = vmatprep.subr.bf16.mxu0 0
  %571 = vmatpush1.bf16.msra.mxu0 0
  %572 = vmatprep.subr.bf16.mxu0 0
  %573 = vmatpush1.bf16.msra.mxu0 0
  %574 = vmatprep.subr.bf16.mxu0 0
  %575 = vmatpush1.bf16.msra.mxu0 0
  %576 = vmatprep.mubr.bf16.mxu0 %v424
  %577 = vmatmul.mubr.bf16.gmra.mrb[0].mxu0 %v206
  %v578 = vpop.f32.mrb[0].mxu0
  %v579 = vadd.f32 %v482, %v578
  %v580 = vpop.f32.mrb[0].mxu0
  %v581 = vpop.f32.mrb[0].mxu0
  %v582 = vadd.f32 %v485, %v581
  %v583 = vpop.f32.mrb[0].mxu0
  %584 = vmatprep.mubr.bf16.mxu0 %v427
  %585 = vmatmul.mubr.bf16.gmra.mrb[0].mxu0 %v210
  %v586 = vpop.f32.mrb[0].mxu0
  %v587 = vadd.f32 %v490, %v586
  %v588 = vpop.f32.mrb[0].mxu0
  %v589 = vpop.f32.mrb[0].mxu0
  %v590 = vadd.f32 %v493, %v589
  %v591 = vpop.f32.mrb[0].mxu0
  %592 = vmatprep.mubr.bf16.mxu0 %v430
  %593 = vmatmul.mubr.bf16.gmra.mrb[0].mxu0 %v214
  %v594 = vpop.f32.mrb[0].mxu0
  %v595 = vadd.f32 %v498, %v594
  %v596 = vpop.f32.mrb[0].mxu0
  %v597 = vpop.f32.mrb[0].mxu0
  %v598 = vadd.f32 %v501, %v597
  %v599 = vpop.f32.mrb[0].mxu0
  %600 = vmatprep.mubr.bf16.mxu0 %v433
  %601 = vmatmul.mubr.bf16.gmra.mrb[0].mxu0 %v218
  %v602 = vpop.f32.mrb[0].mxu0
  %v603 = vadd.f32 %v506, %v602
  %v604 = vpop.f32.mrb[0].mxu0
  %v605 = vpop.f32.mrb[0].mxu0
  %v606 = vadd.f32 %v509, %v605
  %v607 = vpop.f32.mrb[0].mxu0
  %608 = vmatprep.mubr.bf16.mxu0 %v436
  %609 = vmatmul.mubr.bf16.gmra.mrb[0].mxu0 %v222
  %v610 = vpop.f32.mrb[0].mxu0
  %v611 = vadd.f32 %v514, %v610
  %v612 = vpop.f32.mrb[0].mxu0
  %v613 = vpop.f32.mrb[0].mxu0
  %v614 = vadd.f32 %v517, %v613
  %v615 = vpop.f32.mrb[0].mxu0
  %616 = vmatprep.mubr.bf16.mxu0 %v439
  %617 = vmatmul.mubr.bf16.gmra.mrb[0].mxu0 %v226
  %v618 = vpop.f32.mrb[0].mxu0
  %v619 = vadd.f32 %v522, %v618
  %v620 = vpop.f32.mrb[0].mxu0
  %v621 = vpop.f32.mrb[0].mxu0
  %v622 = vadd.f32 %v525, %v621
  %v623 = vpop.f32.mrb[0].mxu0
  %624 = vmatprep.mubr.bf16.mxu0 %v442
  %625 = vmatmul.mubr.bf16.gmra.mrb[0].mxu0 %v230
  %v626 = vpop.f32.mrb[0].mxu0
  %v627 = vadd.f32 %v530, %v626
  %v628 = vpop.f32.mrb[0].mxu0
  %v629 = vpop.f32.mrb[0].mxu0
  %v630 = vadd.f32 %v533, %v629
  %v631 = vpop.f32.mrb[0].mxu0
  %632 = vmatprep.mubr.bf16.mxu0 %v445
  %633 = vmatmul.mubr.bf16.gmra.mrb[0].mxu0 %v234
  %v634 = vpop.f32.mrb[0].mxu0
  %v635 = vadd.f32 %v538, %v634
  %v636 = vpop.f32.mrb[0].mxu0
  %v637 = vpop.f32.mrb[0].mxu0
  %v638 = vadd.f32 %v541, %v637
  %v639 = vpop.f32.mrb[0].mxu0
  %640 = vdwg.mxu0
  %v641 = vpack.c.bf16 %v582, %v579
  %v642 = vpack.c.bf16 %v590, %v587
  %v643 = vpack.c.bf16 %v598, %v595
  %v644 = vpack.c.bf16 %v606, %v603
  %v645 = vpack.c.bf16 %v614, %v611
  %v646 = vpack.c.bf16 %v622, %v619
  %v647 = vpack.c.bf16 %v630, %v627
  %v648 = vpack.c.bf16 %v638, %v635
  %v657 = vunpack.c.l.b16 %v641
  %v658 = vunpack.c.h.b16 %v641
  %v659 = vunpack.c.l.b16 %v642
  %v660 = vunpack.c.h.b16 %v642
  %v661 = vunpack.c.l.b16 %v643
  %v662 = vunpack.c.h.b16 %v643
  %v663 = vunpack.c.l.b16 %v644
  %v664 = vunpack.c.h.b16 %v644
  %v665 = vunpack.c.l.b16 %v645
  %v666 = vunpack.c.h.b16 %v645
  %v667 = vunpack.c.l.b16 %v646
  %v668 = vunpack.c.h.b16 %v646
  %v669 = vunpack.c.l.b16 %v647
  %v670 = vunpack.c.h.b16 %v647
  %v671 = vunpack.c.l.b16 %v648
  %v672 = vunpack.c.h.b16 %v648
  %v673 = vpack.c.b16 %v657, %v657
  %v674 = vpack.c.b16 %v658, %v658
  %v675 = vpack.c.b16 %v659, %v659
  %v676 = vpack.c.b16 %v660, %v660
  %v677 = vpack.c.b16 %v661, %v661
  %v678 = vpack.c.b16 %v662, %v662
  %v679 = vpack.c.b16 %v663, %v663
  %v680 = vpack.c.b16 %v664, %v664
  %v681 = vpack.c.b16 %v665, %v665
  %v682 = vpack.c.b16 %v666, %v666
  %v683 = vpack.c.b16 %v667, %v667
  %v684 = vpack.c.b16 %v668, %v668
  %v685 = vpack.c.b16 %v669, %v669
  %v686 = vpack.c.b16 %v670, %v670
  %v687 = vpack.c.b16 %v671, %v671
  %v688 = vpack.c.b16 %v672, %v672
  %705 = vst [vmem:[%s3] sm:$0xf] %v673
  %706 = vst [vmem:[%s3 + $0x4] sm:$0xf] %v674
  %707 = vst [vmem:[%s3 + $0x8] sm:$0xf] %v675
  %708 = vst [vmem:[%s3 + $0xc] sm:$0xf] %v676
  %709 = vst [vmem:[%s3 + $0x10] sm:$0xf] %v677
  %710 = vst [vmem:[%s3 + $0x14] sm:$0xf] %v678
  %711 = vst [vmem:[%s3 + $0x18] sm:$0xf] %v679
  %712 = vst [vmem:[%s3 + $0x1c] sm:$0xf] %v680
  %713 = vst [vmem:[%s3 + $0x20] sm:$0xf] %v681
  %714 = vst [vmem:[%s3 + $0x24] sm:$0xf] %v682
  %715 = vst [vmem:[%s3 + $0x28] sm:$0xf] %v683
  %716 = vst [vmem:[%s3 + $0x2c] sm:$0xf] %v684
  %717 = vst [vmem:[%s3 + $0x30] sm:$0xf] %v685
  %718 = vst [vmem:[%s3 + $0x34] sm:$0xf] %v686
  %719 = vst [vmem:[%s3 + $0x38] sm:$0xf] %v687
  %720 = vst [vmem:[%s3 + $0x3c] sm:$0xf] %v688
  // Predicated region
  $region14: #{_lambda_.14} parent=0 // pred_check
    _
  $region15: #{_lambda_.14} parent=0 // pred_check_branch
    %722 = sbr.rel (0) target = $region17
  $region16: #{_lambda_.14} parent=0 // pred_region
    _
  $region17: #{_lambda_.14} parent=0 // pred_fallthru
    _
  // Predicated region
  $region18: #{_lambda_.14} parent=0 // pred_check
    _
  $region19: #{_lambda_.14} parent=0 // pred_check_branch
    %724 = sbr.rel (0) target = $region21
  $region20: #{_lambda_.14} parent=0 // pred_region
    _
  $region21: #{_lambda_.14} parent=0 // pred_fallthru
    _

// kernel: _lambda_.17
$region0: #{_lambda_.17}
  #allocation0 [shape = 'u32[]', space=smem, size = 0x4, offset = 0x4, fixed_abs, tag = 'smem constant byte address 0x4 - core index']
  #allocation1 [shape = 'u32[144,128]{1,0:T(1,128)}', space=vmem, size = 0x12000, scoped, tag = 'internal scratch']
  %s0 = inlined_call_operand.vmem [shape: bf16[128,432], index: 0, kind: input, shape index: {}]
  %s1 = inlined_call_operand.vmem [shape: bf16[432,128], index: 1, kind: input, shape index: {}]
  %s2 = inlined_call_operand.vmem [shape: f32[1,128], index: 2, kind: input, shape index: {}]
  %s3 = inlined_call_operand.vmem [shape: bf16[128,128], index: 3, kind: input, shape index: {}]
  %s4 = inlined_call_operand.vmem [shape: bf16[128,128], index: 4, kind: output, shape index: {}]
  %s5 = sld [smem:[#allocation0]]
  $region26: #{_lambda_.17} parent=0
    _
  %s7 = ssub.s32 1, %s5
  %s8 = scalar_select 0, %s7, %s5
  // Predicated region
  $region2: #{_lambda_.17} parent=0 // pred_check
    _
  $region3: #{_lambda_.17} parent=0 // pred_check_branch
    %10 = sbr.rel (0) target = $region5
  $region4: #{_lambda_.17} parent=0 // pred_region
    _
  $region5: #{_lambda_.17} parent=0 // pred_fallthru
    _
  // Predicated region
  $region6: #{_lambda_.17} parent=0 // pred_check
    _
  $region7: #{_lambda_.17} parent=0 // pred_check_branch
    %12 = sbr.rel (0) target = $region9
  $region8: #{_lambda_.17} parent=0 // pred_region
    _
  $region9: #{_lambda_.17} parent=0 // pred_fallthru
    _
  // Predicated region
  $region10: #{_lambda_.17} parent=0 // pred_check
    _
  $region11: #{_lambda_.17} parent=0 // pred_check_branch
    %14 = sbr.rel (0) target = $region13
  $region12: #{_lambda_.17} parent=0 // pred_region
    _
  $region13: #{_lambda_.17} parent=0 // pred_fallthru
    _
  // Predicated region
  $region14: #{_lambda_.17} parent=0 // pred_check
    _
  $region15: #{_lambda_.17} parent=0 // pred_check_branch
    %16 = sbr.rel (0) target = $region17
  $region16: #{_lambda_.17} parent=0 // pred_region
    _
  $region17: #{_lambda_.17} parent=0 // pred_fallthru
    _
  %v18 = vld [vmem:[%s0] sm:$0xff]
  %v19 = vld [vmem:[%s0 + $0x8] sm:$0xff]
  %v20 = vld [vmem:[%s0 + $0x10] sm:$0xff]
  %v21 = vld [vmem:[%s0 + $0x18] sm:$0xff]
  %v22 = vld [vmem:[%s0 + $0x20] sm:$0xff]
  %v23 = vld [vmem:[%s0 + $0x28] sm:$0xff]
  %v24 = vld [vmem:[%s0 + $0x30] sm:$0xff]
  %v25 = vld [vmem:[%s0 + $0x38] sm:$0xff]
  %v26 = vld [vmem:[%s0 + $0x40] sm:$0xff]
  %v27 = vld [vmem:[%s0 + $0x48] sm:$0xff]
  %v28 = vld [vmem:[%s0 + $0x50] sm:$0xff]
  %v29 = vld [vmem:[%s0 + $0x58] sm:$0xff]
  %v30 = vld [vmem:[%s0 + $0x60] sm:$0xff]
  %v31 = vld [vmem:[%s0 + $0x68] sm:$0xff]
  %v32 = vld [vmem:[%s0 + $0x70] sm:$0xff]
  %v33 = vld [vmem:[%s0 + $0x78] sm:$0xff]
  %v34 = vld [vmem:[%s0 + $0x80] sm:$0xff]
  %v35 = vld [vmem:[%s0 + $0x88] sm:$0xff]
  %v36 = vld [vmem:[%s0 + $0x90] sm:$0xff]
  %v37 = vld [vmem:[%s0 + $0x98] sm:$0xff]
  %v38 = vld [vmem:[%s0 + $0xa0] sm:$0xff]
  %v39 = vld [vmem:[%s0 + $0xa8] sm:$0xff]
  %v40 = vld [vmem:[%s0 + $0xb0] sm:$0xff]
  %v41 = vld [vmem:[%s0 + $0xb8] sm:$0xff]
  %v42 = vld [vmem:[%s0 + $0xc0] sm:$0xff]
  %v43 = vld [vmem:[%s0 + $0xc8] sm:$0xff]
  %v44 = vld [vmem:[%s0 + $0xd0] sm:$0xff]
  %v45 = vld [vmem:[%s0 + $0xd8] sm:$0xff]
  %v46 = vld [vmem:[%s0 + $0xe0] sm:$0xff]
  %v47 = vld [vmem:[%s0 + $0xe8] sm:$0xff]
  %v48 = vld [vmem:[%s0 + $0xf0] sm:$0xff]
  %v49 = vld [vmem:[%s0 + $0xf8] sm:$0xff]
  %v50 = vld [vmem:[%s1] sm:$0xf]
  %v51 = vld [vmem:[%s1 + $0x4] sm:$0xf]
  %v52 = vld [vmem:[%s1 + $0x8] sm:$0xf]
  %v53 = vld [vmem:[%s1 + $0xc] sm:$0xf]
  %v54 = vld [vmem:[%s1 + $0x10] sm:$0xf]
  %v55 = vld [vmem:[%s1 + $0x14] sm:$0xf]
  %v56 = vld [vmem:[%s1 + $0x18] sm:$0xf]
  %v57 = vld [vmem:[%s1 + $0x1c] sm:$0xf]
  %v58 = vld [vmem:[%s1 + $0x20] sm:$0xf]
  %v59 = vld [vmem:[%s1 + $0x24] sm:$0xf]
  %v60 = vld [vmem:[%s1 + $0x28] sm:$0xf]
  %v61 = vld [vmem:[%s1 + $0x2c] sm:$0xf]
  %v62 = vld [vmem:[%s1 + $0x30] sm:$0xf]
  %v63 = vld [vmem:[%s1 + $0x34] sm:$0xf]
  %v64 = vld [vmem:[%s1 + $0x38] sm:$0xf]
  %v65 = vld [vmem:[%s1 + $0x3c] sm:$0xf]
  %v66 = vld [vmem:[%s1 + $0x40] sm:$0xf]
  %v67 = vld [vmem:[%s1 + $0x44] sm:$0xf]
  %v68 = vld [vmem:[%s1 + $0x48] sm:$0xf]
  %v69 = vld [vmem:[%s1 + $0x4c] sm:$0xf]
  %v70 = vld [vmem:[%s1 + $0x50] sm:$0xf]
  %v71 = vld [vmem:[%s1 + $0x54] sm:$0xf]
  %v72 = vld [vmem:[%s1 + $0x58] sm:$0xf]
  %v73 = vld [vmem:[%s1 + $0x5c] sm:$0xf]
  %v74 = vld [vmem:[%s1 + $0x60] sm:$0xf]
  %v75 = vld [vmem:[%s1 + $0x64] sm:$0xf]
  %v76 = vld [vmem:[%s1 + $0x68] sm:$0xf]
  %v77 = vld [vmem:[%s1 + $0x6c] sm:$0xf]
  %v78 = vld [vmem:[%s1 + $0x70] sm:$0xf]
  %v79 = vld [vmem:[%s1 + $0x74] sm:$0xf]
  %v80 = vld [vmem:[%s1 + $0x78] sm:$0xf]
  %v81 = vld [vmem:[%s1 + $0x7c] sm:$0xf]
  %v82 = vld [vmem:[%s1 + $0x80] sm:$0xf]
  %v83 = vld [vmem:[%s1 + $0x84] sm:$0xf]
  %v84 = vld [vmem:[%s1 + $0x88] sm:$0xf]
  %v85 = vld [vmem:[%s1 + $0x8c] sm:$0xf]
  %v86 = vld [vmem:[%s1 + $0x90] sm:$0xf]
  %v87 = vld [vmem:[%s1 + $0x94] sm:$0xf]
  %v88 = vld [vmem:[%s1 + $0x98] sm:$0xf]
  %v89 = vld [vmem:[%s1 + $0x9c] sm:$0xf]
  %v90 = vld [vmem:[%s1 + $0xa0] sm:$0xf]
  %v91 = vld [vmem:[%s1 + $0xa4] sm:$0xf]
  %v92 = vld [vmem:[%s1 + $0xa8] sm:$0xf]
  %v93 = vld [vmem:[%s1 + $0xac] sm:$0xf]
  %v94 = vld [vmem:[%s1 + $0xb0] sm:$0xf]
  %v95 = vld [vmem:[%s1 + $0xb4] sm:$0xf]
  %v96 = vld [vmem:[%s1 + $0xb8] sm:$0xf]
  %v97 = vld [vmem:[%s1 + $0xbc] sm:$0xf]
  %v98 = vld [vmem:[%s1 + $0xc0] sm:$0xf]
  %v99 = vld [vmem:[%s1 + $0xc4] sm:$0xf]
  %v100 = vld [vmem:[%s1 + $0xc8] sm:$0xf]
  %v101 = vld [vmem:[%s1 + $0xcc] sm:$0xf]
  %v102 = vld [vmem:[%s1 + $0xd0] sm:$0xf]
  %v103 = vld [vmem:[%s1 + $0xd4] sm:$0xf]
  %v104 = vld [vmem:[%s2] sm:$0x1]
  %v106 = vlaneseq
  %v107 = vshrl.u32 %v106, 7
  %v108 = vsub.s32 0, %v107
  %v109 = vrot.slane %v104, %v108
  %v143 = vunpack.c.l.b16 %v18
  %v144 = vunpack.c.h.b16 %v18
  %v145 = vunpack.c.l.b16 %v19
  %v146 = vunpack.c.h.b16 %v19
  %v147 = vunpack.c.l.b16 %v20
  %v148 = vunpack.c.h.b16 %v20
  %v149 = vunpack.c.l.b16 %v21
  %v150 = vunpack.c.h.b16 %v21
  %v151 = vunpack.c.l.b16 %v22
  %v152 = vunpack.c.h.b16 %v22
  %v153 = vunpack.c.l.b16 %v23
  %v154 = vunpack.c.h.b16 %v23
  %v155 = vunpack.c.l.b16 %v24
  %v156 = vunpack.c.h.b16 %v24
  %v157 = vunpack.c.l.b16 %v25
  %v158 = vunpack.c.h.b16 %v25
  %v159 = vunpack.c.l.b16 %v26
  %v160 = vunpack.c.h.b16 %v26
  %v161 = vunpack.c.l.b16 %v27
  %v162 = vunpack.c.h.b16 %v27
  %v163 = vunpack.c.l.b16 %v28
  %v164 = vunpack.c.h.b16 %v28
  %v165 = vunpack.c.l.b16 %v29
  %v166 = vunpack.c.h.b16 %v29
  %v167 = vunpack.c.l.b16 %v30
  %v168 = vunpack.c.h.b16 %v30
  %v169 = vunpack.c.l.b16 %v31
  %v170 = vunpack.c.h.b16 %v31
  %v171 = vunpack.c.l.b16 %v32
  %v172 = vunpack.c.h.b16 %v32
  %v173 = vunpack.c.l.b16 %v33
  %v174 = vunpack.c.h.b16 %v33
  %v175 = vunpack.c.l.b16 %v34
  %v176 = vunpack.c.h.b16 %v34
  %v177 = vunpack.c.l.b16 %v35
  %v178 = vunpack.c.h.b16 %v35
  %v179 = vunpack.c.l.b16 %v36
  %v180 = vunpack.c.h.b16 %v36
  %v181 = vunpack.c.l.b16 %v37
  %v182 = vunpack.c.h.b16 %v37
  %v183 = vunpack.c.l.b16 %v38
  %v184 = vunpack.c.h.b16 %v38
  %v185 = vunpack.c.l.b16 %v39
  %v186 = vunpack.c.h.b16 %v39
  %v187 = vunpack.c.l.b16 %v40
  %v188 = vunpack.c.h.b16 %v40
  %v189 = vunpack.c.l.b16 %v41
  %v190 = vunpack.c.h.b16 %v41
  %v191 = vunpack.c.l.b16 %v42
  %v192 = vunpack.c.h.b16 %v42
  %v193 = vunpack.c.l.b16 %v43
  %v194 = vunpack.c.h.b16 %v43
  %v195 = vunpack.c.l.b16 %v44
  %v196 = vunpack.c.h.b16 %v44
  %v197 = vunpack.c.l.b16 %v45
  %v198 = vunpack.c.h.b16 %v45
  %v199 = vunpack.c.l.b16 %v46
  %v200 = vunpack.c.h.b16 %v46
  %v201 = vunpack.c.l.b16 %v47
  %v202 = vunpack.c.h.b16 %v47
  %v203 = vunpack.c.l.b16 %v48
  %v204 = vunpack.c.h.b16 %v48
  %v205 = vunpack.c.l.b16 %v49
  %v206 = vunpack.c.h.b16 %v49
  %v207 = vpack.c.b16 %v147, %v143
  %v208 = vpack.c.b16 %v148, %v144
  %v209 = vpack.c.b16 %v149, %v145
  %v210 = vpack.c.b16 %v150, %v146
  %v211 = vpack.c.b16 %v155, %v151
  %v212 = vpack.c.b16 %v156, %v152
  %v213 = vpack.c.b16 %v157, %v153
  %v214 = vpack.c.b16 %v158, %v154
  %v215 = vpack.c.b16 %v163, %v159
  %v216 = vpack.c.b16 %v164, %v160
  %v217 = vpack.c.b16 %v165, %v161
  %v218 = vpack.c.b16 %v166, %v162
  %v219 = vpack.c.b16 %v171, %v167
  %v220 = vpack.c.b16 %v172, %v168
  %v221 = vpack.c.b16 %v173, %v169
  %v222 = vpack.c.b16 %v174, %v170
  %v223 = vpack.c.b16 %v179, %v175
  %v224 = vpack.c.b16 %v180, %v176
  %v225 = vpack.c.b16 %v181, %v177
  %v226 = vpack.c.b16 %v182, %v178
  %v227 = vpack.c.b16 %v187, %v183
  %v228 = vpack.c.b16 %v188, %v184
  %v229 = vpack.c.b16 %v189, %v185
  %v230 = vpack.c.b16 %v190, %v186
  %v231 = vpack.c.b16 %v195, %v191
  %v232 = vpack.c.b16 %v196, %v192
  %v233 = vpack.c.b16 %v197, %v193
  %v234 = vpack.c.b16 %v198, %v194
  %v235 = vpack.c.b16 %v203, %v199
  %v236 = vpack.c.b16 %v204, %v200
  %v237 = vpack.c.b16 %v205, %v201
  %v238 = vpack.c.b16 %v206, %v202
  %v317 = vunpack.c.l.b16 %v50
  %v318 = vunpack.c.l.b16 %v51
  %v319 = vunpack.c.l.b16 %v52
  %v320 = vunpack.c.l.b16 %v53
  %v321 = vunpack.c.l.b16 %v54
  %v322 = vunpack.c.l.b16 %v55
  %v323 = vunpack.c.l.b16 %v56
  %v324 = vunpack.c.l.b16 %v57
  %v325 = vunpack.c.l.b16 %v58
  %v326 = vunpack.c.l.b16 %v59
  %v327 = vunpack.c.l.b16 %v60
  %v328 = vunpack.c.l.b16 %v61
  %v329 = vunpack.c.l.b16 %v62
  %v330 = vunpack.c.l.b16 %v63
  %v331 = vunpack.c.l.b16 %v64
  %v332 = vunpack.c.l.b16 %v65
  %v333 = vunpack.c.l.b16 %v66
  %v334 = vunpack.c.l.b16 %v67
  %v335 = vunpack.c.l.b16 %v68
  %v336 = vunpack.c.l.b16 %v69
  %v337 = vunpack.c.l.b16 %v70
  %v338 = vunpack.c.l.b16 %v71
  %v339 = vunpack.c.l.b16 %v72
  %v340 = vunpack.c.l.b16 %v73
  %v341 = vunpack.c.l.b16 %v74
  %v342 = vunpack.c.l.b16 %v75
  %v343 = vunpack.c.l.b16 %v76
  %v344 = vunpack.c.l.b16 %v77
  %v345 = vunpack.c.l.b16 %v78
  %v346 = vunpack.c.l.b16 %v79
  %v347 = vunpack.c.l.b16 %v80
  %v348 = vunpack.c.l.b16 %v81
  %v349 = vunpack.c.l.b16 %v82
  %v350 = vunpack.c.l.b16 %v83
  %v351 = vunpack.c.l.b16 %v84
  %v352 = vunpack.c.l.b16 %v85
  %v353 = vunpack.c.l.b16 %v86
  %v354 = vunpack.c.l.b16 %v87
  %v355 = vunpack.c.l.b16 %v88
  %v356 = vunpack.c.l.b16 %v89
  %v357 = vunpack.c.l.b16 %v90
  %v358 = vunpack.c.l.b16 %v91
  %v359 = vunpack.c.l.b16 %v92
  %v360 = vunpack.c.l.b16 %v93
  %v361 = vunpack.c.l.b16 %v94
  %v362 = vunpack.c.l.b16 %v95
  %v363 = vunpack.c.l.b16 %v96
  %v364 = vunpack.c.l.b16 %v97
  %v365 = vunpack.c.l.b16 %v98
  %v366 = vunpack.c.l.b16 %v99
  %v367 = vunpack.c.l.b16 %v100
  %v368 = vunpack.c.l.b16 %v101
  %v369 = vunpack.c.l.b16 %v102
  %v370 = vunpack.c.l.b16 %v103
  %v371 = vpack.c.b16 %v318, %v317
  %v372 = vpack.c.b16 %v320, %v319
  %v373 = vpack.c.b16 %v322, %v321
  %v374 = vpack.c.b16 %v324, %v323
  %v375 = vpack.c.b16 %v326, %v325
  %v376 = vpack.c.b16 %v328, %v327
  %v377 = vpack.c.b16 %v330, %v329
  %v378 = vpack.c.b16 %v332, %v331
  %v379 = vpack.c.b16 %v334, %v333
  %v380 = vpack.c.b16 %v336, %v335
  %v381 = vpack.c.b16 %v338, %v337
  %v382 = vpack.c.b16 %v340, %v339
  %v383 = vpack.c.b16 %v342, %v341
  %v384 = vpack.c.b16 %v344, %v343
  %v385 = vpack.c.b16 %v346, %v345
  %v386 = vpack.c.b16 %v348, %v347
  %v387 = vpack.c.b16 %v350, %v349
  %v388 = vpack.c.b16 %v352, %v351
  %v389 = vpack.c.b16 %v354, %v353
  %v390 = vpack.c.b16 %v356, %v355
  %v391 = vpack.c.b16 %v358, %v357
  %v392 = vpack.c.b16 %v360, %v359
  %v393 = vpack.c.b16 %v362, %v361
  %v394 = vpack.c.b16 %v364, %v363
  %v395 = vpack.c.b16 %v366, %v365
  %v396 = vpack.c.b16 %v368, %v367
  %v397 = vpack.c.b16 %v370, %v369
  %vm425 = vcmask 392192
  %v427 = vsel %vm425, %v210, 0
  %v430 = vsel %vm425, %v214, 0
  %v433 = vsel %vm425, %v218, 0
  %v436 = vsel %vm425, %v222, 0
  %v439 = vsel %vm425, %v226, 0
  %v442 = vsel %vm425, %v230, 0
  %v445 = vsel %vm425, %v234, 0
  %v448 = vsel %vm425, %v238, 0
  %450 = vmatprep.subr.bf16.mxu0 0
  %451 = vmatpush1.bf16.msra.mxu0 %v371
  %452 = vmatprep.subr.bf16.mxu0 0
  %453 = vmatpush1.bf16.msra.mxu0 %v372
  %454 = vmatprep.subr.bf16.mxu0 0
  %455 = vmatpush1.bf16.msra.mxu0 %v373
  %456 = vmatprep.subr.bf16.mxu0 0
  %457 = vmatpush1.bf16.msra.mxu0 %v374
  %458 = vmatprep.subr.bf16.mxu0 0
  %459 = vmatpush1.bf16.msra.mxu0 %v375
  %460 = vmatprep.subr.bf16.mxu0 0
  %461 = vmatpush1.bf16.msra.mxu0 %v376
  %462 = vmatprep.subr.bf16.mxu0 0
  %463 = vmatpush1.bf16.msra.mxu0 %v377
  %464 = vmatprep.subr.bf16.mxu0 0
  %465 = vmatpush1.bf16.msra.mxu0 %v378
  %466 = vmatprep.subr.bf16.mxu0 0
  %467 = vmatpush1.bf16.msra.mxu0 %v379
  %468 = vmatprep.subr.bf16.mxu0 0
  %469 = vmatpush1.bf16.msra.mxu0 %v380
  %470 = vmatprep.subr.bf16.mxu0 0
  %471 = vmatpush1.bf16.msra.mxu0 %v381
  %472 = vmatprep.subr.bf16.mxu0 0
  %473 = vmatpush1.bf16.msra.mxu0 %v382
  %474 = vmatprep.subr.bf16.mxu0 0
  %475 = vmatpush1.bf16.msra.mxu0 %v383
  %476 = vmatprep.subr.bf16.mxu0 0
  %477 = vmatpush1.bf16.msra.mxu0 %v384
  %478 = vmatprep.subr.bf16.mxu0 0
  %479 = vmatpush1.bf16.msra.mxu0 %v385
  %480 = vmatprep.subr.bf16.mxu0 0
  %481 = vmatpush1.bf16.msra.mxu0 %v386
  %482 = vmatprep.mubr.bf16.mxu0 %v208
  %483 = vmatmul.mubr.bf16.gmra.mrb[0].mxu0 %v207
  %v484 = vpop.f32.mrb[0].mxu0
  %v485 = vadd.f32 %v109, %v484
  %v486 = vpop.f32.mrb[0].mxu0
  %v487 = vpop.f32.mrb[0].mxu0
  %v488 = vadd.f32 %v109, %v487
  %v489 = vpop.f32.mrb[0].mxu0
  %490 = vmatprep.mubr.bf16.mxu0 %v212
  %491 = vmatmul.mubr.bf16.gmra.mrb[0].mxu0 %v211
  %v492 = vpop.f32.mrb[0].mxu0
  %v493 = vadd.f32 %v109, %v492
  %v494 = vpop.f32.mrb[0].mxu0
  %v495 = vpop.f32.mrb[0].mxu0
  %v496 = vadd.f32 %v109, %v495
  %v497 = vpop.f32.mrb[0].mxu0
  %498 = vmatprep.mubr.bf16.mxu0 %v216
  %499 = vmatmul.mubr.bf16.gmra.mrb[0].mxu0 %v215
  %v500 = vpop.f32.mrb[0].mxu0
  %v501 = vadd.f32 %v109, %v500
  %v502 = vpop.f32.mrb[0].mxu0
  %v503 = vpop.f32.mrb[0].mxu0
  %v504 = vadd.f32 %v109, %v503
  %v505 = vpop.f32.mrb[0].mxu0
  %506 = vmatprep.mubr.bf16.mxu0 %v220
  %507 = vmatmul.mubr.bf16.gmra.mrb[0].mxu0 %v219
  %v508 = vpop.f32.mrb[0].mxu0
  %v509 = vadd.f32 %v109, %v508
  %v510 = vpop.f32.mrb[0].mxu0
  %v511 = vpop.f32.mrb[0].mxu0
  %v512 = vadd.f32 %v109, %v511
  %v513 = vpop.f32.mrb[0].mxu0
  %514 = vmatprep.mubr.bf16.mxu0 %v224
  %515 = vmatmul.mubr.bf16.gmra.mrb[0].mxu0 %v223
  %v516 = vpop.f32.mrb[0].mxu0
  %v517 = vadd.f32 %v109, %v516
  %v518 = vpop.f32.mrb[0].mxu0
  %v519 = vpop.f32.mrb[0].mxu0
  %v520 = vadd.f32 %v109, %v519
  %v521 = vpop.f32.mrb[0].mxu0
  %522 = vmatprep.mubr.bf16.mxu0 %v228
  %523 = vmatmul.mubr.bf16.gmra.mrb[0].mxu0 %v227
  %v524 = vpop.f32.mrb[0].mxu0
  %v525 = vadd.f32 %v109, %v524
  %v526 = vpop.f32.mrb[0].mxu0
  %v527 = vpop.f32.mrb[0].mxu0
  %v528 = vadd.f32 %v109, %v527
  %v529 = vpop.f32.mrb[0].mxu0
  %530 = vmatprep.mubr.bf16.mxu0 %v232
  %531 = vmatmul.mubr.bf16.gmra.mrb[0].mxu0 %v231
  %v532 = vpop.f32.mrb[0].mxu0
  %v533 = vadd.f32 %v109, %v532
  %v534 = vpop.f32.mrb[0].mxu0
  %v535 = vpop.f32.mrb[0].mxu0
  %v536 = vadd.f32 %v109, %v535
  %v537 = vpop.f32.mrb[0].mxu0
  %538 = vmatprep.mubr.bf16.mxu0 %v236
  %539 = vmatmul.mubr.bf16.gmra.mrb[0].mxu0 %v235
  %v540 = vpop.f32.mrb[0].mxu0
  %v541 = vadd.f32 %v109, %v540
  %v542 = vpop.f32.mrb[0].mxu0
  %v543 = vpop.f32.mrb[0].mxu0
  %v544 = vadd.f32 %v109, %v543
  %v545 = vpop.f32.mrb[0].mxu0
  %546 = vdwg.mxu0
  %547 = vmatprep.subr.bf16.mxu0 0
  %548 = vmatpush1.bf16.msra.mxu0 %v387
  %549 = vmatprep.subr.bf16.mxu0 0
  %550 = vmatpush1.bf16.msra.mxu0 %v388
  %551 = vmatprep.subr.bf16.mxu0 0
  %552 = vmatpush1.bf16.msra.mxu0 %v389
  %553 = vmatprep.subr.bf16.mxu0 0
  %554 = vmatpush1.bf16.msra.mxu0 %v390
  %555 = vmatprep.subr.bf16.mxu0 0
  %556 = vmatpush1.bf16.msra.mxu0 %v391
  %557 = vmatprep.subr.bf16.mxu0 0
  %558 = vmatpush1.bf16.msra.mxu0 %v392
  %559 = vmatprep.subr.bf16.mxu0 0
  %560 = vmatpush1.bf16.msra.mxu0 %v393
  %561 = vmatprep.subr.bf16.mxu0 0
  %562 = vmatpush1.bf16.msra.mxu0 %v394
  %563 = vmatprep.subr.bf16.mxu0 0
  %564 = vmatpush1.bf16.msra.mxu0 %v395
  %565 = vmatprep.subr.bf16.mxu0 0
  %566 = vmatpush1.bf16.msra.mxu0 %v396
  %567 = vmatprep.subr.bf16.mxu0 0
  %568 = vmatpush1.bf16.msra.mxu0 %v397
  %569 = vmatprep.subr.bf16.mxu0 0
  %570 = vmatpush1.bf16.msra.mxu0 0
  %571 = vmatprep.subr.bf16.mxu0 0
  %572 = vmatpush1.bf16.msra.mxu0 0
  %573 = vmatprep.subr.bf16.mxu0 0
  %574 = vmatpush1.bf16.msra.mxu0 0
  %575 = vmatprep.subr.bf16.mxu0 0
  %576 = vmatpush1.bf16.msra.mxu0 0
  %577 = vmatprep.subr.bf16.mxu0 0
  %578 = vmatpush1.bf16.msra.mxu0 0
  %579 = vmatprep.mubr.bf16.mxu0 %v427
  %580 = vmatmul.mubr.bf16.gmra.mrb[0].mxu0 %v209
  %v581 = vpop.f32.mrb[0].mxu0
  %v582 = vadd.f32 %v485, %v581
  %v583 = vpop.f32.mrb[0].mxu0
  %v584 = vpop.f32.mrb[0].mxu0
  %v585 = vadd.f32 %v488, %v584
  %v586 = vpop.f32.mrb[0].mxu0
  %587 = vmatprep.mubr.bf16.mxu0 %v430
  %588 = vmatmul.mubr.bf16.gmra.mrb[0].mxu0 %v213
  %v589 = vpop.f32.mrb[0].mxu0
  %v590 = vadd.f32 %v493, %v589
  %v591 = vpop.f32.mrb[0].mxu0
  %v592 = vpop.f32.mrb[0].mxu0
  %v593 = vadd.f32 %v496, %v592
  %v594 = vpop.f32.mrb[0].mxu0
  %595 = vmatprep.mubr.bf16.mxu0 %v433
  %596 = vmatmul.mubr.bf16.gmra.mrb[0].mxu0 %v217
  %v597 = vpop.f32.mrb[0].mxu0
  %v598 = vadd.f32 %v501, %v597
  %v599 = vpop.f32.mrb[0].mxu0
  %v600 = vpop.f32.mrb[0].mxu0
  %v601 = vadd.f32 %v504, %v600
  %v602 = vpop.f32.mrb[0].mxu0
  %603 = vmatprep.mubr.bf16.mxu0 %v436
  %604 = vmatmul.mubr.bf16.gmra.mrb[0].mxu0 %v221
  %v605 = vpop.f32.mrb[0].mxu0
  %v606 = vadd.f32 %v509, %v605
  %v607 = vpop.f32.mrb[0].mxu0
  %v608 = vpop.f32.mrb[0].mxu0
  %v609 = vadd.f32 %v512, %v608
  %v610 = vpop.f32.mrb[0].mxu0
  %611 = vmatprep.mubr.bf16.mxu0 %v439
  %612 = vmatmul.mubr.bf16.gmra.mrb[0].mxu0 %v225
  %v613 = vpop.f32.mrb[0].mxu0
  %v614 = vadd.f32 %v517, %v613
  %v615 = vpop.f32.mrb[0].mxu0
  %v616 = vpop.f32.mrb[0].mxu0
  %v617 = vadd.f32 %v520, %v616
  %v618 = vpop.f32.mrb[0].mxu0
  %619 = vmatprep.mubr.bf16.mxu0 %v442
  %620 = vmatmul.mubr.bf16.gmra.mrb[0].mxu0 %v229
  %v621 = vpop.f32.mrb[0].mxu0
  %v622 = vadd.f32 %v525, %v621
  %v623 = vpop.f32.mrb[0].mxu0
  %v624 = vpop.f32.mrb[0].mxu0
  %v625 = vadd.f32 %v528, %v624
  %v626 = vpop.f32.mrb[0].mxu0
  %627 = vmatprep.mubr.bf16.mxu0 %v445
  %628 = vmatmul.mubr.bf16.gmra.mrb[0].mxu0 %v233
  %v629 = vpop.f32.mrb[0].mxu0
  %v630 = vadd.f32 %v533, %v629
  %v631 = vpop.f32.mrb[0].mxu0
  %v632 = vpop.f32.mrb[0].mxu0
  %v633 = vadd.f32 %v536, %v632
  %v634 = vpop.f32.mrb[0].mxu0
  %635 = vmatprep.mubr.bf16.mxu0 %v448
  %636 = vmatmul.mubr.bf16.gmra.mrb[0].mxu0 %v237
  %v637 = vpop.f32.mrb[0].mxu0
  %v638 = vadd.f32 %v541, %v637
  %v639 = vpop.f32.mrb[0].mxu0
  %v640 = vpop.f32.mrb[0].mxu0
  %v641 = vadd.f32 %v544, %v640
  %v642 = vpop.f32.mrb[0].mxu0
  %643 = vdwg.mxu0
  %v644 = vld [vmem:[%s3] sm:$0xf]
  %v645 = vld [vmem:[%s3 + $0x4] sm:$0xf]
  %v646 = vld [vmem:[%s3 + $0x8] sm:$0xf]
  %v647 = vld [vmem:[%s3 + $0xc] sm:$0xf]
  %v648 = vld [vmem:[%s3 + $0x10] sm:$0xf]
  %v649 = vld [vmem:[%s3 + $0x14] sm:$0xf]
  %v650 = vld [vmem:[%s3 + $0x18] sm:$0xf]
  %v651 = vld [vmem:[%s3 + $0x1c] sm:$0xf]
  %v652 = vld [vmem:[%s3 + $0x20] sm:$0xf]
  %v653 = vld [vmem:[%s3 + $0x24] sm:$0xf]
  %v654 = vld [vmem:[%s3 + $0x28] sm:$0xf]
  %v655 = vld [vmem:[%s3 + $0x2c] sm:$0xf]
  %v656 = vld [vmem:[%s3 + $0x30] sm:$0xf]
  %v657 = vld [vmem:[%s3 + $0x34] sm:$0xf]
  %v658 = vld [vmem:[%s3 + $0x38] sm:$0xf]
  %v659 = vld [vmem:[%s3 + $0x3c] sm:$0xf]
  %v660 = vunpack.c.l.bf16 %v644
  %v661 = vunpack.c.l.bf16 %v645
  %v662 = vunpack.c.l.bf16 %v646
  %v663 = vunpack.c.l.bf16 %v647
  %v664 = vunpack.c.l.bf16 %v648
  %v665 = vunpack.c.l.bf16 %v649
  %v666 = vunpack.c.l.bf16 %v650
  %v667 = vunpack.c.l.bf16 %v651
  %v668 = vunpack.c.l.bf16 %v652
  %v669 = vunpack.c.l.bf16 %v653
  %v670 = vunpack.c.l.bf16 %v654
  %v671 = vunpack.c.l.bf16 %v655
  %v672 = vunpack.c.l.bf16 %v656
  %v673 = vunpack.c.l.bf16 %v657
  %v674 = vunpack.c.l.bf16 %v658
  %v675 = vunpack.c.l.bf16 %v659
  %v676 = vadd.f32 %v582, %v660
  %v677 = vadd.f32 %v585, %v661
  %v678 = vadd.f32 %v590, %v662
  %v679 = vadd.f32 %v593, %v663
  %v680 = vadd.f32 %v598, %v664
  %v681 = vadd.f32 %v601, %v665
  %v682 = vadd.f32 %v606, %v666
  %v683 = vadd.f32 %v609, %v667
  %v684 = vadd.f32 %v614, %v668
  %v685 = vadd.f32 %v617, %v669
  %v686 = vadd.f32 %v622, %v670
  %v687 = vadd.f32 %v625, %v671
  %v688 = vadd.f32 %v630, %v672
  %v689 = vadd.f32 %v633, %v673
  %v690 = vadd.f32 %v638, %v674
  %v691 = vadd.f32 %v641, %v675
  %v692 = vpack.c.bf16 %v677, %v676
  %v693 = vpack.c.bf16 %v679, %v678
  %v694 = vpack.c.bf16 %v681, %v680
  %v695 = vpack.c.bf16 %v683, %v682
  %v696 = vpack.c.bf16 %v685, %v684
  %v697 = vpack.c.bf16 %v687, %v686
  %v698 = vpack.c.bf16 %v689, %v688
  %v699 = vpack.c.bf16 %v691, %v690
  %v708 = vunpack.c.l.b16 %v692
  %v709 = vunpack.c.h.b16 %v692
  %v710 = vunpack.c.l.b16 %v693
  %v711 = vunpack.c.h.b16 %v693
  %v712 = vunpack.c.l.b16 %v694
  %v713 = vunpack.c.h.b16 %v694
  %v714 = vunpack.c.l.b16 %v695
  %v715 = vunpack.c.h.b16 %v695
  %v716 = vunpack.c.l.b16 %v696
  %v717 = vunpack.c.h.b16 %v696
  %v718 = vunpack.c.l.b16 %v697
  %v719 = vunpack.c.h.b16 %v697
  %v720 = vunpack.c.l.b16 %v698
  %v721 = vunpack.c.h.b16 %v698
  %v722 = vunpack.c.l.b16 %v699
  %v723 = vunpack.c.h.b16 %v699
  %v724 = vpack.c.b16 %v708, %v708
  %v725 = vpack.c.b16 %v709, %v709
  %v726 = vpack.c.b16 %v710, %v710
  %v727 = vpack.c.b16 %v711, %v711
  %v728 = vpack.c.b16 %v712, %v712
  %v729 = vpack.c.b16 %v713, %v713
  %v730 = vpack.c.b16 %v714, %v714
  %v731 = vpack.c.b16 %v715, %v715
  %v732 = vpack.c.b16 %v716, %v716
  %v733 = vpack.c.b16 %v717, %v717
  %v734 = vpack.c.b16 %v718, %v718
  %v735 = vpack.c.b16 %v719, %v719
  %v736 = vpack.c.b16 %v720, %v720
  %v737 = vpack.c.b16 %v721, %v721
  %v738 = vpack.c.b16 %v722, %v722
  %v739 = vpack.c.b16 %v723, %v723
  %756 = vst [vmem:[%s4] sm:$0xf] %v724
  %757 = vst [vmem:[%s4 + $0x4] sm:$0xf] %v725
  %758 = vst [vmem:[%s4 + $0x8] sm:$0xf] %v726
  %759 = vst [vmem:[%s4 + $0xc] sm:$0xf] %v727
  %760 = vst [vmem:[%s4 + $0x10] sm:$0xf] %v728
  %761 = vst [vmem:[%s4 + $0x14] sm:$0xf] %v729
  %762 = vst [vmem:[%s4 + $0x18] sm:$0xf] %v730
  %763 = vst [vmem:[%s4 + $0x1c] sm:$0xf] %v731
  %764 = vst [vmem:[%s4 + $0x20] sm:$0xf] %v732
  %765 = vst [vmem:[%s4 + $0x24] sm:$0xf] %v733
  %766 = vst [vmem:[%s4 + $0x28] sm:$0xf] %v734
  %767 = vst [vmem:[%s4 + $0x2c] sm:$0xf] %v735
  %768 = vst [vmem:[%s4 + $0x30] sm:$0xf] %v736
  %769 = vst [vmem:[%s4 + $0x34] sm:$0xf] %v737
  %770 = vst [vmem:[%s4 + $0x38] sm:$0xf] %v738
  %771 = vst [vmem:[%s4 + $0x3c] sm:$0xf] %v739
  // Predicated region
  $region18: #{_lambda_.17} parent=0 // pred_check
    _
  $region19: #{_lambda_.17} parent=0 // pred_check_branch
    %773 = sbr.rel (0) target = $region21
  $region20: #{_lambda_.17} parent=0 // pred_region
    _
  $region21: #{_lambda_.17} parent=0 // pred_fallthru
    _
  // Predicated region
  $region22: #{_lambda_.17} parent=0 // pred_check
    _
  $region23: #{_lambda_.17} parent=0 // pred_check_branch
    %775 = sbr.rel (0) target = $region25
  $region24: #{_lambda_.17} parent=0 // pred_region
    _
  $region25: #{_lambda_.17} parent=0 // pred_fallthru
    _

// kernel: _lambda_.19
$region0: #{_lambda_.19}
  #allocation0 [shape = 'u32[]', space=smem, size = 0x4, offset = 0x4, fixed_abs, tag = 'smem constant byte address 0x4 - core index']
  #allocation1 [shape = 'u32[144,128]{1,0:T(1,128)}', space=vmem, size = 0x12000, scoped, tag = 'internal scratch']
  %s0 = inlined_call_operand.vmem [shape: bf16[2,64,16], index: 0, kind: input, shape index: {}]
  %s1 = inlined_call_operand.vmem [shape: f32[2,1,16], index: 1, kind: input, shape index: {}]
  %s2 = inlined_call_operand.vmem [shape: f32[2,1,16], index: 2, kind: input, shape index: {}]
  %s3 = inlined_call_operand.hbm [shape: f32[2,64,16], index: 3, kind: output, shape index: {}]
  %s4 = sld [smem:[#allocation0]]
  $region45: #{_lambda_.19} parent=0
    _
  %s6 = ssub.s32 1, %s4
  %s7 = scalar_select 0, %s6, %s4
  $region1: #{_lambda_.19} parent=0
    #allocation2 [shape = 'u8[65536]{0}', space=vmem, size = 0x10000, scoped, tag = 'output window, operand 0']
    #allocation3 [shape = 's32[2]{0}', space=sflag, size = 0x8, scoped, tag = 'scoped memory for _lambda_.19']
    %8 = vsyncpa [#allocation3], 0
    %s9 = scalar_lea.sflag [#allocation3], 1
    %10 = vsyncpa %s9, 0
    loop: start=0, step=1, limit=4
    $region2: #{_lambda_.19} parent=1 // loop_pre_header
      _
    $region3: #{_lambda_.19} parent=1 // loop_header
      %s12 = sphi 0, %s16
      %p13 = scmp.ge.s32.totalorder %s12, 4
      %s19 = sphi 0, %s31
      %s20 = sphi 0, %s27
      %s21 = sphi 0, %s19
      %s22 = sphi 0, %s20
      %s23 = sphi 0, %s21
      %s24 = sphi 0, %s22
      %s36 = sphi 0, %s38
      %s39 = sphi 0, %s36
      %s40 = sphi 0, %s39
      %s56 = sphi 0, %s40
      %s62 = sphi 0, %s64
      %s65 = sphi 0, %s62
      %s66 = sphi 0, %s65
      %s82 = sphi 0, %s66
      %s88 = sphi 0, %s90
      %s91 = sphi 0, %s88
      %s92 = sphi 0, %s91
      %s108 = sphi 0, %s92
      %s116 = sphi 0, %s118
      %s119 = sphi 0, %s116
      %s120 = sphi 0, %s119
      %s136 = sphi 0, %s120
    $region4: #{_lambda_.19} parent=1 // loop_header_branch
      %15 = sbr.rel (%p13) target = $region8
    $region5: #{_lambda_.19} parent=1 // loop_body
      %s17 = ssub.s32 %s12, 1
      %s18 = ssub.s32 %s12, 2
      %s25 = sadd.s32 1, %s20
      %p26 = scmp.ge.s32.totalorder %s25, 1
      %s27 = scalar_select %p26, 0, %s25
      %s28 = sadd.s32 1, %s19
      %s29 = scalar_select %p26, %s28, %s19
      %p30 = scmp.ge.s32.totalorder %s29, 2
      %s31 = scalar_select %p30, 0, %s29
      %s32 = ssub.s32 %s19, %s31
      %s33 = ssub.s32 %s20, %s27
      %s34 = sor.u32 %s32, %s33
      %p35 = scmp.eq.s32.totalorder %s34, 0
      %s37 = sadd.s32 %s36, 1
      %s38 = scalar_select %p35, %s36, %s37
      %p41 = pneg %p35
      %p42 = scmp.eq.s32.totalorder %s12, 1
      %p43 = por %p41, %p42
      %p44 = scmp.ne.s32.totalorder %s36, %s39
      %p45 = scmp.eq.s32.totalorder %s12, 0
      %p46 = por %p44, %p45
      %p47 = scmp.ne.s32.totalorder %s36, %s39
      %p48 = scmp.eq.s32.totalorder %s17, 1
      %p49 = por %p47, %p48
      %p50 = scmp.ne.s32.totalorder %s39, %s40
      %p51 = scmp.eq.s32.totalorder %s17, 0
      %p52 = por %p50, %p51
      %p53 = scmp.ne.s32.totalorder %s39, %s40
      %p54 = scmp.eq.s32.totalorder %s18, 1
      %p55 = por %p53, %p54
      %p57 = scmp.ne.s32.totalorder %s40, %s56
      %p58 = scmp.eq.s32.totalorder %s18, 0
      %p59 = por %p57, %p58
      %s60 = ssub.s32 %s19, %s31
      %p61 = scmp.eq.s32.totalorder %s60, 0
      %s63 = sadd.s32 %s62, 1
      %s64 = scalar_select %p61, %s62, %s63
      %p67 = pneg %p61
      %p68 = scmp.eq.s32.totalorder %s12, 1
      %p69 = por %p67, %p68
      %p70 = scmp.ne.s32.totalorder %s62, %s65
      %p71 = scmp.eq.s32.totalorder %s12, 0
      %p72 = por %p70, %p71
      %p73 = scmp.ne.s32.totalorder %s62, %s65
      %p74 = scmp.eq.s32.totalorder %s17, 1
      %p75 = por %p73, %p74
      %p76 = scmp.ne.s32.totalorder %s65, %s66
      %p77 = scmp.eq.s32.totalorder %s17, 0
      %p78 = por %p76, %p77
      %p79 = scmp.ne.s32.totalorder %s65, %s66
      %p80 = scmp.eq.s32.totalorder %s18, 1
      %p81 = por %p79, %p80
      %p83 = scmp.ne.s32.totalorder %s66, %s82
      %p84 = scmp.eq.s32.totalorder %s18, 0
      %p85 = por %p83, %p84
      %s86 = ssub.s32 %s19, %s31
      %p87 = scmp.eq.s32.totalorder %s86, 0
      %s89 = sadd.s32 %s88, 1
      %s90 = scalar_select %p87, %s88, %s89
      %p93 = pneg %p87
      %p94 = scmp.eq.s32.totalorder %s12, 1
      %p95 = por %p93, %p94
      %p96 = scmp.ne.s32.totalorder %s88, %s91
      %p97 = scmp.eq.s32.totalorder %s12, 0
      %p98 = por %p96, %p97
      %p99 = scmp.ne.s32.totalorder %s88, %s91
      %p100 = scmp.eq.s32.totalorder %s17, 1
      %p101 = por %p99, %p100
      %p102 = scmp.ne.s32.totalorder %s91, %s92
      %p103 = scmp.eq.s32.totalorder %s17, 0
      %p104 = por %p102, %p103
      %p105 = scmp.ne.s32.totalorder %s91, %s92
      %p106 = scmp.eq.s32.totalorder %s18, 1
      %p107 = por %p105, %p106
      %p109 = scmp.ne.s32.totalorder %s92, %s108
      %p110 = scmp.eq.s32.totalorder %s18, 0
      %p111 = por %p109, %p110
      %s112 = ssub.s32 %s19, %s31
      %s113 = ssub.s32 %s20, %s27
      %s114 = sor.u32 %s112, %s113
      %p115 = scmp.eq.s32.totalorder %s114, 0
      %s117 = sadd.s32 %s116, 1
      %s118 = scalar_select %p115, %s116, %s117
      %p121 = pneg %p115
      %p122 = scmp.eq.s32.totalorder %s12, 1
      %p123 = por %p121, %p122
      %p124 = scmp.ne.s32.totalorder %s116, %s119
      %p125 = scmp.eq.s32.totalorder %s12, 0
      %p126 = por %p124, %p125
      %p127 = scmp.ne.s32.totalorder %s116, %s119
      %p128 = scmp.eq.s32.totalorder %s17, 1
      %p129 = por %p127, %p128
      %p130 = scmp.ne.s32.totalorder %s119, %s120
      %p131 = scmp.eq.s32.totalorder %s17, 0
      %p132 = por %p130, %p131
      %p133 = scmp.ne.s32.totalorder %s119, %s120
      %p134 = scmp.eq.s32.totalorder %s18, 1
      %p135 = por %p133, %p134
      %p137 = scmp.ne.s32.totalorder %s120, %s136
      %p138 = scmp.eq.s32.totalorder %s18, 0
      %p139 = por %p137, %p138
      %p140 = scmp.le.s32.totalorder 1, %s12
      %p141 = scmp.lt.s32.totalorder %s12, 3
      %p142 = pnand %p140, %p141
      %p143 = pneg %p142
      // Predicated region
      $region9: #{_lambda_.19} parent=5 // pred_check
        _
      $region10: #{_lambda_.19} parent=5 // pred_check_branch
        %145 = sbr.rel (%p142) target = $region12
      $region11: #{_lambda_.19} parent=5 // pred_region
        %s146 = ssub.s32 %s12, 1
      $region12: #{_lambda_.19} parent=5 // pred_fallthru
        _
      %p147 = scmp.lt.s32.totalorder %s12, 2
      // Predicated region
      $region13: #{_lambda_.19} parent=5 // pred_check
        %p148 = pneg %p147
      $region14: #{_lambda_.19} parent=5 // pred_check_branch
        %150 = sbr.rel (%p148) target = $region16
      $region15: #{_lambda_.19} parent=5 // pred_region
        // Predicated region
        $region17: #{_lambda_.19} parent=15 // pred_check
          %p151 = pneg %p46
        $region18: #{_lambda_.19} parent=15 // pred_check_branch
          %153 = sbr.rel (%p151) target = $region20
        $region19: #{_lambda_.19} parent=15 // pred_region
          %s154 = smul.u32 8, %s20
          %p155 = scmp.lt.s32.totalorder %s19, 1
          %s156 = scalar_select %p155, %s19, 1
          %p157 = scmp.lt.s32.totalorder %s154, 7
          %s158 = scalar_select %p157, %s154, 7
          %s159 = smul.addr %s156, 8
          %s160 = sadd.s32 %s158, %s159
          %s161 = smul.addr %s160, 4
          %s162 = scalar_lea.vmem %s0, %s161
          %s163 = smul.u32 8, %s20
        $region20: #{_lambda_.19} parent=15 // pred_fallthru
          _
        // Predicated region
        $region21: #{_lambda_.19} parent=15 // pred_check
          %p164 = pneg %p72
        $region22: #{_lambda_.19} parent=15 // pred_check_branch
          %166 = sbr.rel (%p164) target = $region24
        $region23: #{_lambda_.19} parent=15 // pred_region
          %p167 = scmp.lt.s32.totalorder %s19, 1
          %s168 = scalar_select %p167, %s19, 1
          %s169 = scalar_lea.vmem %s1, %s168
        $region24: #{_lambda_.19} parent=15 // pred_fallthru
          _
        // Predicated region
        $region25: #{_lambda_.19} parent=15 // pred_check
          %p170 = pneg %p98
        $region26: #{_lambda_.19} parent=15 // pred_check_branch
          %172 = sbr.rel (%p170) target = $region28
        $region27: #{_lambda_.19} parent=15 // pred_region
          %p173 = scmp.lt.s32.totalorder %s19, 1
          %s174 = scalar_select %p173, %s19, 1
          %s175 = scalar_lea.vmem %s2, %s174
        $region28: #{_lambda_.19} parent=15 // pred_fallthru
          _
      $region16: #{_lambda_.19} parent=5 // pred_fallthru
        _
      %p176 = scmp.le.s32.totalorder 1, %s12
      %p177 = scmp.lt.s32.totalorder %s12, 3
      %p178 = pnand %p176, %p177
      %p179 = pneg %p178
      // Predicated region
      $region29: #{_lambda_.19} parent=5 // pred_check
        _
      $region30: #{_lambda_.19} parent=5 // pred_check_branch
        %181 = sbr.rel (%p178) target = $region32
      $region31: #{_lambda_.19} parent=5 // pred_region
        %s182 = ssub.s32 %s12, 1
        %s183 = smul.u32 8, %s22
        %p184 = scmp.lt.s32.totalorder %s21, 1
        %s185 = scalar_select %p184, %s21, 1
        %p186 = scmp.lt.s32.totalorder %s183, 7
        %s187 = scalar_select %p186, %s183, 7
        %s188 = smul.addr %s185, 8
        %s189 = sadd.s32 %s187, %s188
        %s190 = smul.addr %s189, 4
        %s191 = scalar_lea.vmem %s0, %s190
        %p192 = pneg %p52
        %p193 = pneg %p49
        %p194 = scmp.lt.s32.totalorder %s21, 1
        %s195 = scalar_select %p194, %s21, 1
        %s196 = scalar_lea.vmem %s1, %s195
        %p197 = pneg %p78
        %p198 = pneg %p75
        %p199 = scmp.lt.s32.totalorder %s21, 1
        %s200 = scalar_select %p199, %s21, 1
        %s201 = scalar_lea.vmem %s2, %s200
        %p202 = pneg %p104
        %p203 = pneg %p101
        %p204 = pneg %p132
        %p205 = pneg %p129
        %s206 = sand.u32 %s119, 1
        %s207 = scalar_lea.sflag [#allocation3], %s206
        %s208 = sand.u32 %s119, 1
        %s209 = smul.addr %s208, 64
        %s210 = scalar_lea.vmem [#allocation2], %s209
        %s211 = smul.u32 8, %s22
        %p212 = scmp.lt.s32.totalorder %s21, 1
        %s213 = scalar_select %p212, %s21, 1
        %p214 = scmp.lt.s32.totalorder %s211, 7
        %s215 = scalar_select %p214, %s211, 7
        %s216 = smul.addr %s213, 8
        %s217 = sadd.s32 %s215, %s216
        %s218 = smul.addr %s217, 4
        %s219 = scalar_lea.vmem %s0, %s218
        %s220 = smul.u32 8, %s22
        %p221 = scmp.lt.s32.totalorder %s21, 1
        %s222 = scalar_select %p221, %s21, 1
        %s223 = scalar_lea.vmem %s1, %s222
        %p224 = scmp.lt.s32.totalorder %s21, 1
        %s225 = scalar_select %p224, %s21, 1
        %s226 = scalar_lea.vmem %s2, %s225
        %s227 = smul.u32 8, %s22
        %v228 = vld [vmem:[%s219] sm:$0xf]
        %v229 = vld [vmem:[%s219 + $0x4] sm:$0xf]
        %v230 = vld [vmem:[%s219 + $0x8] sm:$0xf]
        %v231 = vld [vmem:[%s219 + $0xc] sm:$0xf]
        %v232 = vld [vmem:[%s219 + $0x10] sm:$0xf]
        %v233 = vld [vmem:[%s219 + $0x14] sm:$0xf]
        %v234 = vld [vmem:[%s219 + $0x18] sm:$0xf]
        %v235 = vld [vmem:[%s219 + $0x1c] sm:$0xf]
        %v236 = vunpack.c.l.bf16 %v228
        %v237 = vunpack.c.l.bf16 %v229
        %v238 = vunpack.c.l.bf16 %v230
        %v239 = vunpack.c.l.bf16 %v231
        %v240 = vunpack.c.l.bf16 %v232
        %v241 = vunpack.c.l.bf16 %v233
        %v242 = vunpack.c.l.bf16 %v234
        %v243 = vunpack.c.l.bf16 %v235
        %v244 = vld [vmem:[%s223] sm:$0x1]
        %v246 = vlaneseq
        %v247 = vshrl.u32 %v246, 7
        %v248 = vsub.s32 0, %v247
        %v249 = vrot.slane %v244, %v248
        %v251 = vmul.f32 %v236, %v249
        %v252 = vmul.f32 %v237, %v249
        %v253 = vmul.f32 %v238, %v249
        %v254 = vmul.f32 %v239, %v249
        %v255 = vmul.f32 %v240, %v249
        %v256 = vmul.f32 %v241, %v249
        %v257 = vmul.f32 %v242, %v249
        %v258 = vmul.f32 %v243, %v249
        %v259 = vld [vmem:[%s226] sm:$0x1]
        %v261 = vlaneseq
        %v262 = vshrl.u32 %v261, 7
        %v263 = vsub.s32 0, %v262
        %v264 = vrot.slane %v259, %v263
        %v266 = vadd.f32 %v251, %v264
        %v267 = vadd.f32 %v252, %v264
        %v268 = vadd.f32 %v253, %v264
        %v269 = vadd.f32 %v254, %v264
        %v270 = vadd.f32 %v255, %v264
        %v271 = vadd.f32 %v256, %v264
        %v272 = vadd.f32 %v257, %v264
        %v273 = vadd.f32 %v258, %v264
        %v274 = vsub.f32 0.0, %v266
        %v275 = vsub.f32 0.0, %v267
        %v276 = vsub.f32 0.0, %v268
        %v277 = vsub.f32 0.0, %v269
        %v278 = vsub.f32 0.0, %v270
        %v279 = vsub.f32 0.0, %v271
        %v280 = vsub.f32 0.0, %v272
        %v281 = vsub.f32 0.0, %v273
        %v282 = vmul.f32 %v274, 1.442695
        %v283 = vpow.pop %v282
        %v284 = vmul.f32 %v275, 1.442695
        %v285 = vpow.pop %v284
        %v286 = vmul.f32 %v276, 1.442695
        %v287 = vpow.pop %v286
        %v288 = vmul.f32 %v277, 1.442695
        %v289 = vpow.pop %v288
        %v290 = vmul.f32 %v278, 1.442695
        %v291 = vpow.pop %v290
        %v292 = vmul.f32 %v279, 1.442695
        %v293 = vpow.pop %v292
        %v294 = vmul.f32 %v280, 1.442695
        %v295 = vpow.pop %v294
        %v296 = vmul.f32 %v281, 1.442695
        %v297 = vpow.pop %v296
        %v298 = vadd.f32 %v283, 1.0
        %v299 = vadd.f32 %v285, 1.0
        %v300 = vadd.f32 %v287, 1.0
        %v301 = vadd.f32 %v289, 1.0
        %v302 = vadd.f32 %v291, 1.0
        %v303 = vadd.f32 %v293, 1.0
        %v304 = vadd.f32 %v295, 1.0
        %v305 = vadd.f32 %v297, 1.0
        %v306 = vrcp.pop %v298
        %v307 = vrcp.pop %v299
        %v308 = vrcp.pop %v300
        %v309 = vrcp.pop %v301
        %v310 = vrcp.pop %v302
        %v311 = vrcp.pop %v303
        %v312 = vrcp.pop %v304
        %v313 = vrcp.pop %v305
        %v314 = vmul.f32 %v266, %v306
        %v315 = vmul.f32 %v267, %v307
        %v316 = vmul.f32 %v268, %v308
        %v317 = vmul.f32 %v269, %v309
        %v318 = vmul.f32 %v270, %v310
        %v319 = vmul.f32 %v271, %v311
        %v320 = vmul.f32 %v272, %v312
        %v321 = vmul.f32 %v273, %v313
        %vm322 = vcmask 130048
        %323 = vst.msk [vmem:[%s210] sm:$0xff] %vm322, %v314
        %324 = vst.msk [vmem:[%s210 + $0x8] sm:$0xff] %vm322, %v315
        %325 = vst.msk [vmem:[%s210 + $0x10] sm:$0xff] %vm322, %v316
        %326 = vst.msk [vmem:[%s210 + $0x18] sm:$0xff] %vm322, %v317
        %327 = vst.msk [vmem:[%s210 + $0x20] sm:$0xff] %vm322, %v318
        %328 = vst.msk [vmem:[%s210 + $0x28] sm:$0xff] %vm322, %v319
        %329 = vst.msk [vmem:[%s210 + $0x30] sm:$0xff] %vm322, %v320
        %330 = vst.msk [vmem:[%s210 + $0x38] sm:$0xff] %vm322, %v321
        %s331 = sand.u32 %s119, 1
        %s332 = scalar_lea.sflag [#allocation3], %s331
        %s333 = sand.u32 %s119, 1
        %s334 = smul.addr %s333, 64
        %s335 = scalar_lea.vmem [#allocation2], %s334
        // Predicated region
        $region33: #{_lambda_.19} parent=31 // pred_check
          %p336 = pneg %p129
        $region34: #{_lambda_.19} parent=31 // pred_check_branch
          %338 = sbr.rel (%p336) target = $region36
        $region35: #{_lambda_.19} parent=31 // pred_region
          %s339 = smul.u32 8, %s22
          %s341 = ssub.s32 1024, 1024
          %342 = vsyncadd %s332, %s341
          %s343 = smul.addr %s21, 8
          %s344 = sadd.s32 %s339, %s343
          %s345 = smul.addr %s344, 128
          %s346 = scalar_lea.hbm %s3, %s345
          %s347 = sshll.u32 %s335, 4
          %s348 = int_to_ptr.vmem [resolvable:$true] %s347
          %353 = dma.vmem_to_hbm [thread:$0]  %s348, 1024, %s346, %s332, 128, 128, 8
        $region36: #{_lambda_.19} parent=31 // pred_fallthru
          _
      $region32: #{_lambda_.19} parent=5 // pred_fallthru
        _
      %p354 = scmp.le.s32.totalorder 2, %s12
      // Predicated region
      $region37: #{_lambda_.19} parent=5 // pred_check
        %p355 = pneg %p354
      $region38: #{_lambda_.19} parent=5 // pred_check_branch
        %357 = sbr.rel (%p355) target = $region40
      $region39: #{_lambda_.19} parent=5 // pred_region
        %s358 = ssub.s32 %s12, 2
        // Predicated region
        $region41: #{_lambda_.19} parent=39 // pred_check
          %p359 = pneg %p135
        $region42: #{_lambda_.19} parent=39 // pred_check_branch
          %361 = sbr.rel (%p359) target = $region44
        $region43: #{_lambda_.19} parent=39 // pred_region
          %s362 = sand.u32 %s120, 1
          %s363 = scalar_lea.sflag [#allocation3], %s362
          %s364 = sand.u32 %s120, 1
          %s365 = smul.addr %s364, 64
          %s366 = scalar_lea.vmem [#allocation2], %s365
          %367 = dma.done %s363, 1024
        $region44: #{_lambda_.19} parent=39 // pred_fallthru
          _
      $region40: #{_lambda_.19} parent=5 // pred_fallthru
        _
    $region6: #{_lambda_.19} parent=1 // loop_footer
      %s16 = sadd.s32 1, %s12
    $region7: #{_lambda_.19} parent=1 // loop_footer_branch
      %11 = sbr.rel target = $region3
    $region8: #{_lambda_.19} parent=1 // loop_exit
      _
    %368 = vsyncpa [#allocation3], 1
    %s369 = scalar_lea.sflag [#allocation3], 1
    %370 = vsyncpa %s369, 1

</llo_original>
